<compile_context>
chip_gen: v7x
topology: tpu7x:2x2x1
jax: 0.10.0
libtpu: 0.0.40
codegen_flags: <defaults>
</compile_context>

<pallas_src>
import functools

import jax
import jax.numpy as jnp
from jax import lax
from jax.experimental import pallas as pl
from jax.experimental.pallas import tpu as pltpu


_VMEM_LIMIT_BYTES = 32 * 1024 * 1024  # safe on v5e/v6e (128 MiB) and v7x (64 MiB)


# ----------------------------------------------------------------------------- helpers
def _gelu(x):
    # tanh-form GELU: transcendental goes to the EUP slot.  Deviates from the exact
    # erf GELU by <~1e-3, below the bf16-matmul noise floor.
    c = 0.7978845608028654  # sqrt(2/pi)
    return 0.5 * x * (1.0 + jnp.tanh(c * (x + 0.044715 * x * x * x)))


def _layernorm(x, g, b, eps):
    mu = jnp.mean(x, axis=-1, keepdims=True)
    xc = x - mu
    var = jnp.mean(xc * xc, axis=-1, keepdims=True)
    return xc * lax.rsqrt(var + eps) * g + b


def _pick_tile(dim, pref, aligns):
    """Largest tile <= pref that divides `dim` and is a multiple of an alignment in
    `aligns` (tried in order, e.g. (256, 128) to prefer the 256-wide MXU); falls back
    to the full dim."""
    if dim <= pref:
        return dim
    for align in aligns:
        t = (pref // align) * align
        while t >= align:
            if dim % t == 0:
                return t
            t -= align
    return dim


def _largest_divisor(n, pref):
    t = min(n, pref)
    while n % t:
        t -= 1
    return t


# ----------------------------------------------------------------------------- fused linear
def _fused_linear_kernel(*refs, nk, has_in_ln, has_bias, has_res, has_out_ln,
                         activation, eps_in, eps_out):
    it = iter(refs)
    x_ref = next(it)
    w_ref = next(it)
    lg_ref = lb_ref = bias_ref = res_ref = og_ref = ob_ref = None
    if has_in_ln:
        lg_ref = next(it)
        lb_ref = next(it)
    if has_bias:
        bias_ref = next(it)
    if has_res:
        res_ref = next(it)
    if has_out_ln:
        og_ref = next(it)
        ob_ref = next(it)
    o_ref = next(it)
    acc_ref = next(it) if nk > 1 else None
    xn_ref = next(it) if has_in_ln else None

    j = pl.program_id(1)
    k = pl.program_id(2)

    if has_in_ln:
        # LayerNorm prologue: computed once per row tile (at j == 0), cached in VMEM
        # as bf16 and reused for every output-column tile.  The j grid axis is marked
        # "arbitrary" so this guard is megacore-safe.  (in_ln implies tk == K, nk == 1.)
        @pl.when(j == 0)
        def _compute_ln():
            xf = x_ref[...].astype(jnp.float32)
            xn = _layernorm(xf, lg_ref[...], lb_ref[...], eps_in)
            xn_ref[...] = xn.astype(jnp.bfloat16)

        xb = xn_ref[...]
    else:
        xb = x_ref[...]
        if xb.dtype != jnp.bfloat16:
            xb = xb.astype(jnp.bfloat16)

    part = jnp.dot(xb, w_ref[...], preferred_element_type=jnp.float32)

    def _epilogue(out):
        if has_bias:
            out = out + bias_ref[...]
        if activation == "gelu":
            out = _gelu(out)
        if has_res:
            out = out + res_ref[...].astype(jnp.float32)
        if has_out_ln:
            out = _layernorm(out, og_ref[...], ob_ref[...], eps_out)
        return out.astype(o_ref.dtype)

    if nk == 1:
        # single K tile: no accumulator scratch round trip, write straight out
        o_ref[...] = _epilogue(part)
    else:
        @pl.when(k == 0)
        def _init():
            acc_ref[...] = jnp.zeros_like(acc_ref)

        acc_ref[...] += part

        @pl.when(k == nk - 1)
        def _finalize():
            o_ref[...] = _epilogue(acc_ref[...])


def fused_linear(x, w, b=None, *, activation=None, in_ln=None, out_ln=None,
                 residual=None, res_rows=None, out_dtype=jnp.bfloat16,
                 tm=None, tm_pref=256, tn_pref=512, tk_pref=1024):
    """y = [out_ln]( [residual +] [gelu]( [in_ln](x) @ w + b ) ), tiled on the MXU.

    `w` is expected pre-transposed to (K, N) bf16.  Intermediate activations are
    emitted bf16 (out_dtype); all LN / bias / GELU / residual math is f32 in-kernel.
    `res_rows=R` makes the residual a (R, N) array broadcast over row blocks
    (requires tm | R; used to fuse the positional embedding over the batch)."""
    M, K = x.shape
    K2, N = w.shape
    assert K == K2

    if tm is None:
        tm = _pick_tile(M, tm_pref, (8,))
    assert M % tm == 0
    tn = N if out_ln is not None else _pick_tile(N, tn_pref, (256, 128))
    tk = K if in_ln is not None else _pick_tile(K, tk_pref, (256, 128))
    nk = K // tk
    grid = (M // tm, N // tn, nk)

    in_specs = [pl.BlockSpec((tm, tk), lambda i, j, k: (i, k)),
                pl.BlockSpec((tk, tn), lambda i, j, k: (k, j))]
    inputs = [x, w]

    has_in_ln = in_ln is not None
    eps_in = None
    if has_in_ln:
        assert nk == 1
        g, beta, eps_in = in_ln
        in_specs += [pl.BlockSpec((1, tk), lambda i, j, k: (0, k))] * 2
        inputs += [g.reshape(1, K).astype(jnp.float32),
                   beta.reshape(1, K).astype(jnp.float32)]

    has_bias = b is not None
    if has_bias:
        in_specs.append(pl.BlockSpec((1, tn), lambda i, j, k: (0, j)))
        inputs.append(b.reshape(1, N).astype(jnp.float32))

    has_res = residual is not None
    if has_res:
        if res_rows is None:
            in_specs.append(pl.BlockSpec((tm, tn), lambda i, j, k: (i, j)))
        else:
            # broadcast residual (e.g. pos embedding) over batch: requires tm | res_rows
            assert res_rows % tm == 0 and M % res_rows == 0
            nres = res_rows // tm
            if nres == 1:
                in_specs.append(pl.BlockSpec((tm, tn), lambda i, j, k: (0, j)))
            else:
                in_specs.append(pl.BlockSpec(
                    (tm, tn), lambda i, j, k, nres=nres: (i % nres, j)))
        inputs.append(residual)

    has_out_ln = out_ln is not None
    eps_out = None
    if has_out_ln:
        og, ob, eps_out = out_ln
        in_specs += [pl.BlockSpec((1, tn), lambda i, j, k: (0, j))] * 2
        inputs += [og.reshape(1, N).astype(jnp.float32),
                   ob.reshape(1, N).astype(jnp.float32)]

    scratch_shapes = []
    if nk > 1:
        scratch_shapes.append(pltpu.VMEM((tm, tn), jnp.float32))
    if has_in_ln:
        scratch_shapes.append(pltpu.VMEM((tm, tk), jnp.bfloat16))

    kernel = functools.partial(
        _fused_linear_kernel, nk=nk, has_in_ln=has_in_ln, has_bias=has_bias,
        has_res=has_res, has_out_ln=has_out_ln, activation=activation,
        eps_in=eps_in, eps_out=eps_out)

    return pl.pallas_call(
        kernel,
        out_shape=jax.ShapeDtypeStruct((M, N), out_dtype),
        grid=grid,
        in_specs=in_specs,
        out_specs=pl.BlockSpec((tm, tn), lambda i, j, k: (i, j)),
        scratch_shapes=scratch_shapes,
        compiler_params=pltpu.CompilerParams(
            dimension_semantics=("parallel",
                                 "arbitrary" if has_in_ln else "parallel",
                                 "arbitrary"),
            vmem_limit_bytes=_VMEM_LIMIT_BYTES),
    )(*inputs)


# ----------------------------------------------------------------------------- attention
def _flash_attn_kernel(q_ref, k_ref, v_ref, o_ref, m_sc, l_sc, acc_sc, *,
                       num_heads, head_dim, nkv):
    ki = pl.program_id(2)

    @pl.when(ki == 0)
    def _init():
        m_sc[...] = jnp.full_like(m_sc, -jnp.inf)
        l_sc[...] = jnp.zeros_like(l_sc)
        acc_sc[...] = jnp.zeros_like(acc_sc)

    q_all = q_ref[0]   # (tq,  emb) bf16; attention scale pre-folded into qkv_w
    k_all = k_ref[0]   # (tkv, emb) bf16
    v_all = v_ref[0]   # (tkv, emb) bf16

    for h in range(num_heads):
        lo = h * head_dim
        q_h = q_all[:, lo:lo + head_dim]
        k_h = k_all[:, lo:lo + head_dim]
        v_h = v_all[:, lo:lo + head_dim]

        s = lax.dot_general(q_h, k_h, (((1,), (1,)), ((), ())),
                            preferred_element_type=jnp.float32)      # (tq, tkv)
        m_prev = m_sc[h]
        m_new = jnp.maximum(m_prev, jnp.max(s, axis=-1, keepdims=True))
        alpha = jnp.exp(m_prev - m_new)
        p = jnp.exp(s - m_new)
        l_sc[h] = alpha * l_sc[h] + jnp.sum(p, axis=-1, keepdims=True)
        acc_sc[h] = alpha * acc_sc[h] + jnp.dot(p.astype(jnp.bfloat16), v_h,
                                                preferred_element_type=jnp.float32)
        m_sc[h] = m_new

    @pl.when(ki == nkv - 1)
    def _finalize():
        # TODO(synk): nn.Dropout(0.1) on the attention weights is inference-mode identity.
        outs = [acc_sc[h] * pl.reciprocal(l_sc[h], approx=True)
                for h in range(num_heads)]
        o_ref[0] = jnp.concatenate(outs, axis=-1).astype(o_ref.dtype)


def flash_attention(qkv, *, num_heads, head_dim, tq_pref=128, tkv_pref=256):
    """qkv: (B, T, 3*emb) bf16 with columns [q | k | v] (head-major).
    Returns (B, T, emb) bf16.  q/k/v tiles are lane-aligned column blocks of the qkv
    slab, so no 3x-oversized DMAs and no XLA transposes."""
    B, T, three_e = qkv.shape
    emb = three_e // 3
    # TODO(synk): non-128-multiple emb would need a (B, T, 3, emb) layout instead.
    assert emb % 128 == 0, "emb must be a multiple of 128 for lane-aligned q/k/v blocks"
    tq = _pick_tile(T, tq_pref, (8,))
    tkv = _pick_tile(T, tkv_pref, (8,))
    nq, nkv = T // tq, T // tkv

    kernel = functools.partial(_flash_attn_kernel, num_heads=num_heads,
                               head_dim=head_dim, nkv=nkv)

    return pl.pallas_call(
        kernel,
        out_shape=jax.ShapeDtypeStruct((B, T, emb), jnp.bfloat16),
        grid=(B, nq, nkv),
        in_specs=[pl.BlockSpec((1, tq, emb), lambda b, qi, ki: (b, qi, 0)),
                  pl.BlockSpec((1, tkv, emb), lambda b, qi, ki: (b, ki, 1)),
                  pl.BlockSpec((1, tkv, emb), lambda b, qi, ki: (b, ki, 2))],
        out_specs=pl.BlockSpec((1, tq, emb), lambda b, qi, ki: (b, qi, 0)),
        scratch_shapes=[pltpu.VMEM((num_heads, tq, 1), jnp.float32),
                        pltpu.VMEM((num_heads, tq, 1), jnp.float32),
                        pltpu.VMEM((num_heads, tq, head_dim), jnp.float32)],
        compiler_params=pltpu.CompilerParams(
            dimension_semantics=("parallel", "parallel", "arbitrary"),
            vmem_limit_bytes=_VMEM_LIMIT_BYTES),
    )(qkv, qkv, qkv)


# ----------------------------------------------------------------------------- neck 3x3 conv + LN2d
def _neck_conv_ln_kernel(x_ref, w_ref, g_ref, b_ref, o_ref, *, th, wp, eps):
    r0 = pl.program_id(1) * th
    cin = w_ref.shape[2]
    cout = w_ref.shape[3]
    acc = jnp.zeros((th * wp, cout), jnp.float32)
    for kh in range(3):
        rows = x_ref[0, pl.ds(r0 + kh, th)]                 # (th, wp+2, cin) halo rows
        for kw in range(3):
            tap = rows[:, kw:kw + wp, :].reshape(th * wp, cin)
            acc = acc + jnp.dot(tap, w_ref[kh, kw],
                                preferred_element_type=jnp.float32)
    out = _layernorm(acc, g_ref[...], b_ref[...], eps)
    o_ref[0] = out.reshape(th, wp, cout).astype(o_ref.dtype)


def neck_conv3x3_ln(y_padded, w_kkio, g, b, *, hp, wp, eps, th_pref=8):
    """3x3 conv (input already padded, no bias) fused with channel LayerNorm.
    The whole padded feature map stays resident in VMEM per batch element (halo rows
    DMA'd once), and `th` output rows are produced per grid step."""
    B, hpad, wpad, cin = y_padded.shape
    cout = w_kkio.shape[3]
    th = _largest_divisor(hp, th_pref)

    return pl.pallas_call(
        functools.partial(_neck_conv_ln_kernel, th=th, wp=wp, eps=eps),
        out_shape=jax.ShapeDtypeStruct((B, hp, wp, cout), jnp.float32),
        grid=(B, hp // th),
        in_specs=[pl.BlockSpec((1, hpad, wpad, cin), lambda bb, h: (bb, 0, 0, 0)),
                  pl.BlockSpec((3, 3, cin, cout), lambda bb, h: (0, 0, 0, 0)),
                  pl.BlockSpec((1, cout), lambda bb, h: (0, 0)),
                  pl.BlockSpec((1, cout), lambda bb, h: (0, 0))],
        out_specs=pl.BlockSpec((1, th, wp, cout), lambda bb, h: (bb, h, 0, 0)),
        compiler_params=pltpu.CompilerParams(
            dimension_semantics=("parallel", "parallel"),
            vmem_limit_bytes=_VMEM_LIMIT_BYTES),
    )(y_padded, w_kkio,
      g.reshape(1, cout).astype(jnp.float32), b.reshape(1, cout).astype(jnp.float32))


# ----------------------------------------------------------------------------- forward
def image_encoder_forward(x_nchw, params, *, patch_size, num_heads):
    B, C, H, W = x_nchw.shape
    p = patch_size
    Hp, Wp = H // p, W // p
    T = Hp * Wp
    emb = params["patch_w"].shape[1]
    hd = emb // num_heads

    # --- PatchEmbedding: Conv2d(kernel=stride=patch) == patchify + matmul; the
    #     absolute positional embedding is fused into the matmul epilogue as a
    #     batch-broadcast residual.
    patches = (x_nchw.reshape(B, C, Hp, p, Wp, p)
               .transpose(0, 2, 4, 1, 3, 5)
               .reshape(B * T, C * p * p)
               .astype(jnp.bfloat16))
    tm_patch = _pick_tile(T, 256, (8,))                     # tm | T so pos broadcast is exact
    x = fused_linear(patches, params["patch_w"], params["patch_b"],
                     residual=params["pos"], res_rows=T, tm=tm_patch)   # (B*T, emb) bf16

    # --- Transformer blocks (as in the PyTorch source: no residual after the MLP)
    for blk in params["blocks"]:
        skip = x
        # LN1 fused into the QKV matmul prologue (qkv_bias=False -> no bias path)
        qkv = fused_linear(x, blk["qkv_w"], None,
                           in_ln=(blk["ln1_g"], blk["ln1_b"], 1e-5))    # (B*T, 3*emb) bf16
        attn = flash_attention(qkv.reshape(B, T, 3 * emb),
                               num_heads=num_heads, head_dim=hd)
        # residual add fused into the projection epilogue
        x = fused_linear(attn.reshape(B * T, emb), blk["proj_w"], blk["proj_b"],
                         residual=skip)
        # LN2 fused into the MLP up-projection prologue; GELU fused into its epilogue
        h = fused_linear(x, blk["mlp_w1"], blk["mlp_b1"], activation="gelu",
                         in_ln=(blk["ln2_g"], blk["ln2_b"], 1e-5))
        x = fused_linear(h, blk["mlp_w2"], blk["mlp_b2"])

    # --- neck: 1x1 conv + LayerNorm2d (fused) -> 3x3 conv (pad=1, no bias) + LayerNorm2d
    # TODO(synk): LayerNorm2d is not defined in the source; assumed SAM-style channel-wise
    # LayerNorm with eps=1e-6 and per-channel affine.
    out_ch = params["n1_w"].shape[1]
    y = fused_linear(x, params["n1_w"], params["n1_b"],
                     out_ln=(params["nk_ln1_g"], params["nk_ln1_b"], 1e-6))
    y = y.reshape(B, Hp, Wp, out_ch)
    yp = jnp.pad(y, ((0, 0), (1, 1), (1, 1), (0, 0)))
    y = neck_conv3x3_ln(yp, params["n2_w"], params["nk_ln2_g"], params["nk_ln2_b"],
                        hp=Hp, wp=Wp, eps=1e-6)                          # (B,Hp,Wp,out_ch) f32

    # back to NCHW, f32 — matching the PyTorch module output
    return y.transpose(0, 3, 1, 2)


# ----------------------------------------------------------------------------- params
def init_params(key, *, in_channels, patch_size, emb_size, img_size, num_layers,
                num_heads, mlp_ratio, out_chans):
    """Parameters are stored pre-laid-out for the kernels (done ONCE, outside jit):
       * matmul weights are (in, out) bf16 (PyTorch Linear weights transposed, conv
         weights reshaped), the neck 3x3 weight is (kh, kw, Cin, Cout) bf16;
       * the attention scale head_dim**-0.5 is folded (in f32) into the q columns of
         qkv_w before the bf16 cast;
       * LN params, biases and the positional embedding stay f32."""
    keys = jax.random.split(key, 8 + 8 * num_layers)
    ki = iter(keys)

    def nrm(shape, s=0.02):
        return jax.random.normal(next(ki), shape, jnp.float32) * s

    Hp = Wp = img_size // patch_size
    hidden = int(emb_size * mlp_ratio)
    scale = (emb_size // num_heads) ** -0.5

    patch_w = nrm((emb_size, in_channels, patch_size, patch_size))       # conv OIHW
    n1_w = nrm((out_chans, emb_size, 1, 1))                              # 1x1 conv OIHW
    n2_w = nrm((out_chans, out_chans, 3, 3))                             # 3x3 conv OIHW

    params = {
        "patch_w": patch_w.reshape(emb_size, -1).T.astype(jnp.bfloat16),   # (C*p*p, emb)
        "patch_b": nrm((emb_size,)),
        "pos": nrm((Hp * Wp, emb_size)),                                    # (T, emb) f32
        "n1_w": n1_w.reshape(out_chans, emb_size).T.astype(jnp.bfloat16),   # (emb, out)
        "n1_b": jnp.zeros((out_chans,), jnp.float32),
        "nk_ln1_g": jnp.ones((out_chans,), jnp.float32),
        "nk_ln1_b": jnp.zeros((out_chans,), jnp.float32),
        "n2_w": jnp.transpose(n2_w, (2, 3, 1, 0)).astype(jnp.bfloat16),     # (3,3,Cin,Cout)
        "nk_ln2_g": jnp.ones((out_chans,), jnp.float32),
        "nk_ln2_b": jnp.zeros((out_chans,), jnp.float32),
        "blocks": [],
    }
    for _ in range(num_layers):
        qkv_w = nrm((emb_size, 3 * emb_size))              # (in, out); qkv_bias=False
        qkv_w = qkv_w.at[:, :emb_size].multiply(scale)     # fold attention scale into q cols
        params["blocks"].append({
            "ln1_g": jnp.ones((emb_size,), jnp.float32),
            "ln1_b": jnp.zeros((emb_size,), jnp.float32),
            "qkv_w": qkv_w.astype(jnp.bfloat16),
            "proj_w": nrm((emb_size, emb_size)).astype(jnp.bfloat16),
            "proj_b": jnp.zeros((emb_size,), jnp.float32),
            "ln2_g": jnp.ones((emb_size,), jnp.float32),
            "ln2_b": jnp.zeros((emb_size,), jnp.float32),
            "mlp_w1": nrm((emb_size, hidden)).astype(jnp.bfloat16),
            "mlp_b1": jnp.zeros((hidden,), jnp.float32),
            "mlp_w2": nrm((hidden, emb_size)).astype(jnp.bfloat16),
            "mlp_b2": jnp.zeros((emb_size,), jnp.float32),
        })
    return params


# ----------------------------------------------------------------------------- main
if __name__ == "__main__":
    B, C, IMG, PATCH = 2, 3, 32, 8
    EMB, N_LAYERS, N_HEADS, MLP_RATIO, OUT_CH = 128, 2, 4, 4.0, 32

    key = jax.random.PRNGKey(0)
    pkey, xkey = jax.random.split(key)
    params = init_params(pkey, in_channels=C, patch_size=PATCH, emb_size=EMB,
                         img_size=IMG, num_layers=N_LAYERS, num_heads=N_HEADS,
                         mlp_ratio=MLP_RATIO, out_chans=OUT_CH)
    x = jax.random.normal(xkey, (B, C, IMG, IMG), jnp.float32)

    fwd = jax.jit(functools.partial(image_encoder_forward,
                                    patch_size=PATCH, num_heads=N_HEADS))
    out = jax.block_until_ready(fwd(x, params))
    assert out.shape == (B, OUT_CH, IMG // PATCH, IMG // PATCH), out.shape
    assert out.dtype == jnp.float32
    print("KERNEL_OK")
</pallas_src>

<mosaic_0001>
module attributes {stable_mosaic.version = 11 : i64} {
  func.func @_fused_linear_kernel(%arg0: i32, %arg1: i32, %arg2: i32, %arg3: memref<32x128xbf16, #tpu.memory_space<vmem>>, %arg4: memref<128x384xbf16, #tpu.memory_space<vmem>>, %arg5: memref<1x128xf32, #tpu.memory_space<vmem>>, %arg6: memref<1x128xf32, #tpu.memory_space<vmem>>, %arg7: memref<32x384xbf16, #tpu.memory_space<vmem>>, %arg8: memref<32x128xbf16, #tpu.memory_space<vmem>>) attributes {dimension_semantics = [#tpu.dimension_semantics<parallel>, #tpu.dimension_semantics<arbitrary>, #tpu.dimension_semantics<arbitrary>], iteration_bounds = array<i64: 1, 1, 1>, scalar_prefetch = 0 : i64, scratch_operands = 1 : i64, tpu.core_type = #tpu.core_type<tc>, window_params = [{transform_indices = @transform_0, window_bounds = array<i64: 32, 128>}, {transform_indices = @transform_1, window_bounds = array<i64: 128, 384>}, {transform_indices = @transform_2, window_bounds = array<i64: 1, 128>}, {transform_indices = @transform_3, window_bounds = array<i64: 1, 128>}, {transform_indices = @transform_4, window_bounds = array<i64: 32, 384>}]} {
    %c0_i32 = arith.constant 0 : i32
    %0 = arith.cmpi eq, %arg1, %c0_i32 : i32
    %1 = arith.extui %0 : i1 to i32
    %c0_i32_0 = arith.constant 0 : i32
    %2 = arith.cmpi ne, %1, %c0_i32_0 : i32
    scf.if %2 {
      %c0_6 = arith.constant 0 : index
      %c0_7 = arith.constant 0 : index
      %8 = vector.load %arg3[%c0_6, %c0_7] : memref<32x128xbf16, #tpu.memory_space<vmem>>, vector<32x128xbf16>
      %9 = arith.extf %8 : vector<32x128xbf16> to vector<32x128xf32>
      %c0_8 = arith.constant 0 : index
      %c0_9 = arith.constant 0 : index
      %10 = vector.load %arg5[%c0_8, %c0_9] : memref<1x128xf32, #tpu.memory_space<vmem>>, vector<1x128xf32>
      %c0_10 = arith.constant 0 : index
      %c0_11 = arith.constant 0 : index
      %11 = vector.load %arg6[%c0_10, %c0_11] : memref<1x128xf32, #tpu.memory_space<vmem>>, vector<1x128xf32>
      %cst_12 = arith.constant dense<0.000000e+00> : vector<32xf32>
      %12 = vector.multi_reduction <add>, %9, %cst_12 [1] : vector<32x128xf32> to vector<32xf32>
      %13 = vector.shape_cast %12 : vector<32xf32> to vector<32x1xf32>
      %cst_13 = arith.constant 1.280000e+02 : f32
      %14 = vector.broadcast %cst_13 : f32 to vector<32x1xf32>
      %15 = arith.divf %13, %14 : vector<32x1xf32>
      %16 = vector.broadcast %15 : vector<32x1xf32> to vector<32x128xf32>
      %17 = arith.subf %9, %16 : vector<32x128xf32>
      %18 = arith.mulf %17, %17 : vector<32x128xf32>
      %cst_14 = arith.constant dense<0.000000e+00> : vector<32xf32>
      %19 = vector.multi_reduction <add>, %18, %cst_14 [1] : vector<32x128xf32> to vector<32xf32>
      %20 = vector.shape_cast %19 : vector<32xf32> to vector<32x1xf32>
      %cst_15 = arith.constant 1.280000e+02 : f32
      %21 = vector.broadcast %cst_15 : f32 to vector<32x1xf32>
      %22 = arith.divf %20, %21 : vector<32x1xf32>
      %cst_16 = arith.constant 9.99999974E-6 : f32
      %23 = vector.broadcast %cst_16 : f32 to vector<32x1xf32>
      %24 = arith.addf %22, %23 : vector<32x1xf32>
      %25 = math.rsqrt %24 : vector<32x1xf32>
      %26 = vector.broadcast %25 : vector<32x1xf32> to vector<32x128xf32>
      %27 = arith.mulf %17, %26 : vector<32x128xf32>
      %28 = vector.broadcast %10 : vector<1x128xf32> to vector<32x128xf32>
      %29 = arith.mulf %27, %28 : vector<32x128xf32>
      %30 = vector.broadcast %11 : vector<1x128xf32> to vector<32x128xf32>
      %31 = arith.addf %29, %30 : vector<32x128xf32>
      %32 = arith.truncf %31 : vector<32x128xf32> to vector<32x128xbf16>
      %c0_17 = arith.constant 0 : index
      %c0_18 = arith.constant 0 : index
      %33 = vector.load %arg8[%c0_17, %c0_18] : memref<32x128xbf16, #tpu.memory_space<vmem>>, vector<32x128xbf16>
      tpu.vector_store %arg8[%c0_17, %c0_18], %32 {strides = array<i32>} : memref<32x128xbf16, #tpu.memory_space<vmem>>, vector<32x128xbf16>,
    } else {
    }
    %c0 = arith.constant 0 : index
    %c0_1 = arith.constant 0 : index
    %3 = vector.load %arg8[%c0, %c0_1] : memref<32x128xbf16, #tpu.memory_space<vmem>>, vector<32x128xbf16>
    %c0_2 = arith.constant 0 : index
    %c0_3 = arith.constant 0 : index
    %4 = vector.load %arg4[%c0_2, %c0_3] : memref<128x384xbf16, #tpu.memory_space<vmem>>, vector<128x384xbf16>
    %cst = arith.constant dense<0.000000e+00> : vector<32x384xf32>
    %5 = tpu.matmul %3, %4, %cst {dimension_numbers = #tpu.dot_dimension_numbers<[1], [0], [0], [1], [0, 0, 1, 1], [], []>} : vector<32x128xbf16>, vector<128x384xbf16>, vector<32x384xf32> -> vector<32x384xf32>
    %6 = arith.truncf %5 : vector<32x384xf32> to vector<32x384xbf16>
    %c0_4 = arith.constant 0 : index
    %c0_5 = arith.constant 0 : index
    %7 = vector.load %arg7[%c0_4, %c0_5] : memref<32x384xbf16, #tpu.memory_space<vmem>>, vector<32x384xbf16>
    tpu.vector_store %arg7[%c0_4, %c0_5], %6 {strides = array<i32>} : memref<32x384xbf16, #tpu.memory_space<vmem>>, vector<32x384xbf16>,
    return
  }
  func.func @transform_0(%arg0: i32, %arg1: i32, %arg2: i32) -> (i32, i32) {
    %c0_i32 = arith.constant 0 : i32
    return %arg0, %arg2 : i32, i32
  }
  func.func @transform_1(%arg0: i32, %arg1: i32, %arg2: i32) -> (i32, i32) {
    %c0_i32 = arith.constant 0 : i32
    return %arg2, %arg1 : i32, i32
  }
  func.func @transform_2(%arg0: i32, %arg1: i32, %arg2: i32) -> (i32, i32) {
    %c0_i32 = arith.constant 0 : i32
    %c0_i32_0 = arith.constant 0 : i32
    return %c0_i32, %arg2 : i32, i32
  }
  func.func @transform_3(%arg0: i32, %arg1: i32, %arg2: i32) -> (i32, i32) {
    %c0_i32 = arith.constant 0 : i32
    %c0_i32_0 = arith.constant 0 : i32
    return %c0_i32, %arg2 : i32, i32
  }
  func.func @transform_4(%arg0: i32, %arg1: i32, %arg2: i32) -> (i32, i32) {
    %c0_i32 = arith.constant 0 : i32
    return %arg0, %arg1 : i32, i32
  }
}

module attributes {stable_mosaic.version = 11 : i64} {
  func.func @_fused_linear_kernel(%arg0: i32, %arg1: i32, %arg2: i32, %arg3: memref<16x192xbf16, #tpu.memory_space<vmem>>, %arg4: memref<192x128xbf16, #tpu.memory_space<vmem>>, %arg5: memref<1x128xf32, #tpu.memory_space<vmem>>, %arg6: memref<16x128xf32, #tpu.memory_space<vmem>>, %arg7: memref<16x128xbf16, #tpu.memory_space<vmem>>) attributes {dimension_semantics = [#tpu.dimension_semantics<parallel>, #tpu.dimension_semantics<parallel>, #tpu.dimension_semantics<arbitrary>], iteration_bounds = array<i64: 2, 1, 1>, scalar_prefetch = 0 : i64, scratch_operands = 0 : i64, tpu.core_type = #tpu.core_type<tc>, window_params = [{transform_indices = @transform_0, window_bounds = array<i64: 16, 192>}, {transform_indices = @transform_1, window_bounds = array<i64: 192, 128>}, {transform_indices = @transform_2, window_bounds = array<i64: 1, 128>}, {transform_indices = @transform_3, window_bounds = array<i64: 16, 128>}, {transform_indices = @transform_4, window_bounds = array<i64: 16, 128>}]} {
    %c0 = arith.constant 0 : index
    %c0_0 = arith.constant 0 : index
    %0 = vector.load %arg3[%c0, %c0_0] : memref<16x192xbf16, #tpu.memory_space<vmem>>, vector<16x192xbf16>
    %c0_1 = arith.constant 0 : index
    %c0_2 = arith.constant 0 : index
    %1 = vector.load %arg4[%c0_1, %c0_2] : memref<192x128xbf16, #tpu.memory_space<vmem>>, vector<192x128xbf16>
    %cst = arith.constant dense<0.000000e+00> : vector<16x128xf32>
    %2 = tpu.matmul %0, %1, %cst {dimension_numbers = #tpu.dot_dimension_numbers<[1], [0], [0], [1], [0, 0, 1, 1], [], []>} : vector<16x192xbf16>, vector<192x128xbf16>, vector<16x128xf32> -> vector<16x128xf32>
    %c0_3 = arith.constant 0 : index
    %c0_4 = arith.constant 0 : index
    %3 = vector.load %arg5[%c0_3, %c0_4] : memref<1x128xf32, #tpu.memory_space<vmem>>, vector<1x128xf32>
    %4 = vector.broadcast %3 : vector<1x128xf32> to vector<16x128xf32>
    %5 = arith.addf %2, %4 : vector<16x128xf32>
    %c0_5 = arith.constant 0 : index
    %c0_6 = arith.constant 0 : index
    %6 = vector.load %arg6[%c0_5, %c0_6] : memref<16x128xf32, #tpu.memory_space<vmem>>, vector<16x128xf32>
    %7 = arith.addf %5, %6 : vector<16x128xf32>
    %8 = arith.truncf %7 : vector<16x128xf32> to vector<16x128xbf16>
    %c0_7 = arith.constant 0 : index
    %c0_8 = arith.constant 0 : index
    %9 = vector.load %arg7[%c0_7, %c0_8] : memref<16x128xbf16, #tpu.memory_space<vmem>>, vector<16x128xbf16>
    tpu.vector_store %arg7[%c0_7, %c0_8], %8 {strides = array<i32>} : memref<16x128xbf16, #tpu.memory_space<vmem>>, vector<16x128xbf16>,
    return
  }
  func.func @transform_0(%arg0: i32, %arg1: i32, %arg2: i32) -> (i32, i32) {
    %c0_i32 = arith.constant 0 : i32
    return %arg0, %arg2 : i32, i32
  }
  func.func @transform_1(%arg0: i32, %arg1: i32, %arg2: i32) -> (i32, i32) {
    %c0_i32 = arith.constant 0 : i32
    return %arg2, %arg1 : i32, i32
  }
  func.func @transform_2(%arg0: i32, %arg1: i32, %arg2: i32) -> (i32, i32) {
    %c0_i32 = arith.constant 0 : i32
    %c0_i32_0 = arith.constant 0 : i32
    return %c0_i32, %arg1 : i32, i32
  }
  func.func @transform_3(%arg0: i32, %arg1: i32, %arg2: i32) -> (i32, i32) {
    %c0_i32 = arith.constant 0 : i32
    %c0_i32_0 = arith.constant 0 : i32
    return %c0_i32, %arg1 : i32, i32
  }
  func.func @transform_4(%arg0: i32, %arg1: i32, %arg2: i32) -> (i32, i32) {
    %c0_i32 = arith.constant 0 : i32
    return %arg0, %arg1 : i32, i32
  }
}

module attributes {stable_mosaic.version = 11 : i64} {
  func.func @_flash_attn_kernel(%arg0: i32, %arg1: i32, %arg2: i32, %arg3: memref<1x16x128xbf16, #tpu.memory_space<vmem>>, %arg4: memref<1x16x128xbf16, #tpu.memory_space<vmem>>, %arg5: memref<1x16x128xbf16, #tpu.memory_space<vmem>>, %arg6: memref<1x16x128xbf16, #tpu.memory_space<vmem>>, %arg7: memref<4x16x1xf32, #tpu.memory_space<vmem>>, %arg8: memref<4x16x1xf32, #tpu.memory_space<vmem>>, %arg9: memref<4x16x32xf32, #tpu.memory_space<vmem>>) attributes {dimension_semantics = [#tpu.dimension_semantics<parallel>, #tpu.dimension_semantics<parallel>, #tpu.dimension_semantics<arbitrary>], iteration_bounds = array<i64: 2, 1, 1>, scalar_prefetch = 0 : i64, scratch_operands = 3 : i64, tpu.core_type = #tpu.core_type<tc>, window_params = [{transform_indices = @transform_0, window_bounds = array<i64: 1, 16, 128>}, {transform_indices = @transform_1, window_bounds = array<i64: 1, 16, 128>}, {transform_indices = @transform_2, window_bounds = array<i64: 1, 16, 128>}, {transform_indices = @transform_3, window_bounds = array<i64: 1, 16, 128>}]} {
    %c0_i32 = arith.constant 0 : i32
    %0 = arith.cmpi eq, %arg2, %c0_i32 : i32
    %1 = arith.extui %0 : i1 to i32
    %c0_i32_0 = arith.constant 0 : i32
    %2 = arith.cmpi ne, %1, %c0_i32_0 : i32
    scf.if %2 {
      %cst_95 = arith.constant 0xFF800000 : f32
      %156 = vector.broadcast %cst_95 : f32 to vector<4x16x1xf32>
      %c0_96 = arith.constant 0 : index
      %c0_97 = arith.constant 0 : index
      %c0_98 = arith.constant 0 : index
      %157 = vector.load %arg7[%c0_96, %c0_97, %c0_98] : memref<4x16x1xf32, #tpu.memory_space<vmem>>, vector<4x16x1xf32>
      tpu.vector_store %arg7[%c0_96, %c0_97, %c0_98], %156 {strides = array<i32>} : memref<4x16x1xf32, #tpu.memory_space<vmem>>, vector<4x16x1xf32>,
      %cst_99 = arith.constant 0.000000e+00 : f32
      %158 = vector.broadcast %cst_99 : f32 to vector<4x16x1xf32>
      %c0_100 = arith.constant 0 : index
      %c0_101 = arith.constant 0 : index
      %c0_102 = arith.constant 0 : index
      %159 = vector.load %arg8[%c0_100, %c0_101, %c0_102] : memref<4x16x1xf32, #tpu.memory_space<vmem>>, vector<4x16x1xf32>
      tpu.vector_store %arg8[%c0_100, %c0_101, %c0_102], %158 {strides = array<i32>} : memref<4x16x1xf32, #tpu.memory_space<vmem>>, vector<4x16x1xf32>,
      %cst_103 = arith.constant 0.000000e+00 : f32
      %160 = vector.broadcast %cst_103 : f32 to vector<4x16x32xf32>
      %c0_104 = arith.constant 0 : index
      %c0_105 = arith.constant 0 : index
      %c0_106 = arith.constant 0 : index
      %161 = vector.load %arg9[%c0_104, %c0_105, %c0_106] : memref<4x16x32xf32, #tpu.memory_space<vmem>>, vector<4x16x32xf32>
      tpu.vector_store %arg9[%c0_104, %c0_105, %c0_106], %160 {strides = array<i32>} : memref<4x16x32xf32, #tpu.memory_space<vmem>>, vector<4x16x32xf32>,
    } else {
    }
    %c0 = arith.constant 0 : index
    %c0_1 = arith.constant 0 : index
    %c0_2 = arith.constant 0 : index
    %3 = vector.load %arg3[%c0, %c0_1, %c0_2] : memref<1x16x128xbf16, #tpu.memory_space<vmem>>, vector<1x16x128xbf16>
    %4 = vector.shape_cast %3 : vector<1x16x128xbf16> to vector<16x128xbf16>
    %c0_3 = arith.constant 0 : index
    %c0_4 = arith.constant 0 : index
    %c0_5 = arith.constant 0 : index
    %5 = vector.load %arg4[%c0_3, %c0_4, %c0_5] : memref<1x16x128xbf16, #tpu.memory_space<vmem>>, vector<1x16x128xbf16>
    %6 = vector.shape_cast %5 : vector<1x16x128xbf16> to vector<16x128xbf16>
    %c0_6 = arith.constant 0 : index
    %c0_7 = arith.constant 0 : index
    %c0_8 = arith.constant 0 : index
    %7 = vector.load %arg5[%c0_6, %c0_7, %c0_8] : memref<1x16x128xbf16, #tpu.memory_space<vmem>>, vector<1x16x128xbf16>
    %8 = vector.shape_cast %7 : vector<1x16x128xbf16> to vector<16x128xbf16>
    %9 = vector.extract_strided_slice %4 {offsets = [0, 0], sizes = [16, 32], strides = [1, 1]} : vector<16x128xbf16> to vector<16x32xbf16>
    %10 = vector.extract_strided_slice %6 {offsets = [0, 0], sizes = [16, 32], strides = [1, 1]} : vector<16x128xbf16> to vector<16x32xbf16>
    %11 = vector.extract_strided_slice %8 {offsets = [0, 0], sizes = [16, 32], strides = [1, 1]} : vector<16x128xbf16> to vector<16x32xbf16>
    %cst = arith.constant dense<0.000000e+00> : vector<16x16xf32>
    %12 = tpu.matmul %9, %10, %cst {dimension_numbers = #tpu.dot_dimension_numbers<[1], [1], [0], [0], [0, 0, 1, 0], [], []>} : vector<16x32xbf16>, vector<16x32xbf16>, vector<16x16xf32> -> vector<16x16xf32>
    %c0_9 = arith.constant 0 : index
    %c0_10 = arith.constant 0 : index
    %c0_11 = arith.constant 0 : index
    %13 = vector.load %arg7[%c0_9, %c0_10, %c0_11] : memref<4x16x1xf32, #tpu.memory_space<vmem>>, vector<1x16x1xf32>
    %14 = vector.shape_cast %13 : vector<1x16x1xf32> to vector<16x1xf32>
    %cst_12 = arith.constant dense<0xFF800000> : vector<16xf32>
    %15 = vector.multi_reduction <maximumf>, %12, %cst_12 [1] : vector<16x16xf32> to vector<16xf32>
    %16 = vector.shape_cast %15 : vector<16xf32> to vector<16x1xf32>
    %17 = arith.maximumf %14, %16 : vector<16x1xf32>
    %18 = arith.subf %14, %17 : vector<16x1xf32>
    %19 = math.exp %18 : vector<16x1xf32>
    %20 = vector.broadcast %17 : vector<16x1xf32> to vector<16x16xf32>
    %21 = arith.subf %12, %20 : vector<16x16xf32>
    %22 = math.exp %21 : vector<16x16xf32>
    %c0_13 = arith.constant 0 : index
    %c0_14 = arith.constant 0 : index
    %c0_15 = arith.constant 0 : index
    %23 = vector.load %arg8[%c0_13, %c0_14, %c0_15] : memref<4x16x1xf32, #tpu.memory_space<vmem>>, vector<1x16x1xf32>
    %24 = vector.shape_cast %23 : vector<1x16x1xf32> to vector<16x1xf32>
    %25 = arith.mulf %19, %24 : vector<16x1xf32>
    %cst_16 = arith.constant dense<0.000000e+00> : vector<16xf32>
    %26 = vector.multi_reduction <add>, %22, %cst_16 [1] : vector<16x16xf32> to vector<16xf32>
    %27 = vector.shape_cast %26 : vector<16xf32> to vector<16x1xf32>
    %28 = arith.addf %25, %27 : vector<16x1xf32>
    %c0_17 = arith.constant 0 : index
    %c0_18 = arith.constant 0 : index
    %c0_19 = arith.constant 0 : index
    %29 = vector.load %arg8[%c0_17, %c0_18, %c0_19] : memref<4x16x1xf32, #tpu.memory_space<vmem>>, vector<1x16x1xf32>
    %30 = vector.shape_cast %29 : vector<1x16x1xf32> to vector<16x1xf32>
    %31 = vector.shape_cast %28 : vector<16x1xf32> to vector<1x16x1xf32>
    tpu.vector_store %arg8[%c0_17, %c0_18, %c0_19], %31 {strides = array<i32>} : memref<4x16x1xf32, #tpu.memory_space<vmem>>, vector<1x16x1xf32>,
    %c0_20 = arith.constant 0 : index
    %c0_21 = arith.constant 0 : index
    %c0_22 = arith.constant 0 : index
    %32 = vector.load %arg9[%c0_20, %c0_21, %c0_22] : memref<4x16x32xf32, #tpu.memory_space<vmem>>, vector<1x16x32xf32>
    %33 = vector.shape_cast %32 : vector<1x16x32xf32> to vector<16x32xf32>
    %34 = vector.broadcast %19 : vector<16x1xf32> to vector<16x32xf32>
    %35 = arith.mulf %34, %33 : vector<16x32xf32>
    %36 = arith.truncf %22 : vector<16x16xf32> to vector<16x16xbf16>
    %cst_23 = arith.constant dense<0.000000e+00> : vector<16x32xf32>
    %37 = tpu.matmul %36, %11, %cst_23 {dimension_numbers = #tpu.dot_dimension_numbers<[1], [0], [0], [1], [0, 0, 1, 1], [], []>} : vector<16x16xbf16>, vector<16x32xbf16>, vector<16x32xf32> -> vector<16x32xf32>
    %38 = arith.addf %35, %37 : vector<16x32xf32>
    %c0_24 = arith.constant 0 : index
    %c0_25 = arith.constant 0 : index
    %c0_26 = arith.constant 0 : index
    %39 = vector.load %arg9[%c0_24, %c0_25, %c0_26] : memref<4x16x32xf32, #tpu.memory_space<vmem>>, vector<1x16x32xf32>
    %40 = vector.shape_cast %39 : vector<1x16x32xf32> to vector<16x32xf32>
    %41 = vector.shape_cast %38 : vector<16x32xf32> to vector<1x16x32xf32>
    tpu.vector_store %arg9[%c0_24, %c0_25, %c0_26], %41 {strides = array<i32>} : memref<4x16x32xf32, #tpu.memory_space<vmem>>, vector<1x16x32xf32>,
    %c0_27 = arith.constant 0 : index
    %c0_28 = arith.constant 0 : index
    %c0_29 = arith.constant 0 : index
    %42 = vector.load %arg7[%c0_27, %c0_28, %c0_29] : memref<4x16x1xf32, #tpu.memory_space<vmem>>, vector<1x16x1xf32>
    %43 = vector.shape_cast %42 : vector<1x16x1xf32> to vector<16x1xf32>
    %44 = vector.shape_cast %17 : vector<16x1xf32> to vector<1x16x1xf32>
    tpu.vector_store %arg7[%c0_27, %c0_28, %c0_29], %44 {strides = array<i32>} : memref<4x16x1xf32, #tpu.memory_space<vmem>>, vector<1x16x1xf32>,
    %45 = vector.extract_strided_slice %4 {offsets = [0, 32], sizes = [16, 32], strides = [1, 1]} : vector<16x128xbf16> to vector<16x32xbf16>
    %46 = vector.extract_strided_slice %6 {offsets = [0, 32], sizes = [16, 32], strides = [1, 1]} : vector<16x128xbf16> to vector<16x32xbf16>
    %47 = vector.extract_strided_slice %8 {offsets = [0, 32], sizes = [16, 32], strides = [1, 1]} : vector<16x128xbf16> to vector<16x32xbf16>
    %cst_30 = arith.constant dense<0.000000e+00> : vector<16x16xf32>
    %48 = tpu.matmul %45, %46, %cst_30 {dimension_numbers = #tpu.dot_dimension_numbers<[1], [1], [0], [0], [0, 0, 1, 0], [], []>} : vector<16x32xbf16>, vector<16x32xbf16>, vector<16x16xf32> -> vector<16x16xf32>
    %c1 = arith.constant 1 : index
    %c0_31 = arith.constant 0 : index
    %c0_32 = arith.constant 0 : index
    %49 = vector.load %arg7[%c1, %c0_31, %c0_32] : memref<4x16x1xf32, #tpu.memory_space<vmem>>, vector<1x16x1xf32>
    %50 = vector.shape_cast %49 : vector<1x16x1xf32> to vector<16x1xf32>
    %cst_33 = arith.constant dense<0xFF800000> : vector<16xf32>
    %51 = vector.multi_reduction <maximumf>, %48, %cst_33 [1] : vector<16x16xf32> to vector<16xf32>
    %52 = vector.shape_cast %51 : vector<16xf32> to vector<16x1xf32>
    %53 = arith.maximumf %50, %52 : vector<16x1xf32>
    %54 = arith.subf %50, %53 : vector<16x1xf32>
    %55 = math.exp %54 : vector<16x1xf32>
    %56 = vector.broadcast %53 : vector<16x1xf32> to vector<16x16xf32>
    %57 = arith.subf %48, %56 : vector<16x16xf32>
    %58 = math.exp %57 : vector<16x16xf32>
    %c1_34 = arith.constant 1 : index
    %c0_35 = arith.constant 0 : index
    %c0_36 = arith.constant 0 : index
    %59 = vector.load %arg8[%c1_34, %c0_35, %c0_36] : memref<4x16x1xf32, #tpu.memory_space<vmem>>, vector<1x16x1xf32>
    %60 = vector.shape_cast %59 : vector<1x16x1xf32> to vector<16x1xf32>
    %61 = arith.mulf %55, %60 : vector<16x1xf32>
    %cst_37 = arith.constant dense<0.000000e+00> : vector<16xf32>
    %62 = vector.multi_reduction <add>, %58, %cst_37 [1] : vector<16x16xf32> to vector<16xf32>
    %63 = vector.shape_cast %62 : vector<16xf32> to vector<16x1xf32>
    %64 = arith.addf %61, %63 : vector<16x1xf32>
    %c1_38 = arith.constant 1 : index
    %c0_39 = arith.constant 0 : index
    %c0_40 = arith.constant 0 : index
    %65 = vector.load %arg8[%c1_38, %c0_39, %c0_40] : memref<4x16x1xf32, #tpu.memory_space<vmem>>, vector<1x16x1xf32>
    %66 = vector.shape_cast %65 : vector<1x16x1xf32> to vector<16x1xf32>
    %67 = vector.shape_cast %64 : vector<16x1xf32> to vector<1x16x1xf32>
    tpu.vector_store %arg8[%c1_38, %c0_39, %c0_40], %67 {strides = array<i32>} : memref<4x16x1xf32, #tpu.memory_space<vmem>>, vector<1x16x1xf32>,
    %c1_41 = arith.constant 1 : index
    %c0_42 = arith.constant 0 : index
    %c0_43 = arith.constant 0 : index
    %68 = vector.load %arg9[%c1_41, %c0_42, %c0_43] : memref<4x16x32xf32, #tpu.memory_space<vmem>>, vector<1x16x32xf32>
    %69 = vector.shape_cast %68 : vector<1x16x32xf32> to vector<16x32xf32>
    %70 = vector.broadcast %55 : vector<16x1xf32> to vector<16x32xf32>
    %71 = arith.mulf %70, %69 : vector<16x32xf32>
    %72 = arith.truncf %58 : vector<16x16xf32> to vector<16x16xbf16>
    %cst_44 = arith.constant dense<0.000000e+00> : vector<16x32xf32>
    %73 = tpu.matmul %72, %47, %cst_44 {dimension_numbers = #tpu.dot_dimension_numbers<[1], [0], [0], [1], [0, 0, 1, 1], [], []>} : vector<16x16xbf16>, vector<16x32xbf16>, vector<16x32xf32> -> vector<16x32xf32>
    %74 = arith.addf %71, %73 : vector<16x32xf32>
    %c1_45 = arith.constant 1 : index
    %c0_46 = arith.constant 0 : index
    %c0_47 = arith.constant 0 : index
    %75 = vector.load %arg9[%c1_45, %c0_46, %c0_47] : memref<4x16x32xf32, #tpu.memory_space<vmem>>, vector<1x16x32xf32>
    %76 = vector.shape_cast %75 : vector<1x16x32xf32> to vector<16x32xf32>
    %77 = vector.shape_cast %74 : vector<16x32xf32> to vector<1x16x32xf32>
    tpu.vector_store %arg9[%c1_45, %c0_46, %c0_47], %77 {strides = array<i32>} : memref<4x16x32xf32, #tpu.memory_space<vmem>>, vector<1x16x32xf32>,
    %c1_48 = arith.constant 1 : index
    %c0_49 = arith.constant 0 : index
    %c0_50 = arith.constant 0 : index
    %78 = vector.load %arg7[%c1_48, %c0_49, %c0_50] : memref<4x16x1xf32, #tpu.memory_space<vmem>>, vector<1x16x1xf32>
    %79 = vector.shape_cast %78 : vector<1x16x1xf32> to vector<16x1xf32>
    %80 = vector.shape_cast %53 : vector<16x1xf32> to vector<1x16x1xf32>
    tpu.vector_store %arg7[%c1_48, %c0_49, %c0_50], %80 {strides = array<i32>} : memref<4x16x1xf32, #tpu.memory_space<vmem>>, vector<1x16x1xf32>,
    %81 = vector.extract_strided_slice %4 {offsets = [0, 64], sizes = [16, 32], strides = [1, 1]} : vector<16x128xbf16> to vector<16x32xbf16>
    %82 = vector.extract_strided_slice %6 {offsets = [0, 64], sizes = [16, 32], strides = [1, 1]} : vector<16x128xbf16> to vector<16x32xbf16>
    %83 = vector.extract_strided_slice %8 {offsets = [0, 64], sizes = [16, 32], strides = [1, 1]} : vector<16x128xbf16> to vector<16x32xbf16>
    %cst_51 = arith.constant dense<0.000000e+00> : vector<16x16xf32>
    %84 = tpu.matmul %81, %82, %cst_51 {dimension_numbers = #tpu.dot_dimension_numbers<[1], [1], [0], [0], [0, 0, 1, 0], [], []>} : vector<16x32xbf16>, vector<16x32xbf16>, vector<16x16xf32> -> vector<16x16xf32>
    %c2 = arith.constant 2 : index
    %c0_52 = arith.constant 0 : index
    %c0_53 = arith.constant 0 : index
    %85 = vector.load %arg7[%c2, %c0_52, %c0_53] : memref<4x16x1xf32, #tpu.memory_space<vmem>>, vector<1x16x1xf32>
    %86 = vector.shape_cast %85 : vector<1x16x1xf32> to vector<16x1xf32>
    %cst_54 = arith.constant dense<0xFF800000> : vector<16xf32>
    %87 = vector.multi_reduction <maximumf>, %84, %cst_54 [1] : vector<16x16xf32> to vector<16xf32>
    %88 = vector.shape_cast %87 : vector<16xf32> to vector<16x1xf32>
    %89 = arith.maximumf %86, %88 : vector<16x1xf32>
    %90 = arith.subf %86, %89 : vector<16x1xf32>
    %91 = math.exp %90 : vector<16x1xf32>
    %92 = vector.broadcast %89 : vector<16x1xf32> to vector<16x16xf32>
    %93 = arith.subf %84, %92 : vector<16x16xf32>
    %94 = math.exp %93 : vector<16x16xf32>
    %c2_55 = arith.constant 2 : index
    %c0_56 = arith.constant 0 : index
    %c0_57 = arith.constant 0 : index
    %95 = vector.load %arg8[%c2_55, %c0_56, %c0_57] : memref<4x16x1xf32, #tpu.memory_space<vmem>>, vector<1x16x1xf32>
    %96 = vector.shape_cast %95 : vector<1x16x1xf32> to vector<16x1xf32>
    %97 = arith.mulf %91, %96 : vector<16x1xf32>
    %cst_58 = arith.constant dense<0.000000e+00> : vector<16xf32>
    %98 = vector.multi_reduction <add>, %94, %cst_58 [1] : vector<16x16xf32> to vector<16xf32>
    %99 = vector.shape_cast %98 : vector<16xf32> to vector<16x1xf32>
    %100 = arith.addf %97, %99 : vector<16x1xf32>
    %c2_59 = arith.constant 2 : index
    %c0_60 = arith.constant 0 : index
    %c0_61 = arith.constant 0 : index
    %101 = vector.load %arg8[%c2_59, %c0_60, %c0_61] : memref<4x16x1xf32, #tpu.memory_space<vmem>>, vector<1x16x1xf32>
    %102 = vector.shape_cast %101 : vector<1x16x1xf32> to vector<16x1xf32>
    %103 = vector.shape_cast %100 : vector<16x1xf32> to vector<1x16x1xf32>
    tpu.vector_store %arg8[%c2_59, %c0_60, %c0_61], %103 {strides = array<i32>} : memref<4x16x1xf32, #tpu.memory_space<vmem>>, vector<1x16x1xf32>,
    %c2_62 = arith.constant 2 : index
    %c0_63 = arith.constant 0 : index
    %c0_64 = arith.constant 0 : index
    %104 = vector.load %arg9[%c2_62, %c0_63, %c0_64] : memref<4x16x32xf32, #tpu.memory_space<vmem>>, vector<1x16x32xf32>
    %105 = vector.shape_cast %104 : vector<1x16x32xf32> to vector<16x32xf32>
    %106 = vector.broadcast %91 : vector<16x1xf32> to vector<16x32xf32>
    %107 = arith.mulf %106, %105 : vector<16x32xf32>
    %108 = arith.truncf %94 : vector<16x16xf32> to vector<16x16xbf16>
    %cst_65 = arith.constant dense<0.000000e+00> : vector<16x32xf32>
    %109 = tpu.matmul %108, %83, %cst_65 {dimension_numbers = #tpu.dot_dimension_numbers<[1], [0], [0], [1], [0, 0, 1, 1], [], []>} : vector<16x16xbf16>, vector<16x32xbf16>, vector<16x32xf32> -> vector<16x32xf32>
    %110 = arith.addf %107, %109 : vector<16x32xf32>
    %c2_66 = arith.constant 2 : index
    %c0_67 = arith.constant 0 : index
    %c0_68 = arith.constant 0 : index
    %111 = vector.load %arg9[%c2_66, %c0_67, %c0_68] : memref<4x16x32xf32, #tpu.memory_space<vmem>>, vector<1x16x32xf32>
    %112 = vector.shape_cast %111 : vector<1x16x32xf32> to vector<16x32xf32>
    %113 = vector.shape_cast %110 : vector<16x32xf32> to vector<1x16x32xf32>
    tpu.vector_store %arg9[%c2_66, %c0_67, %c0_68], %113 {strides = array<i32>} : memref<4x16x32xf32, #tpu.memory_space<vmem>>, vector<1x16x32xf32>,
    %c2_69 = arith.constant 2 : index
    %c0_70 = arith.constant 0 : index
    %c0_71 = arith.constant 0 : index
    %114 = vector.load %arg7[%c2_69, %c0_70, %c0_71] : memref<4x16x1xf32, #tpu.memory_space<vmem>>, vector<1x16x1xf32>
    %115 = vector.shape_cast %114 : vector<1x16x1xf32> to vector<16x1xf32>
    %116 = vector.shape_cast %89 : vector<16x1xf32> to vector<1x16x1xf32>
    tpu.vector_store %arg7[%c2_69, %c0_70, %c0_71], %116 {strides = array<i32>} : memref<4x16x1xf32, #tpu.memory_space<vmem>>, vector<1x16x1xf32>,
    %117 = vector.extract_strided_slice %4 {offsets = [0, 96], sizes = [16, 32], strides = [1, 1]} : vector<16x128xbf16> to vector<16x32xbf16>
    %118 = vector.extract_strided_slice %6 {offsets = [0, 96], sizes = [16, 32], strides = [1, 1]} : vector<16x128xbf16> to vector<16x32xbf16>
    %119 = vector.extract_strided_slice %8 {offsets = [0, 96], sizes = [16, 32], strides = [1, 1]} : vector<16x128xbf16> to vector<16x32xbf16>
    %cst_72 = arith.constant dense<0.000000e+00> : vector<16x16xf32>
    %120 = tpu.matmul %117, %118, %cst_72 {dimension_numbers = #tpu.dot_dimension_numbers<[1], [1], [0], [0], [0, 0, 1, 0], [], []>} : vector<16x32xbf16>, vector<16x32xbf16>, vector<16x16xf32> -> vector<16x16xf32>
    %c3 = arith.constant 3 : index
    %c0_73 = arith.constant 0 : index
    %c0_74 = arith.constant 0 : index
    %121 = vector.load %arg7[%c3, %c0_73, %c0_74] : memref<4x16x1xf32, #tpu.memory_space<vmem>>, vector<1x16x1xf32>
    %122 = vector.shape_cast %121 : vector<1x16x1xf32> to vector<16x1xf32>
    %cst_75 = arith.constant dense<0xFF800000> : vector<16xf32>
    %123 = vector.multi_reduction <maximumf>, %120, %cst_75 [1] : vector<16x16xf32> to vector<16xf32>
    %124 = vector.shape_cast %123 : vector<16xf32> to vector<16x1xf32>
    %125 = arith.maximumf %122, %124 : vector<16x1xf32>
    %126 = arith.subf %122, %125 : vector<16x1xf32>
    %127 = math.exp %126 : vector<16x1xf32>
    %128 = vector.broadcast %125 : vector<16x1xf32> to vector<16x16xf32>
    %129 = arith.subf %120, %128 : vector<16x16xf32>
    %130 = math.exp %129 : vector<16x16xf32>
    %c3_76 = arith.constant 3 : index
    %c0_77 = arith.constant 0 : index
    %c0_78 = arith.constant 0 : index
    %131 = vector.load %arg8[%c3_76, %c0_77, %c0_78] : memref<4x16x1xf32, #tpu.memory_space<vmem>>, vector<1x16x1xf32>
    %132 = vector.shape_cast %131 : vector<1x16x1xf32> to vector<16x1xf32>
    %133 = arith.mulf %127, %132 : vector<16x1xf32>
    %cst_79 = arith.constant dense<0.000000e+00> : vector<16xf32>
    %134 = vector.multi_reduction <add>, %130, %cst_79 [1] : vector<16x16xf32> to vector<16xf32>
    %135 = vector.shape_cast %134 : vector<16xf32> to vector<16x1xf32>
    %136 = arith.addf %133, %135 : vector<16x1xf32>
    %c3_80 = arith.constant 3 : index
    %c0_81 = arith.constant 0 : index
    %c0_82 = arith.constant 0 : index
    %137 = vector.load %arg8[%c3_80, %c0_81, %c0_82] : memref<4x16x1xf32, #tpu.memory_space<vmem>>, vector<1x16x1xf32>
    %138 = vector.shape_cast %137 : vector<1x16x1xf32> to vector<16x1xf32>
    %139 = vector.shape_cast %136 : vector<16x1xf32> to vector<1x16x1xf32>
    tpu.vector_store %arg8[%c3_80, %c0_81, %c0_82], %139 {strides = array<i32>} : memref<4x16x1xf32, #tpu.memory_space<vmem>>, vector<1x16x1xf32>,
    %c3_83 = arith.constant 3 : index
    %c0_84 = arith.constant 0 : index
    %c0_85 = arith.constant 0 : index
    %140 = vector.load %arg9[%c3_83, %c0_84, %c0_85] : memref<4x16x32xf32, #tpu.memory_space<vmem>>, vector<1x16x32xf32>
    %141 = vector.shape_cast %140 : vector<1x16x32xf32> to vector<16x32xf32>
    %142 = vector.broadcast %127 : vector<16x1xf32> to vector<16x32xf32>
    %143 = arith.mulf %142, %141 : vector<16x32xf32>
    %144 = arith.truncf %130 : vector<16x16xf32> to vector<16x16xbf16>
    %cst_86 = arith.constant dense<0.000000e+00> : vector<16x32xf32>
    %145 = tpu.matmul %144, %119, %cst_86 {dimension_numbers = #tpu.dot_dimension_numbers<[1], [0], [0], [1], [0, 0, 1, 1], [], []>} : vector<16x16xbf16>, vector<16x32xbf16>, vector<16x32xf32> -> vector<16x32xf32>
    %146 = arith.addf %143, %145 : vector<16x32xf32>
    %c3_87 = arith.constant 3 : index
    %c0_88 = arith.constant 0 : index
    %c0_89 = arith.constant 0 : index
    %147 = vector.load %arg9[%c3_87, %c0_88, %c0_89] : memref<4x16x32xf32, #tpu.memory_space<vmem>>, vector<1x16x32xf32>
    %148 = vector.shape_cast %147 : vector<1x16x32xf32> to vector<16x32xf32>
    %149 = vector.shape_cast %146 : vector<16x32xf32> to vector<1x16x32xf32>
    tpu.vector_store %arg9[%c3_87, %c0_88, %c0_89], %149 {strides = array<i32>} : memref<4x16x32xf32, #tpu.memory_space<vmem>>, vector<1x16x32xf32>,
    %c3_90 = arith.constant 3 : index
    %c0_91 = arith.constant 0 : index
    %c0_92 = arith.constant 0 : index
    %150 = vector.load %arg7[%c3_90, %c0_91, %c0_92] : memref<4x16x1xf32, #tpu.memory_space<vmem>>, vector<1x16x1xf32>
    %151 = vector.shape_cast %150 : vector<1x16x1xf32> to vector<16x1xf32>
    %152 = vector.shape_cast %125 : vector<16x1xf32> to vector<1x16x1xf32>
    tpu.vector_store %arg7[%c3_90, %c0_91, %c0_92], %152 {strides = array<i32>} : memref<4x16x1xf32, #tpu.memory_space<vmem>>, vector<1x16x1xf32>,
    %c0_i32_93 = arith.constant 0 : i32
    %153 = arith.cmpi eq, %arg2, %c0_i32_93 : i32
    %154 = arith.extui %153 : i1 to i32
    %c0_i32_94 = arith.constant 0 : i32
    %155 = arith.cmpi ne, %154, %c0_i32_94 : i32
    scf.if %155 {
      %c0_95 = arith.constant 0 : index
      %c0_96 = arith.constant 0 : index
      %c0_97 = arith.constant 0 : index
      %156 = vector.load %arg9[%c0_95, %c0_96, %c0_97] : memref<4x16x32xf32, #tpu.memory_space<vmem>>, vector<1x16x32xf32>
      %157 = vector.shape_cast %156 : vector<1x16x32xf32> to vector<16x32xf32>
      %c0_98 = arith.constant 0 : index
      %c0_99 = arith.constant 0 : index
      %c0_100 = arith.constant 0 : index
      %158 = vector.load %arg8[%c0_98, %c0_99, %c0_100] : memref<4x16x1xf32, #tpu.memory_space<vmem>>, vector<1x16x1xf32>
      %159 = vector.shape_cast %158 : vector<1x16x1xf32> to vector<16x1xf32>
      %160 = tpu.reciprocal %159 {approx = true} : vector<16x1xf32> -> vector<16x1xf32>
      %161 = vector.broadcast %160 : vector<16x1xf32> to vector<16x32xf32>
      %162 = arith.mulf %157, %161 : vector<16x32xf32>
      %c1_101 = arith.constant 1 : index
      %c0_102 = arith.constant 0 : index
      %c0_103 = arith.constant 0 : index
      %163 = vector.load %arg9[%c1_101, %c0_102, %c0_103] : memref<4x16x32xf32, #tpu.memory_space<vmem>>, vector<1x16x32xf32>
      %164 = vector.shape_cast %163 : vector<1x16x32xf32> to vector<16x32xf32>
      %c1_104 = arith.constant 1 : index
      %c0_105 = arith.constant 0 : index
      %c0_106 = arith.constant 0 : index
      %165 = vector.load %arg8[%c1_104, %c0_105, %c0_106] : memref<4x16x1xf32, #tpu.memory_space<vmem>>, vector<1x16x1xf32>
      %166 = vector.shape_cast %165 : vector<1x16x1xf32> to vector<16x1xf32>
      %167 = tpu.reciprocal %166 {approx = true} : vector<16x1xf32> -> vector<16x1xf32>
      %168 = vector.broadcast %167 : vector<16x1xf32> to vector<16x32xf32>
      %169 = arith.mulf %164, %168 : vector<16x32xf32>
      %c2_107 = arith.constant 2 : index
      %c0_108 = arith.constant 0 : index
      %c0_109 = arith.constant 0 : index
      %170 = vector.load %arg9[%c2_107, %c0_108, %c0_109] : memref<4x16x32xf32, #tpu.memory_space<vmem>>, vector<1x16x32xf32>
      %171 = vector.shape_cast %170 : vector<1x16x32xf32> to vector<16x32xf32>
      %c2_110 = arith.constant 2 : index
      %c0_111 = arith.constant 0 : index
      %c0_112 = arith.constant 0 : index
      %172 = vector.load %arg8[%c2_110, %c0_111, %c0_112] : memref<4x16x1xf32, #tpu.memory_space<vmem>>, vector<1x16x1xf32>
      %173 = vector.shape_cast %172 : vector<1x16x1xf32> to vector<16x1xf32>
      %174 = tpu.reciprocal %173 {approx = true} : vector<16x1xf32> -> vector<16x1xf32>
      %175 = vector.broadcast %174 : vector<16x1xf32> to vector<16x32xf32>
      %176 = arith.mulf %171, %175 : vector<16x32xf32>
      %c3_113 = arith.constant 3 : index
      %c0_114 = arith.constant 0 : index
      %c0_115 = arith.constant 0 : index
      %177 = vector.load %arg9[%c3_113, %c0_114, %c0_115] : memref<4x16x32xf32, #tpu.memory_space<vmem>>, vector<1x16x32xf32>
      %178 = vector.shape_cast %177 : vector<1x16x32xf32> to vector<16x32xf32>
      %c3_116 = arith.constant 3 : index
      %c0_117 = arith.constant 0 : index
      %c0_118 = arith.constant 0 : index
      %179 = vector.load %arg8[%c3_116, %c0_117, %c0_118] : memref<4x16x1xf32, #tpu.memory_space<vmem>>, vector<1x16x1xf32>
      %180 = vector.shape_cast %179 : vector<1x16x1xf32> to vector<16x1xf32>
      %181 = tpu.reciprocal %180 {approx = true} : vector<16x1xf32> -> vector<16x1xf32>
      %182 = vector.broadcast %181 : vector<16x1xf32> to vector<16x32xf32>
      %183 = arith.mulf %178, %182 : vector<16x32xf32>
      %184 = tpu.concatenate %162, %169, %176, %183 in 1 : vector<16x32xf32>, vector<16x32xf32>, vector<16x32xf32>, vector<16x32xf32> -> vector<16x128xf32>
      %185 = arith.truncf %184 : vector<16x128xf32> to vector<16x128xbf16>
      %c0_119 = arith.constant 0 : index
      %c0_120 = arith.constant 0 : index
      %c0_121 = arith.constant 0 : index
      %186 = vector.load %arg6[%c0_119, %c0_120, %c0_121] : memref<1x16x128xbf16, #tpu.memory_space<vmem>>, vector<1x16x128xbf16>
      %187 = vector.shape_cast %186 : vector<1x16x128xbf16> to vector<16x128xbf16>
      %188 = vector.shape_cast %185 : vector<16x128xbf16> to vector<1x16x128xbf16>
      tpu.vector_store %arg6[%c0_119, %c0_120, %c0_121], %188 {strides = array<i32>} : memref<1x16x128xbf16, #tpu.memory_space<vmem>>, vector<1x16x128xbf16>,
    } else {
    }
    return
  }
  func.func @transform_0(%arg0: i32, %arg1: i32, %arg2: i32) -> (i32, i32, i32) {
    %c0_i32 = arith.constant 0 : i32
    %c0_i32_0 = arith.constant 0 : i32
    return %arg0, %arg1, %c0_i32 : i32, i32, i32
  }
  func.func @transform_1(%arg0: i32, %arg1: i32, %arg2: i32) -> (i32, i32, i32) {
    %c1_i32 = arith.constant 1 : i32
    %c0_i32 = arith.constant 0 : i32
    return %arg0, %arg2, %c1_i32 : i32, i32, i32
  }
  func.func @transform_2(%arg0: i32, %arg1: i32, %arg2: i32) -> (i32, i32, i32) {
    %c2_i32 = arith.constant 2 : i32
    %c0_i32 = arith.constant 0 : i32
    return %arg0, %arg2, %c2_i32 : i32, i32, i32
  }
  func.func @transform_3(%arg0: i32, %arg1: i32, %arg2: i32) -> (i32, i32, i32) {
    %c0_i32 = arith.constant 0 : i32
    %c0_i32_0 = arith.constant 0 : i32
    return %arg0, %arg1, %c0_i32 : i32, i32, i32
  }
}

module attributes {stable_mosaic.version = 11 : i64} {
  func.func @_fused_linear_kernel(%arg0: i32, %arg1: i32, %arg2: i32, %arg3: memref<32x128xbf16, #tpu.memory_space<vmem>>, %arg4: memref<128x128xbf16, #tpu.memory_space<vmem>>, %arg5: memref<1x128xf32, #tpu.memory_space<vmem>>, %arg6: memref<32x128xbf16, #tpu.memory_space<vmem>>, %arg7: memref<32x128xbf16, #tpu.memory_space<vmem>>) attributes {dimension_semantics = [#tpu.dimension_semantics<parallel>, #tpu.dimension_semantics<parallel>, #tpu.dimension_semantics<arbitrary>], iteration_bounds = array<i64: 1, 1, 1>, scalar_prefetch = 0 : i64, scratch_operands = 0 : i64, tpu.core_type = #tpu.core_type<tc>, window_params = [{transform_indices = @transform_0, window_bounds = array<i64: 32, 128>}, {transform_indices = @transform_1, window_bounds = array<i64: 128, 128>}, {transform_indices = @transform_2, window_bounds = array<i64: 1, 128>}, {transform_indices = @transform_3, window_bounds = array<i64: 32, 128>}, {transform_indices = @transform_4, window_bounds = array<i64: 32, 128>}]} {
    %c0 = arith.constant 0 : index
    %c0_0 = arith.constant 0 : index
    %0 = vector.load %arg3[%c0, %c0_0] : memref<32x128xbf16, #tpu.memory_space<vmem>>, vector<32x128xbf16>
    %c0_1 = arith.constant 0 : index
    %c0_2 = arith.constant 0 : index
    %1 = vector.load %arg4[%c0_1, %c0_2] : memref<128x128xbf16, #tpu.memory_space<vmem>>, vector<128x128xbf16>
    %cst = arith.constant dense<0.000000e+00> : vector<32x128xf32>
    %2 = tpu.matmul %0, %1, %cst {dimension_numbers = #tpu.dot_dimension_numbers<[1], [0], [0], [1], [0, 0, 1, 1], [], []>} : vector<32x128xbf16>, vector<128x128xbf16>, vector<32x128xf32> -> vector<32x128xf32>
    %c0_3 = arith.constant 0 : index
    %c0_4 = arith.constant 0 : index
    %3 = vector.load %arg5[%c0_3, %c0_4] : memref<1x128xf32, #tpu.memory_space<vmem>>, vector<1x128xf32>
    %4 = vector.broadcast %3 : vector<1x128xf32> to vector<32x128xf32>
    %5 = arith.addf %2, %4 : vector<32x128xf32>
    %c0_5 = arith.constant 0 : index
    %c0_6 = arith.constant 0 : index
    %6 = vector.load %arg6[%c0_5, %c0_6] : memref<32x128xbf16, #tpu.memory_space<vmem>>, vector<32x128xbf16>
    %7 = arith.extf %6 : vector<32x128xbf16> to vector<32x128xf32>
    %8 = arith.addf %5, %7 : vector<32x128xf32>
    %9 = arith.truncf %8 : vector<32x128xf32> to vector<32x128xbf16>
    %c0_7 = arith.constant 0 : index
    %c0_8 = arith.constant 0 : index
    %10 = vector.load %arg7[%c0_7, %c0_8] : memref<32x128xbf16, #tpu.memory_space<vmem>>, vector<32x128xbf16>
    tpu.vector_store %arg7[%c0_7, %c0_8], %9 {strides = array<i32>} : memref<32x128xbf16, #tpu.memory_space<vmem>>, vector<32x128xbf16>,
    return
  }
  func.func @transform_0(%arg0: i32, %arg1: i32, %arg2: i32) -> (i32, i32) {
    %c0_i32 = arith.constant 0 : i32
    return %arg0, %arg2 : i32, i32
  }
  func.func @transform_1(%arg0: i32, %arg1: i32, %arg2: i32) -> (i32, i32) {
    %c0_i32 = arith.constant 0 : i32
    return %arg2, %arg1 : i32, i32
  }
  func.func @transform_2(%arg0: i32, %arg1: i32, %arg2: i32) -> (i32, i32) {
    %c0_i32 = arith.constant 0 : i32
    %c0_i32_0 = arith.constant 0 : i32
    return %c0_i32, %arg1 : i32, i32
  }
  func.func @transform_3(%arg0: i32, %arg1: i32, %arg2: i32) -> (i32, i32) {
    %c0_i32 = arith.constant 0 : i32
    return %arg0, %arg1 : i32, i32
  }
  func.func @transform_4(%arg0: i32, %arg1: i32, %arg2: i32) -> (i32, i32) {
    %c0_i32 = arith.constant 0 : i32
    return %arg0, %arg1 : i32, i32
  }
}

module attributes {stable_mosaic.version = 11 : i64} {
  func.func @_fused_linear_kernel(%arg0: i32, %arg1: i32, %arg2: i32, %arg3: memref<32x128xbf16, #tpu.memory_space<vmem>>, %arg4: memref<128x512xbf16, #tpu.memory_space<vmem>>, %arg5: memref<1x128xf32, #tpu.memory_space<vmem>>, %arg6: memref<1x128xf32, #tpu.memory_space<vmem>>, %arg7: memref<1x512xf32, #tpu.memory_space<vmem>>, %arg8: memref<32x512xbf16, #tpu.memory_space<vmem>>, %arg9: memref<32x128xbf16, #tpu.memory_space<vmem>>) attributes {dimension_semantics = [#tpu.dimension_semantics<parallel>, #tpu.dimension_semantics<arbitrary>, #tpu.dimension_semantics<arbitrary>], iteration_bounds = array<i64: 1, 1, 1>, scalar_prefetch = 0 : i64, scratch_operands = 1 : i64, tpu.core_type = #tpu.core_type<tc>, window_params = [{transform_indices = @transform_0, window_bounds = array<i64: 32, 128>}, {transform_indices = @transform_1, window_bounds = array<i64: 128, 512>}, {transform_indices = @transform_2, window_bounds = array<i64: 1, 128>}, {transform_indices = @transform_3, window_bounds = array<i64: 1, 128>}, {transform_indices = @transform_4, window_bounds = array<i64: 1, 512>}, {transform_indices = @transform_5, window_bounds = array<i64: 32, 512>}]} {
    %c0_i32 = arith.constant 0 : i32
    %0 = arith.cmpi eq, %arg1, %c0_i32 : i32
    %1 = arith.extui %0 : i1 to i32
    %c0_i32_0 = arith.constant 0 : i32
    %2 = arith.cmpi ne, %1, %c0_i32_0 : i32
    scf.if %2 {
      %c0_12 = arith.constant 0 : index
      %c0_13 = arith.constant 0 : index
      %24 = vector.load %arg3[%c0_12, %c0_13] : memref<32x128xbf16, #tpu.memory_space<vmem>>, vector<32x128xbf16>
      %25 = arith.extf %24 : vector<32x128xbf16> to vector<32x128xf32>
      %c0_14 = arith.constant 0 : index
      %c0_15 = arith.constant 0 : index
      %26 = vector.load %arg5[%c0_14, %c0_15] : memref<1x128xf32, #tpu.memory_space<vmem>>, vector<1x128xf32>
      %c0_16 = arith.constant 0 : index
      %c0_17 = arith.constant 0 : index
      %27 = vector.load %arg6[%c0_16, %c0_17] : memref<1x128xf32, #tpu.memory_space<vmem>>, vector<1x128xf32>
      %cst_18 = arith.constant dense<0.000000e+00> : vector<32xf32>
      %28 = vector.multi_reduction <add>, %25, %cst_18 [1] : vector<32x128xf32> to vector<32xf32>
      %29 = vector.shape_cast %28 : vector<32xf32> to vector<32x1xf32>
      %cst_19 = arith.constant 1.280000e+02 : f32
      %30 = vector.broadcast %cst_19 : f32 to vector<32x1xf32>
      %31 = arith.divf %29, %30 : vector<32x1xf32>
      %32 = vector.broadcast %31 : vector<32x1xf32> to vector<32x128xf32>
      %33 = arith.subf %25, %32 : vector<32x128xf32>
      %34 = arith.mulf %33, %33 : vector<32x128xf32>
      %cst_20 = arith.constant dense<0.000000e+00> : vector<32xf32>
      %35 = vector.multi_reduction <add>, %34, %cst_20 [1] : vector<32x128xf32> to vector<32xf32>
      %36 = vector.shape_cast %35 : vector<32xf32> to vector<32x1xf32>
      %cst_21 = arith.constant 1.280000e+02 : f32
      %37 = vector.broadcast %cst_21 : f32 to vector<32x1xf32>
      %38 = arith.divf %36, %37 : vector<32x1xf32>
      %cst_22 = arith.constant 9.99999974E-6 : f32
      %39 = vector.broadcast %cst_22 : f32 to vector<32x1xf32>
      %40 = arith.addf %38, %39 : vector<32x1xf32>
      %41 = math.rsqrt %40 : vector<32x1xf32>
      %42 = vector.broadcast %41 : vector<32x1xf32> to vector<32x128xf32>
      %43 = arith.mulf %33, %42 : vector<32x128xf32>
      %44 = vector.broadcast %26 : vector<1x128xf32> to vector<32x128xf32>
      %45 = arith.mulf %43, %44 : vector<32x128xf32>
      %46 = vector.broadcast %27 : vector<1x128xf32> to vector<32x128xf32>
      %47 = arith.addf %45, %46 : vector<32x128xf32>
      %48 = arith.truncf %47 : vector<32x128xf32> to vector<32x128xbf16>
      %c0_23 = arith.constant 0 : index
      %c0_24 = arith.constant 0 : index
      %49 = vector.load %arg9[%c0_23, %c0_24] : memref<32x128xbf16, #tpu.memory_space<vmem>>, vector<32x128xbf16>
      tpu.vector_store %arg9[%c0_23, %c0_24], %48 {strides = array<i32>} : memref<32x128xbf16, #tpu.memory_space<vmem>>, vector<32x128xbf16>,
    } else {
    }
    %c0 = arith.constant 0 : index
    %c0_1 = arith.constant 0 : index
    %3 = vector.load %arg9[%c0, %c0_1] : memref<32x128xbf16, #tpu.memory_space<vmem>>, vector<32x128xbf16>
    %c0_2 = arith.constant 0 : index
    %c0_3 = arith.constant 0 : index
    %4 = vector.load %arg4[%c0_2, %c0_3] : memref<128x512xbf16, #tpu.memory_space<vmem>>, vector<128x512xbf16>
    %cst = arith.constant dense<0.000000e+00> : vector<32x512xf32>
    %5 = tpu.matmul %3, %4, %cst {dimension_numbers = #tpu.dot_dimension_numbers<[1], [0], [0], [1], [0, 0, 1, 1], [], []>} : vector<32x128xbf16>, vector<128x512xbf16>, vector<32x512xf32> -> vector<32x512xf32>
    %c0_4 = arith.constant 0 : index
    %c0_5 = arith.constant 0 : index
    %6 = vector.load %arg7[%c0_4, %c0_5] : memref<1x512xf32, #tpu.memory_space<vmem>>, vector<1x512xf32>
    %7 = vector.broadcast %6 : vector<1x512xf32> to vector<32x512xf32>
    %8 = arith.addf %5, %7 : vector<32x512xf32>
    %cst_6 = arith.constant 5.000000e-01 : f32
    %9 = vector.broadcast %cst_6 : f32 to vector<32x512xf32>
    %10 = arith.mulf %9, %8 : vector<32x512xf32>
    %cst_7 = arith.constant 4.471500e-02 : f32
    %11 = vector.broadcast %cst_7 : f32 to vector<32x512xf32>
    %12 = arith.mulf %11, %8 : vector<32x512xf32>
    %13 = arith.mulf %12, %8 : vector<32x512xf32>
    %14 = arith.mulf %13, %8 : vector<32x512xf32>
    %15 = arith.addf %8, %14 : vector<32x512xf32>
    %cst_8 = arith.constant 0.797884583 : f32
    %16 = vector.broadcast %cst_8 : f32 to vector<32x512xf32>
    %17 = arith.mulf %16, %15 : vector<32x512xf32>
    %18 = math.tanh %17 : vector<32x512xf32>
    %cst_9 = arith.constant 1.000000e+00 : f32
    %19 = vector.broadcast %cst_9 : f32 to vector<32x512xf32>
    %20 = arith.addf %19, %18 : vector<32x512xf32>
    %21 = arith.mulf %10, %20 : vector<32x512xf32>
    %22 = arith.truncf %21 : vector<32x512xf32> to vector<32x512xbf16>
    %c0_10 = arith.constant 0 : index
    %c0_11 = arith.constant 0 : index
    %23 = vector.load %arg8[%c0_10, %c0_11] : memref<32x512xbf16, #tpu.memory_space<vmem>>, vector<32x512xbf16>
    tpu.vector_store %arg8[%c0_10, %c0_11], %22 {strides = array<i32>} : memref<32x512xbf16, #tpu.memory_space<vmem>>, vector<32x512xbf16>,
    return
  }
  func.func @transform_0(%arg0: i32, %arg1: i32, %arg2: i32) -> (i32, i32) {
    %c0_i32 = arith.constant 0 : i32
    return %arg0, %arg2 : i32, i32
  }
  func.func @transform_1(%arg0: i32, %arg1: i32, %arg2: i32) -> (i32, i32) {
    %c0_i32 = arith.constant 0 : i32
    return %arg2, %arg1 : i32, i32
  }
  func.func @transform_2(%arg0: i32, %arg1: i32, %arg2: i32) -> (i32, i32) {
    %c0_i32 = arith.constant 0 : i32
    %c0_i32_0 = arith.constant 0 : i32
    return %c0_i32, %arg2 : i32, i32
  }
  func.func @transform_3(%arg0: i32, %arg1: i32, %arg2: i32) -> (i32, i32) {
    %c0_i32 = arith.constant 0 : i32
    %c0_i32_0 = arith.constant 0 : i32
    return %c0_i32, %arg2 : i32, i32
  }
  func.func @transform_4(%arg0: i32, %arg1: i32, %arg2: i32) -> (i32, i32) {
    %c0_i32 = arith.constant 0 : i32
    %c0_i32_0 = arith.constant 0 : i32
    return %c0_i32, %arg1 : i32, i32
  }
  func.func @transform_5(%arg0: i32, %arg1: i32, %arg2: i32) -> (i32, i32) {
    %c0_i32 = arith.constant 0 : i32
    return %arg0, %arg1 : i32, i32
  }
}

module attributes {stable_mosaic.version = 11 : i64} {
  func.func @_fused_linear_kernel(%arg0: i32, %arg1: i32, %arg2: i32, %arg3: memref<32x512xbf16, #tpu.memory_space<vmem>>, %arg4: memref<512x128xbf16, #tpu.memory_space<vmem>>, %arg5: memref<1x128xf32, #tpu.memory_space<vmem>>, %arg6: memref<32x128xbf16, #tpu.memory_space<vmem>>) attributes {dimension_semantics = [#tpu.dimension_semantics<parallel>, #tpu.dimension_semantics<parallel>, #tpu.dimension_semantics<arbitrary>], iteration_bounds = array<i64: 1, 1, 1>, scalar_prefetch = 0 : i64, scratch_operands = 0 : i64, tpu.core_type = #tpu.core_type<tc>, window_params = [{transform_indices = @transform_0, window_bounds = array<i64: 32, 512>}, {transform_indices = @transform_1, window_bounds = array<i64: 512, 128>}, {transform_indices = @transform_2, window_bounds = array<i64: 1, 128>}, {transform_indices = @transform_3, window_bounds = array<i64: 32, 128>}]} {
    %c0 = arith.constant 0 : index
    %c0_0 = arith.constant 0 : index
    %0 = vector.load %arg3[%c0, %c0_0] : memref<32x512xbf16, #tpu.memory_space<vmem>>, vector<32x512xbf16>
    %c0_1 = arith.constant 0 : index
    %c0_2 = arith.constant 0 : index
    %1 = vector.load %arg4[%c0_1, %c0_2] : memref<512x128xbf16, #tpu.memory_space<vmem>>, vector<512x128xbf16>
    %cst = arith.constant dense<0.000000e+00> : vector<32x128xf32>
    %2 = tpu.matmul %0, %1, %cst {dimension_numbers = #tpu.dot_dimension_numbers<[1], [0], [0], [1], [0, 0, 1, 1], [], []>} : vector<32x512xbf16>, vector<512x128xbf16>, vector<32x128xf32> -> vector<32x128xf32>
    %c0_3 = arith.constant 0 : index
    %c0_4 = arith.constant 0 : index
    %3 = vector.load %arg5[%c0_3, %c0_4] : memref<1x128xf32, #tpu.memory_space<vmem>>, vector<1x128xf32>
    %4 = vector.broadcast %3 : vector<1x128xf32> to vector<32x128xf32>
    %5 = arith.addf %2, %4 : vector<32x128xf32>
    %6 = arith.truncf %5 : vector<32x128xf32> to vector<32x128xbf16>
    %c0_5 = arith.constant 0 : index
    %c0_6 = arith.constant 0 : index
    %7 = vector.load %arg6[%c0_5, %c0_6] : memref<32x128xbf16, #tpu.memory_space<vmem>>, vector<32x128xbf16>
    tpu.vector_store %arg6[%c0_5, %c0_6], %6 {strides = array<i32>} : memref<32x128xbf16, #tpu.memory_space<vmem>>, vector<32x128xbf16>,
    return
  }
  func.func @transform_0(%arg0: i32, %arg1: i32, %arg2: i32) -> (i32, i32) {
    %c0_i32 = arith.constant 0 : i32
    return %arg0, %arg2 : i32, i32
  }
  func.func @transform_1(%arg0: i32, %arg1: i32, %arg2: i32) -> (i32, i32) {
    %c0_i32 = arith.constant 0 : i32
    return %arg2, %arg1 : i32, i32
  }
  func.func @transform_2(%arg0: i32, %arg1: i32, %arg2: i32) -> (i32, i32) {
    %c0_i32 = arith.constant 0 : i32
    %c0_i32_0 = arith.constant 0 : i32
    return %c0_i32, %arg1 : i32, i32
  }
  func.func @transform_3(%arg0: i32, %arg1: i32, %arg2: i32) -> (i32, i32) {
    %c0_i32 = arith.constant 0 : i32
    return %arg0, %arg1 : i32, i32
  }
}

module attributes {stable_mosaic.version = 11 : i64} {
  func.func @_fused_linear_kernel(%arg0: i32, %arg1: i32, %arg2: i32, %arg3: memref<32x128xbf16, #tpu.memory_space<vmem>>, %arg4: memref<128x32xbf16, #tpu.memory_space<vmem>>, %arg5: memref<1x32xf32, #tpu.memory_space<vmem>>, %arg6: memref<1x32xf32, #tpu.memory_space<vmem>>, %arg7: memref<1x32xf32, #tpu.memory_space<vmem>>, %arg8: memref<32x32xbf16, #tpu.memory_space<vmem>>) attributes {dimension_semantics = [#tpu.dimension_semantics<parallel>, #tpu.dimension_semantics<parallel>, #tpu.dimension_semantics<arbitrary>], iteration_bounds = array<i64: 1, 1, 1>, scalar_prefetch = 0 : i64, scratch_operands = 0 : i64, tpu.core_type = #tpu.core_type<tc>, window_params = [{transform_indices = @transform_0, window_bounds = array<i64: 32, 128>}, {transform_indices = @transform_1, window_bounds = array<i64: 128, 32>}, {transform_indices = @transform_2, window_bounds = array<i64: 1, 32>}, {transform_indices = @transform_3, window_bounds = array<i64: 1, 32>}, {transform_indices = @transform_4, window_bounds = array<i64: 1, 32>}, {transform_indices = @transform_5, window_bounds = array<i64: 32, 32>}]} {
    %c0 = arith.constant 0 : index
    %c0_0 = arith.constant 0 : index
    %0 = vector.load %arg3[%c0, %c0_0] : memref<32x128xbf16, #tpu.memory_space<vmem>>, vector<32x128xbf16>
    %c0_1 = arith.constant 0 : index
    %c0_2 = arith.constant 0 : index
    %1 = vector.load %arg4[%c0_1, %c0_2] : memref<128x32xbf16, #tpu.memory_space<vmem>>, vector<128x32xbf16>
    %cst = arith.constant dense<0.000000e+00> : vector<32x32xf32>
    %2 = tpu.matmul %0, %1, %cst {dimension_numbers = #tpu.dot_dimension_numbers<[1], [0], [0], [1], [0, 0, 1, 1], [], []>} : vector<32x128xbf16>, vector<128x32xbf16>, vector<32x32xf32> -> vector<32x32xf32>
    %c0_3 = arith.constant 0 : index
    %c0_4 = arith.constant 0 : index
    %3 = vector.load %arg5[%c0_3, %c0_4] : memref<1x32xf32, #tpu.memory_space<vmem>>, vector<1x32xf32>
    %4 = vector.broadcast %3 : vector<1x32xf32> to vector<32x32xf32>
    %5 = arith.addf %2, %4 : vector<32x32xf32>
    %c0_5 = arith.constant 0 : index
    %c0_6 = arith.constant 0 : index
    %6 = vector.load %arg6[%c0_5, %c0_6] : memref<1x32xf32, #tpu.memory_space<vmem>>, vector<1x32xf32>
    %c0_7 = arith.constant 0 : index
    %c0_8 = arith.constant 0 : index
    %7 = vector.load %arg7[%c0_7, %c0_8] : memref<1x32xf32, #tpu.memory_space<vmem>>, vector<1x32xf32>
    %cst_9 = arith.constant dense<0.000000e+00> : vector<32xf32>
    %8 = vector.multi_reduction <add>, %5, %cst_9 [1] : vector<32x32xf32> to vector<32xf32>
    %9 = vector.shape_cast %8 : vector<32xf32> to vector<32x1xf32>
    %cst_10 = arith.constant 3.200000e+01 : f32
    %10 = vector.broadcast %cst_10 : f32 to vector<32x1xf32>
    %11 = arith.divf %9, %10 : vector<32x1xf32>
    %12 = vector.broadcast %11 : vector<32x1xf32> to vector<32x32xf32>
    %13 = arith.subf %5, %12 : vector<32x32xf32>
    %14 = arith.mulf %13, %13 : vector<32x32xf32>
    %cst_11 = arith.constant dense<0.000000e+00> : vector<32xf32>
    %15 = vector.multi_reduction <add>, %14, %cst_11 [1] : vector<32x32xf32> to vector<32xf32>
    %16 = vector.shape_cast %15 : vector<32xf32> to vector<32x1xf32>
    %cst_12 = arith.constant 3.200000e+01 : f32
    %17 = vector.broadcast %cst_12 : f32 to vector<32x1xf32>
    %18 = arith.divf %16, %17 : vector<32x1xf32>
    %cst_13 = arith.constant 9.99999997E-7 : f32
    %19 = vector.broadcast %cst_13 : f32 to vector<32x1xf32>
    %20 = arith.addf %18, %19 : vector<32x1xf32>
    %21 = math.rsqrt %20 : vector<32x1xf32>
    %22 = vector.broadcast %21 : vector<32x1xf32> to vector<32x32xf32>
    %23 = arith.mulf %13, %22 : vector<32x32xf32>
    %24 = vector.broadcast %6 : vector<1x32xf32> to vector<32x32xf32>
    %25 = arith.mulf %23, %24 : vector<32x32xf32>
    %26 = vector.broadcast %7 : vector<1x32xf32> to vector<32x32xf32>
    %27 = arith.addf %25, %26 : vector<32x32xf32>
    %28 = arith.truncf %27 : vector<32x32xf32> to vector<32x32xbf16>
    %c0_14 = arith.constant 0 : index
    %c0_15 = arith.constant 0 : index
    %29 = vector.load %arg8[%c0_14, %c0_15] : memref<32x32xbf16, #tpu.memory_space<vmem>>, vector<32x32xbf16>
    tpu.vector_store %arg8[%c0_14, %c0_15], %28 {strides = array<i32>} : memref<32x32xbf16, #tpu.memory_space<vmem>>, vector<32x32xbf16>,
    return
  }
  func.func @transform_0(%arg0: i32, %arg1: i32, %arg2: i32) -> (i32, i32) {
    %c0_i32 = arith.constant 0 : i32
    return %arg0, %arg2 : i32, i32
  }
  func.func @transform_1(%arg0: i32, %arg1: i32, %arg2: i32) -> (i32, i32) {
    %c0_i32 = arith.constant 0 : i32
    return %arg2, %arg1 : i32, i32
  }
  func.func @transform_2(%arg0: i32, %arg1: i32, %arg2: i32) -> (i32, i32) {
    %c0_i32 = arith.constant 0 : i32
    %c0_i32_0 = arith.constant 0 : i32
    return %c0_i32, %arg1 : i32, i32
  }
  func.func @transform_3(%arg0: i32, %arg1: i32, %arg2: i32) -> (i32, i32) {
    %c0_i32 = arith.constant 0 : i32
    %c0_i32_0 = arith.constant 0 : i32
    return %c0_i32, %arg1 : i32, i32
  }
  func.func @transform_4(%arg0: i32, %arg1: i32, %arg2: i32) -> (i32, i32) {
    %c0_i32 = arith.constant 0 : i32
    %c0_i32_0 = arith.constant 0 : i32
    return %c0_i32, %arg1 : i32, i32
  }
  func.func @transform_5(%arg0: i32, %arg1: i32, %arg2: i32) -> (i32, i32) {
    %c0_i32 = arith.constant 0 : i32
    return %arg0, %arg1 : i32, i32
  }
}

module attributes {stable_mosaic.version = 11 : i64} {
  func.func @_neck_conv_ln_kernel(%arg0: i32, %arg1: i32, %arg2: memref<1x6x6x32xbf16, #tpu.memory_space<vmem>>, %arg3: memref<3x3x32x32xbf16, #tpu.memory_space<vmem>>, %arg4: memref<1x32xf32, #tpu.memory_space<vmem>>, %arg5: memref<1x32xf32, #tpu.memory_space<vmem>>, %arg6: memref<1x4x4x32xf32, #tpu.memory_space<vmem>>) attributes {dimension_semantics = [#tpu.dimension_semantics<parallel>, #tpu.dimension_semantics<parallel>], iteration_bounds = array<i64: 2, 1>, scalar_prefetch = 0 : i64, scratch_operands = 0 : i64, tpu.core_type = #tpu.core_type<tc>, window_params = [{transform_indices = @transform_0, window_bounds = array<i64: 1, 6, 6, 32>}, {pipeline_mode = #tpu.pipeline_mode<synchronous>, transform_indices = @transform_1, window_bounds = array<i64: 3, 3, 32, 32>}, {pipeline_mode = #tpu.pipeline_mode<synchronous>, transform_indices = @transform_2, window_bounds = array<i64: 1, 32>}, {pipeline_mode = #tpu.pipeline_mode<synchronous>, transform_indices = @transform_3, window_bounds = array<i64: 1, 32>}, {transform_indices = @transform_4, window_bounds = array<i64: 1, 4, 4, 32>}]} {
    %c4_i32 = arith.constant 4 : i32
    %0 = arith.muli %arg1, %c4_i32 : i32
    %cst = arith.constant 0.000000e+00 : f32
    %1 = vector.broadcast %cst : f32 to vector<16x32xf32>
    %c0_i32 = arith.constant 0 : i32
    %2 = arith.addi %0, %c0_i32 : i32
    %c0 = arith.constant 0 : index
    %3 = arith.index_cast %2 : i32 to index
    %c0_0 = arith.constant 0 : index
    %c0_1 = arith.constant 0 : index
    %4 = vector.load %arg2[%c0, %3, %c0_0, %c0_1] : memref<1x6x6x32xbf16, #tpu.memory_space<vmem>>, vector<1x4x6x32xbf16>
    %5 = vector.shape_cast %4 : vector<1x4x6x32xbf16> to vector<4x6x32xbf16>
    %6 = vector.extract_strided_slice %5 {offsets = [0, 0, 0], sizes = [4, 4, 32], strides = [1, 1, 1]} : vector<4x6x32xbf16> to vector<4x4x32xbf16>
    %7 = vector.shape_cast %6 : vector<4x4x32xbf16> to vector<16x32xbf16>
    %c0_2 = arith.constant 0 : index
    %c0_3 = arith.constant 0 : index
    %c0_4 = arith.constant 0 : index
    %c0_5 = arith.constant 0 : index
    %8 = vector.load %arg3[%c0_2, %c0_3, %c0_4, %c0_5] : memref<3x3x32x32xbf16, #tpu.memory_space<vmem>>, vector<1x1x32x32xbf16>
    %9 = vector.shape_cast %8 : vector<1x1x32x32xbf16> to vector<32x32xbf16>
    %cst_6 = arith.constant dense<0.000000e+00> : vector<16x32xf32>
    %10 = tpu.matmul %7, %9, %cst_6 {dimension_numbers = #tpu.dot_dimension_numbers<[1], [0], [0], [1], [0, 0, 1, 1], [], []>} : vector<16x32xbf16>, vector<32x32xbf16>, vector<16x32xf32> -> vector<16x32xf32>
    %11 = arith.addf %1, %10 : vector<16x32xf32>
    %12 = vector.extract_strided_slice %5 {offsets = [0, 1, 0], sizes = [4, 4, 32], strides = [1, 1, 1]} : vector<4x6x32xbf16> to vector<4x4x32xbf16>
    %13 = vector.shape_cast %12 : vector<4x4x32xbf16> to vector<16x32xbf16>
    %c0_7 = arith.constant 0 : index
    %c1 = arith.constant 1 : index
    %c0_8 = arith.constant 0 : index
    %c0_9 = arith.constant 0 : index
    %14 = vector.load %arg3[%c0_7, %c1, %c0_8, %c0_9] : memref<3x3x32x32xbf16, #tpu.memory_space<vmem>>, vector<1x1x32x32xbf16>
    %15 = vector.shape_cast %14 : vector<1x1x32x32xbf16> to vector<32x32xbf16>
    %cst_10 = arith.constant dense<0.000000e+00> : vector<16x32xf32>
    %16 = tpu.matmul %13, %15, %cst_10 {dimension_numbers = #tpu.dot_dimension_numbers<[1], [0], [0], [1], [0, 0, 1, 1], [], []>} : vector<16x32xbf16>, vector<32x32xbf16>, vector<16x32xf32> -> vector<16x32xf32>
    %17 = arith.addf %11, %16 : vector<16x32xf32>
    %18 = vector.extract_strided_slice %5 {offsets = [0, 2, 0], sizes = [4, 4, 32], strides = [1, 1, 1]} : vector<4x6x32xbf16> to vector<4x4x32xbf16>
    %19 = vector.shape_cast %18 : vector<4x4x32xbf16> to vector<16x32xbf16>
    %c0_11 = arith.constant 0 : index
    %c2 = arith.constant 2 : index
    %c0_12 = arith.constant 0 : index
    %c0_13 = arith.constant 0 : index
    %20 = vector.load %arg3[%c0_11, %c2, %c0_12, %c0_13] : memref<3x3x32x32xbf16, #tpu.memory_space<vmem>>, vector<1x1x32x32xbf16>
    %21 = vector.shape_cast %20 : vector<1x1x32x32xbf16> to vector<32x32xbf16>
    %cst_14 = arith.constant dense<0.000000e+00> : vector<16x32xf32>
    %22 = tpu.matmul %19, %21, %cst_14 {dimension_numbers = #tpu.dot_dimension_numbers<[1], [0], [0], [1], [0, 0, 1, 1], [], []>} : vector<16x32xbf16>, vector<32x32xbf16>, vector<16x32xf32> -> vector<16x32xf32>
    %23 = arith.addf %17, %22 : vector<16x32xf32>
    %c1_i32 = arith.constant 1 : i32
    %24 = arith.addi %0, %c1_i32 : i32
    %c0_15 = arith.constant 0 : index
    %25 = arith.index_cast %24 : i32 to index
    %c0_16 = arith.constant 0 : index
    %c0_17 = arith.constant 0 : index
    %26 = vector.load %arg2[%c0_15, %25, %c0_16, %c0_17] : memref<1x6x6x32xbf16, #tpu.memory_space<vmem>>, vector<1x4x6x32xbf16>
    %27 = vector.shape_cast %26 : vector<1x4x6x32xbf16> to vector<4x6x32xbf16>
    %28 = vector.extract_strided_slice %27 {offsets = [0, 0, 0], sizes = [4, 4, 32], strides = [1, 1, 1]} : vector<4x6x32xbf16> to vector<4x4x32xbf16>
    %29 = vector.shape_cast %28 : vector<4x4x32xbf16> to vector<16x32xbf16>
    %c1_18 = arith.constant 1 : index
    %c0_19 = arith.constant 0 : index
    %c0_20 = arith.constant 0 : index
    %c0_21 = arith.constant 0 : index
    %30 = vector.load %arg3[%c1_18, %c0_19, %c0_20, %c0_21] : memref<3x3x32x32xbf16, #tpu.memory_space<vmem>>, vector<1x1x32x32xbf16>
    %31 = vector.shape_cast %30 : vector<1x1x32x32xbf16> to vector<32x32xbf16>
    %cst_22 = arith.constant dense<0.000000e+00> : vector<16x32xf32>
    %32 = tpu.matmul %29, %31, %cst_22 {dimension_numbers = #tpu.dot_dimension_numbers<[1], [0], [0], [1], [0, 0, 1, 1], [], []>} : vector<16x32xbf16>, vector<32x32xbf16>, vector<16x32xf32> -> vector<16x32xf32>
    %33 = arith.addf %23, %32 : vector<16x32xf32>
    %34 = vector.extract_strided_slice %27 {offsets = [0, 1, 0], sizes = [4, 4, 32], strides = [1, 1, 1]} : vector<4x6x32xbf16> to vector<4x4x32xbf16>
    %35 = vector.shape_cast %34 : vector<4x4x32xbf16> to vector<16x32xbf16>
    %c1_23 = arith.constant 1 : index
    %c1_24 = arith.constant 1 : index
    %c0_25 = arith.constant 0 : index
    %c0_26 = arith.constant 0 : index
    %36 = vector.load %arg3[%c1_23, %c1_24, %c0_25, %c0_26] : memref<3x3x32x32xbf16, #tpu.memory_space<vmem>>, vector<1x1x32x32xbf16>
    %37 = vector.shape_cast %36 : vector<1x1x32x32xbf16> to vector<32x32xbf16>
    %cst_27 = arith.constant dense<0.000000e+00> : vector<16x32xf32>
    %38 = tpu.matmul %35, %37, %cst_27 {dimension_numbers = #tpu.dot_dimension_numbers<[1], [0], [0], [1], [0, 0, 1, 1], [], []>} : vector<16x32xbf16>, vector<32x32xbf16>, vector<16x32xf32> -> vector<16x32xf32>
    %39 = arith.addf %33, %38 : vector<16x32xf32>
    %40 = vector.extract_strided_slice %27 {offsets = [0, 2, 0], sizes = [4, 4, 32], strides = [1, 1, 1]} : vector<4x6x32xbf16> to vector<4x4x32xbf16>
    %41 = vector.shape_cast %40 : vector<4x4x32xbf16> to vector<16x32xbf16>
    %c1_28 = arith.constant 1 : index
    %c2_29 = arith.constant 2 : index
    %c0_30 = arith.constant 0 : index
    %c0_31 = arith.constant 0 : index
    %42 = vector.load %arg3[%c1_28, %c2_29, %c0_30, %c0_31] : memref<3x3x32x32xbf16, #tpu.memory_space<vmem>>, vector<1x1x32x32xbf16>
    %43 = vector.shape_cast %42 : vector<1x1x32x32xbf16> to vector<32x32xbf16>
    %cst_32 = arith.constant dense<0.000000e+00> : vector<16x32xf32>
    %44 = tpu.matmul %41, %43, %cst_32 {dimension_numbers = #tpu.dot_dimension_numbers<[1], [0], [0], [1], [0, 0, 1, 1], [], []>} : vector<16x32xbf16>, vector<32x32xbf16>, vector<16x32xf32> -> vector<16x32xf32>
    %45 = arith.addf %39, %44 : vector<16x32xf32>
    %c2_i32 = arith.constant 2 : i32
    %46 = arith.addi %0, %c2_i32 : i32
    %c0_33 = arith.constant 0 : index
    %47 = arith.index_cast %46 : i32 to index
    %c0_34 = arith.constant 0 : index
    %c0_35 = arith.constant 0 : index
    %48 = vector.load %arg2[%c0_33, %47, %c0_34, %c0_35] : memref<1x6x6x32xbf16, #tpu.memory_space<vmem>>, vector<1x4x6x32xbf16>
    %49 = vector.shape_cast %48 : vector<1x4x6x32xbf16> to vector<4x6x32xbf16>
    %50 = vector.extract_strided_slice %49 {offsets = [0, 0, 0], sizes = [4, 4, 32], strides = [1, 1, 1]} : vector<4x6x32xbf16> to vector<4x4x32xbf16>
    %51 = vector.shape_cast %50 : vector<4x4x32xbf16> to vector<16x32xbf16>
    %c2_36 = arith.constant 2 : index
    %c0_37 = arith.constant 0 : index
    %c0_38 = arith.constant 0 : index
    %c0_39 = arith.constant 0 : index
    %52 = vector.load %arg3[%c2_36, %c0_37, %c0_38, %c0_39] : memref<3x3x32x32xbf16, #tpu.memory_space<vmem>>, vector<1x1x32x32xbf16>
    %53 = vector.shape_cast %52 : vector<1x1x32x32xbf16> to vector<32x32xbf16>
    %cst_40 = arith.constant dense<0.000000e+00> : vector<16x32xf32>
    %54 = tpu.matmul %51, %53, %cst_40 {dimension_numbers = #tpu.dot_dimension_numbers<[1], [0], [0], [1], [0, 0, 1, 1], [], []>} : vector<16x32xbf16>, vector<32x32xbf16>, vector<16x32xf32> -> vector<16x32xf32>
    %55 = arith.addf %45, %54 : vector<16x32xf32>
    %56 = vector.extract_strided_slice %49 {offsets = [0, 1, 0], sizes = [4, 4, 32], strides = [1, 1, 1]} : vector<4x6x32xbf16> to vector<4x4x32xbf16>
    %57 = vector.shape_cast %56 : vector<4x4x32xbf16> to vector<16x32xbf16>
    %c2_41 = arith.constant 2 : index
    %c1_42 = arith.constant 1 : index
    %c0_43 = arith.constant 0 : index
    %c0_44 = arith.constant 0 : index
    %58 = vector.load %arg3[%c2_41, %c1_42, %c0_43, %c0_44] : memref<3x3x32x32xbf16, #tpu.memory_space<vmem>>, vector<1x1x32x32xbf16>
    %59 = vector.shape_cast %58 : vector<1x1x32x32xbf16> to vector<32x32xbf16>
    %cst_45 = arith.constant dense<0.000000e+00> : vector<16x32xf32>
    %60 = tpu.matmul %57, %59, %cst_45 {dimension_numbers = #tpu.dot_dimension_numbers<[1], [0], [0], [1], [0, 0, 1, 1], [], []>} : vector<16x32xbf16>, vector<32x32xbf16>, vector<16x32xf32> -> vector<16x32xf32>
    %61 = arith.addf %55, %60 : vector<16x32xf32>
    %62 = vector.extract_strided_slice %49 {offsets = [0, 2, 0], sizes = [4, 4, 32], strides = [1, 1, 1]} : vector<4x6x32xbf16> to vector<4x4x32xbf16>
    %63 = vector.shape_cast %62 : vector<4x4x32xbf16> to vector<16x32xbf16>
    %c2_46 = arith.constant 2 : index
    %c2_47 = arith.constant 2 : index
    %c0_48 = arith.constant 0 : index
    %c0_49 = arith.constant 0 : index
    %64 = vector.load %arg3[%c2_46, %c2_47, %c0_48, %c0_49] : memref<3x3x32x32xbf16, #tpu.memory_space<vmem>>, vector<1x1x32x32xbf16>
    %65 = vector.shape_cast %64 : vector<1x1x32x32xbf16> to vector<32x32xbf16>
    %cst_50 = arith.constant dense<0.000000e+00> : vector<16x32xf32>
    %66 = tpu.matmul %63, %65, %cst_50 {dimension_numbers = #tpu.dot_dimension_numbers<[1], [0], [0], [1], [0, 0, 1, 1], [], []>} : vector<16x32xbf16>, vector<32x32xbf16>, vector<16x32xf32> -> vector<16x32xf32>
    %67 = arith.addf %61, %66 : vector<16x32xf32>
    %c0_51 = arith.constant 0 : index
    %c0_52 = arith.constant 0 : index
    %68 = vector.load %arg4[%c0_51, %c0_52] : memref<1x32xf32, #tpu.memory_space<vmem>>, vector<1x32xf32>
    %c0_53 = arith.constant 0 : index
    %c0_54 = arith.constant 0 : index
    %69 = vector.load %arg5[%c0_53, %c0_54] : memref<1x32xf32, #tpu.memory_space<vmem>>, vector<1x32xf32>
    %cst_55 = arith.constant dense<0.000000e+00> : vector<16xf32>
    %70 = vector.multi_reduction <add>, %67, %cst_55 [1] : vector<16x32xf32> to vector<16xf32>
    %71 = vector.shape_cast %70 : vector<16xf32> to vector<16x1xf32>
    %cst_56 = arith.constant 3.200000e+01 : f32
    %72 = vector.broadcast %cst_56 : f32 to vector<16x1xf32>
    %73 = arith.divf %71, %72 : vector<16x1xf32>
    %74 = vector.broadcast %73 : vector<16x1xf32> to vector<16x32xf32>
    %75 = arith.subf %67, %74 : vector<16x32xf32>
    %76 = arith.mulf %75, %75 : vector<16x32xf32>
    %cst_57 = arith.constant dense<0.000000e+00> : vector<16xf32>
    %77 = vector.multi_reduction <add>, %76, %cst_57 [1] : vector<16x32xf32> to vector<16xf32>
    %78 = vector.shape_cast %77 : vector<16xf32> to vector<16x1xf32>
    %cst_58 = arith.constant 3.200000e+01 : f32
    %79 = vector.broadcast %cst_58 : f32 to vector<16x1xf32>
    %80 = arith.divf %78, %79 : vector<16x1xf32>
    %cst_59 = arith.constant 9.99999997E-7 : f32
    %81 = vector.broadcast %cst_59 : f32 to vector<16x1xf32>
    %82 = arith.addf %80, %81 : vector<16x1xf32>
    %83 = math.rsqrt %82 : vector<16x1xf32>
    %84 = vector.broadcast %83 : vector<16x1xf32> to vector<16x32xf32>
    %85 = arith.mulf %75, %84 : vector<16x32xf32>
    %86 = vector.broadcast %68 : vector<1x32xf32> to vector<16x32xf32>
    %87 = arith.mulf %85, %86 : vector<16x32xf32>
    %88 = vector.broadcast %69 : vector<1x32xf32> to vector<16x32xf32>
    %89 = arith.addf %87, %88 : vector<16x32xf32>
    %90 = vector.shape_cast %89 : vector<16x32xf32> to vector<4x4x32xf32>
    %c0_60 = arith.constant 0 : index
    %c0_61 = arith.constant 0 : index
    %c0_62 = arith.constant 0 : index
    %c0_63 = arith.constant 0 : index
    %91 = vector.load %arg6[%c0_60, %c0_61, %c0_62, %c0_63] : memref<1x4x4x32xf32, #tpu.memory_space<vmem>>, vector<1x4x4x32xf32>
    %92 = vector.shape_cast %91 : vector<1x4x4x32xf32> to vector<4x4x32xf32>
    %93 = vector.shape_cast %90 : vector<4x4x32xf32> to vector<1x4x4x32xf32>
    tpu.vector_store %arg6[%c0_60, %c0_61, %c0_62, %c0_63], %93 {strides = array<i32>} : memref<1x4x4x32xf32, #tpu.memory_space<vmem>>, vector<1x4x4x32xf32>,
    return
  }
  func.func @transform_0(%arg0: i32, %arg1: i32) -> (i32, i32, i32, i32) {
    %c0_i32 = arith.constant 0 : i32
    %c0_i32_0 = arith.constant 0 : i32
    %c0_i32_1 = arith.constant 0 : i32
    %c0_i32_2 = arith.constant 0 : i32
    return %arg0, %c0_i32, %c0_i32_0, %c0_i32_1 : i32, i32, i32, i32
  }
  func.func @transform_1(%arg0: i32, %arg1: i32) -> (i32, i32, i32, i32) {
    %c0_i32 = arith.constant 0 : i32
    %c0_i32_0 = arith.constant 0 : i32
    %c0_i32_1 = arith.constant 0 : i32
    %c0_i32_2 = arith.constant 0 : i32
    %c0_i32_3 = arith.constant 0 : i32
    return %c0_i32, %c0_i32_0, %c0_i32_1, %c0_i32_2 : i32, i32, i32, i32
  }
  func.func @transform_2(%arg0: i32, %arg1: i32) -> (i32, i32) {
    %c0_i32 = arith.constant 0 : i32
    %c0_i32_0 = arith.constant 0 : i32
    %c0_i32_1 = arith.constant 0 : i32
    return %c0_i32, %c0_i32_0 : i32, i32
  }
  func.func @transform_3(%arg0: i32, %arg1: i32) -> (i32, i32) {
    %c0_i32 = arith.constant 0 : i32
    %c0_i32_0 = arith.constant 0 : i32
    %c0_i32_1 = arith.constant 0 : i32
    return %c0_i32, %c0_i32_0 : i32, i32
  }
  func.func @transform_4(%arg0: i32, %arg1: i32) -> (i32, i32, i32, i32) {
    %c0_i32 = arith.constant 0 : i32
    %c0_i32_0 = arith.constant 0 : i32
    %c0_i32_1 = arith.constant 0 : i32
    return %arg0, %arg1, %c0_i32, %c0_i32_0 : i32, i32, i32, i32
  }
}

</mosaic_0001>

<llo_original>
// kernel: image_encoder_forward.13
$region0: #{image_encoder_forward.13}
  #allocation0 [shape = 'u32[]', space=smem, size = 0x4, offset = 0x4, fixed_abs, tag = 'smem constant byte address 0x4 - core index']
  #allocation1 [shape = 'u32[144,128]{1,0:T(1,128)}', space=vmem, size = 0x12000, scoped, tag = 'internal scratch']
  %s0 = inlined_call_operand.vmem [shape: bf16[32,192], index: 0, kind: input, shape index: {}]
  %s1 = inlined_call_operand.vmem [shape: bf16[192,128], index: 1, kind: input, shape index: {}]
  %s2 = inlined_call_operand.vmem [shape: f32[1,128], index: 2, kind: input, shape index: {}]
  %s3 = inlined_call_operand.vmem [shape: f32[16,128], index: 3, kind: input, shape index: {}]
  %s4 = inlined_call_operand.vmem [shape: bf16[32,128], index: 4, kind: output, shape index: {}]
  %s5 = sld [smem:[#allocation0]]
  $region49: #{image_encoder_forward.13} parent=0
    _
  %s7 = ssub.s32 1, %s5
  %s8 = scalar_select 0, %s7, %s5
  loop: start=0, step=1, limit=4
  $region2: #{image_encoder_forward.13} parent=0 // loop_pre_header
    _
  $region3: #{image_encoder_forward.13} parent=0 // loop_header
    %s10 = sphi 0, %s14
    %p11 = scmp.ge.s32.totalorder %s10, 4
    %s17 = sphi 0, %s36
    %s18 = sphi 0, %s32
    %s19 = sphi 0, %s28
    %s20 = sphi 0, %s17
    %s21 = sphi 0, %s18
    %s22 = sphi 0, %s19
    %s23 = sphi 0, %s20
    %s24 = sphi 0, %s21
    %s25 = sphi 0, %s22
    %s41 = sphi 0, %s43
    %s44 = sphi 0, %s41
    %s45 = sphi 0, %s44
    %s61 = sphi 0, %s45
    %s69 = sphi 0, %s71
    %s72 = sphi 0, %s69
    %s73 = sphi 0, %s72
    %s89 = sphi 0, %s73
    %s95 = sphi 0, %s97
    %s98 = sphi 0, %s95
    %s99 = sphi 0, %s98
    %s115 = sphi 0, %s99
    %s121 = sphi 0, %s123
    %s124 = sphi 0, %s121
    %s125 = sphi 0, %s124
    %s141 = sphi 0, %s125
    %s149 = sphi 0, %s151
    %s152 = sphi 0, %s149
    %s153 = sphi 0, %s152
    %s169 = sphi 0, %s153
  $region4: #{image_encoder_forward.13} parent=0 // loop_header_branch
    %13 = sbr.rel (%p11) target = $region8
  $region5: #{image_encoder_forward.13} parent=0 // loop_body
    %s15 = ssub.s32 %s10, 1
    %s16 = ssub.s32 %s10, 2
    %s26 = sadd.s32 1, %s19
    %p27 = scmp.ge.s32.totalorder %s26, 1
    %s28 = scalar_select %p27, 0, %s26
    %s29 = sadd.s32 1, %s18
    %s30 = scalar_select %p27, %s29, %s18
    %p31 = scmp.ge.s32.totalorder %s30, 1
    %s32 = scalar_select %p31, 0, %s30
    %s33 = sadd.s32 1, %s17
    %s34 = scalar_select %p31, %s33, %s17
    %p35 = scmp.ge.s32.totalorder %s34, 2
    %s36 = scalar_select %p35, 0, %s34
    %s37 = ssub.s32 %s17, %s36
    %s38 = ssub.s32 %s19, %s28
    %s39 = sor.u32 %s37, %s38
    %p40 = scmp.eq.s32.totalorder %s39, 0
    %s42 = sadd.s32 %s41, 1
    %s43 = scalar_select %p40, %s41, %s42
    %p46 = pneg %p40
    %p47 = scmp.eq.s32.totalorder %s10, 1
    %p48 = por %p46, %p47
    %p49 = scmp.ne.s32.totalorder %s41, %s44
    %p50 = scmp.eq.s32.totalorder %s10, 0
    %p51 = por %p49, %p50
    %p52 = scmp.ne.s32.totalorder %s41, %s44
    %p53 = scmp.eq.s32.totalorder %s15, 1
    %p54 = por %p52, %p53
    %p55 = scmp.ne.s32.totalorder %s44, %s45
    %p56 = scmp.eq.s32.totalorder %s15, 0
    %p57 = por %p55, %p56
    %p58 = scmp.ne.s32.totalorder %s44, %s45
    %p59 = scmp.eq.s32.totalorder %s16, 1
    %p60 = por %p58, %p59
    %p62 = scmp.ne.s32.totalorder %s45, %s61
    %p63 = scmp.eq.s32.totalorder %s16, 0
    %p64 = por %p62, %p63
    %s65 = ssub.s32 %s19, %s28
    %s66 = ssub.s32 %s18, %s32
    %s67 = sor.u32 %s65, %s66
    %p68 = scmp.eq.s32.totalorder %s67, 0
    %s70 = sadd.s32 %s69, 1
    %s71 = scalar_select %p68, %s69, %s70
    %p74 = pneg %p68
    %p75 = scmp.eq.s32.totalorder %s10, 1
    %p76 = por %p74, %p75
    %p77 = scmp.ne.s32.totalorder %s69, %s72
    %p78 = scmp.eq.s32.totalorder %s10, 0
    %p79 = por %p77, %p78
    %p80 = scmp.ne.s32.totalorder %s69, %s72
    %p81 = scmp.eq.s32.totalorder %s15, 1
    %p82 = por %p80, %p81
    %p83 = scmp.ne.s32.totalorder %s72, %s73
    %p84 = scmp.eq.s32.totalorder %s15, 0
    %p85 = por %p83, %p84
    %p86 = scmp.ne.s32.totalorder %s72, %s73
    %p87 = scmp.eq.s32.totalorder %s16, 1
    %p88 = por %p86, %p87
    %p90 = scmp.ne.s32.totalorder %s73, %s89
    %p91 = scmp.eq.s32.totalorder %s16, 0
    %p92 = por %p90, %p91
    %s93 = ssub.s32 %s18, %s32
    %p94 = scmp.eq.s32.totalorder %s93, 0
    %s96 = sadd.s32 %s95, 1
    %s97 = scalar_select %p94, %s95, %s96
    %p100 = pneg %p94
    %p101 = scmp.eq.s32.totalorder %s10, 1
    %p102 = por %p100, %p101
    %p103 = scmp.ne.s32.totalorder %s95, %s98
    %p104 = scmp.eq.s32.totalorder %s10, 0
    %p105 = por %p103, %p104
    %p106 = scmp.ne.s32.totalorder %s95, %s98
    %p107 = scmp.eq.s32.totalorder %s15, 1
    %p108 = por %p106, %p107
    %p109 = scmp.ne.s32.totalorder %s98, %s99
    %p110 = scmp.eq.s32.totalorder %s15, 0
    %p111 = por %p109, %p110
    %p112 = scmp.ne.s32.totalorder %s98, %s99
    %p113 = scmp.eq.s32.totalorder %s16, 1
    %p114 = por %p112, %p113
    %p116 = scmp.ne.s32.totalorder %s99, %s115
    %p117 = scmp.eq.s32.totalorder %s16, 0
    %p118 = por %p116, %p117
    %s119 = ssub.s32 %s18, %s32
    %p120 = scmp.eq.s32.totalorder %s119, 0
    %s122 = sadd.s32 %s121, 1
    %s123 = scalar_select %p120, %s121, %s122
    %p126 = pneg %p120
    %p127 = scmp.eq.s32.totalorder %s10, 1
    %p128 = por %p126, %p127
    %p129 = scmp.ne.s32.totalorder %s121, %s124
    %p130 = scmp.eq.s32.totalorder %s10, 0
    %p131 = por %p129, %p130
    %p132 = scmp.ne.s32.totalorder %s121, %s124
    %p133 = scmp.eq.s32.totalorder %s15, 1
    %p134 = por %p132, %p133
    %p135 = scmp.ne.s32.totalorder %s124, %s125
    %p136 = scmp.eq.s32.totalorder %s15, 0
    %p137 = por %p135, %p136
    %p138 = scmp.ne.s32.totalorder %s124, %s125
    %p139 = scmp.eq.s32.totalorder %s16, 1
    %p140 = por %p138, %p139
    %p142 = scmp.ne.s32.totalorder %s125, %s141
    %p143 = scmp.eq.s32.totalorder %s16, 0
    %p144 = por %p142, %p143
    %s145 = ssub.s32 %s17, %s36
    %s146 = ssub.s32 %s18, %s32
    %s147 = sor.u32 %s145, %s146
    %p148 = scmp.eq.s32.totalorder %s147, 0
    %s150 = sadd.s32 %s149, 1
    %s151 = scalar_select %p148, %s149, %s150
    %p154 = pneg %p148
    %p155 = scmp.eq.s32.totalorder %s10, 1
    %p156 = por %p154, %p155
    %p157 = scmp.ne.s32.totalorder %s149, %s152
    %p158 = scmp.eq.s32.totalorder %s10, 0
    %p159 = por %p157, %p158
    %p160 = scmp.ne.s32.totalorder %s149, %s152
    %p161 = scmp.eq.s32.totalorder %s15, 1
    %p162 = por %p160, %p161
    %p163 = scmp.ne.s32.totalorder %s152, %s153
    %p164 = scmp.eq.s32.totalorder %s15, 0
    %p165 = por %p163, %p164
    %p166 = scmp.ne.s32.totalorder %s152, %s153
    %p167 = scmp.eq.s32.totalorder %s16, 1
    %p168 = por %p166, %p167
    %p170 = scmp.ne.s32.totalorder %s153, %s169
    %p171 = scmp.eq.s32.totalorder %s16, 0
    %p172 = por %p170, %p171
    %p173 = scmp.le.s32.totalorder 1, %s10
    %p174 = scmp.lt.s32.totalorder %s10, 3
    %p175 = pnand %p173, %p174
    %p176 = pneg %p175
    // Predicated region
    $region9: #{image_encoder_forward.13} parent=5 // pred_check
      _
    $region10: #{image_encoder_forward.13} parent=5 // pred_check_branch
      %178 = sbr.rel (%p175) target = $region12
    $region11: #{image_encoder_forward.13} parent=5 // pred_region
      %s179 = ssub.s32 %s10, 1
      // Predicated region
      $region13: #{image_encoder_forward.13} parent=11 // pred_check
        %p180 = pneg %p85
      $region14: #{image_encoder_forward.13} parent=11 // pred_check_branch
        %182 = sbr.rel (%p180) target = $region16
      $region15: #{image_encoder_forward.13} parent=11 // pred_region
        %s183 = smul.u32 24, %s22
        %p184 = scmp.lt.s32.totalorder %s183, 23
        %s185 = scalar_select %p184, %s183, 23
        %p186 = scmp.lt.s32.totalorder %s21, 0
        %s187 = scalar_select %p186, %s21, 0
        %s188 = sadd.s32 %s187, %s185
        %s189 = smul.addr %s188, 4
        %s190 = scalar_lea.vmem %s1, %s189
        %s191 = smul.u32 24, %s22
      $region16: #{image_encoder_forward.13} parent=11 // pred_fallthru
        _
      // Predicated region
      $region17: #{image_encoder_forward.13} parent=11 // pred_check
        %p192 = pneg %p111
      $region18: #{image_encoder_forward.13} parent=11 // pred_check_branch
        %194 = sbr.rel (%p192) target = $region20
      $region19: #{image_encoder_forward.13} parent=11 // pred_region
        %p195 = scmp.lt.s32.totalorder %s21, 0
        %s196 = scalar_select %p195, %s21, 0
        %s197 = scalar_lea.vmem %s2, %s196
      $region20: #{image_encoder_forward.13} parent=11 // pred_fallthru
        _
      // Predicated region
      $region21: #{image_encoder_forward.13} parent=11 // pred_check
        %p198 = pneg %p137
      $region22: #{image_encoder_forward.13} parent=11 // pred_check_branch
        %200 = sbr.rel (%p198) target = $region24
      $region23: #{image_encoder_forward.13} parent=11 // pred_region
        %p201 = scmp.lt.s32.totalorder %s21, 0
        %s202 = scalar_select %p201, %s21, 0
        %s203 = smul.addr %s202, 8
        %s204 = scalar_lea.vmem %s3, %s203
      $region24: #{image_encoder_forward.13} parent=11 // pred_fallthru
        _
    $region12: #{image_encoder_forward.13} parent=5 // pred_fallthru
      _
    %p205 = scmp.lt.s32.totalorder %s10, 2
    // Predicated region
    $region25: #{image_encoder_forward.13} parent=5 // pred_check
      %p206 = pneg %p205
    $region26: #{image_encoder_forward.13} parent=5 // pred_check_branch
      %208 = sbr.rel (%p206) target = $region28
    $region27: #{image_encoder_forward.13} parent=5 // pred_region
      // Predicated region
      $region29: #{image_encoder_forward.13} parent=27 // pred_check
        %p209 = pneg %p51
      $region30: #{image_encoder_forward.13} parent=27 // pred_check_branch
        %211 = sbr.rel (%p209) target = $region32
      $region31: #{image_encoder_forward.13} parent=27 // pred_region
        %s212 = smul.u32 2, %s17
        %s213 = smul.u32 2, %s19
        %p214 = scmp.lt.s32.totalorder %s212, 3
        %s215 = scalar_select %p214, %s212, 3
        %p216 = scmp.lt.s32.totalorder %s213, 1
        %s217 = scalar_select %p216, %s213, 1
        %s218 = smul.addr %s215, 2
        %s219 = sadd.s32 %s217, %s218
        %s220 = smul.addr %s219, 4
        %s221 = scalar_lea.vmem %s0, %s220
        %s222 = smul.u32 2, %s17
        %s223 = smul.u32 2, %s19
      $region32: #{image_encoder_forward.13} parent=27 // pred_fallthru
        _
    $region28: #{image_encoder_forward.13} parent=5 // pred_fallthru
      _
    %p224 = scmp.le.s32.totalorder 1, %s10
    %p225 = scmp.lt.s32.totalorder %s10, 3
    %p226 = pnand %p224, %p225
    %p227 = pneg %p226
    // Predicated region
    $region33: #{image_encoder_forward.13} parent=5 // pred_check
      _
    $region34: #{image_encoder_forward.13} parent=5 // pred_check_branch
      %229 = sbr.rel (%p226) target = $region36
    $region35: #{image_encoder_forward.13} parent=5 // pred_region
      %s230 = ssub.s32 %s10, 1
      %s231 = smul.u32 2, %s20
      %s232 = smul.u32 2, %s22
      %p233 = scmp.lt.s32.totalorder %s231, 3
      %s234 = scalar_select %p233, %s231, 3
      %p235 = scmp.lt.s32.totalorder %s232, 1
      %s236 = scalar_select %p235, %s232, 1
      %s237 = smul.addr %s234, 2
      %s238 = sadd.s32 %s236, %s237
      %s239 = smul.addr %s238, 4
      %s240 = scalar_lea.vmem %s0, %s239
      %p241 = pneg %p57
      %p242 = pneg %p54
      %s243 = smul.u32 24, %s22
      %p244 = scmp.lt.s32.totalorder %s243, 23
      %s245 = scalar_select %p244, %s243, 23
      %p246 = scmp.lt.s32.totalorder %s21, 0
      %s247 = scalar_select %p246, %s21, 0
      %s248 = sadd.s32 %s247, %s245
      %s249 = smul.addr %s248, 4
      %s250 = scalar_lea.vmem %s1, %s249
      %p251 = pneg %p85
      %p252 = pneg %p82
      %p253 = scmp.lt.s32.totalorder %s21, 0
      %s254 = scalar_select %p253, %s21, 0
      %s255 = scalar_lea.vmem %s2, %s254
      %p256 = pneg %p111
      %p257 = pneg %p108
      %p258 = scmp.lt.s32.totalorder %s21, 0
      %s259 = scalar_select %p258, %s21, 0
      %s260 = smul.addr %s259, 8
      %s261 = scalar_lea.vmem %s3, %s260
      %p262 = pneg %p137
      %p263 = pneg %p134
      %p264 = pneg %p165
      %p265 = pneg %p162
      %s266 = smul.u32 2, %s20
      %p267 = scmp.lt.s32.totalorder %s266, 3
      %s268 = scalar_select %p267, %s266, 3
      %p269 = scmp.lt.s32.totalorder %s21, 0
      %s270 = scalar_select %p269, %s21, 0
      %s271 = sadd.s32 %s270, %s268
      %s272 = smul.addr %s271, 4
      %s273 = scalar_lea.vmem %s4, %s272
      %s274 = smul.u32 2, %s20
      %s275 = smul.u32 2, %s22
      %p276 = scmp.lt.s32.totalorder %s274, 3
      %s277 = scalar_select %p276, %s274, 3
      %p278 = scmp.lt.s32.totalorder %s275, 1
      %s279 = scalar_select %p278, %s275, 1
      %s280 = smul.addr %s277, 2
      %s281 = sadd.s32 %s279, %s280
      %s282 = smul.addr %s281, 4
      %s283 = scalar_lea.vmem %s0, %s282
      %s284 = smul.u32 2, %s20
      %s285 = smul.u32 2, %s22
      %s286 = smul.u32 24, %s22
      %p287 = scmp.lt.s32.totalorder %s286, 23
      %s288 = scalar_select %p287, %s286, 23
      %p289 = scmp.lt.s32.totalorder %s21, 0
      %s290 = scalar_select %p289, %s21, 0
      %s291 = sadd.s32 %s290, %s288
      %s292 = smul.addr %s291, 4
      %s293 = scalar_lea.vmem %s1, %s292
      %s294 = smul.u32 24, %s22
      %p295 = scmp.lt.s32.totalorder %s21, 0
      %s296 = scalar_select %p295, %s21, 0
      %s297 = scalar_lea.vmem %s2, %s296
      %p298 = scmp.lt.s32.totalorder %s21, 0
      %s299 = scalar_select %p298, %s21, 0
      %s300 = smul.addr %s299, 8
      %s301 = scalar_lea.vmem %s3, %s300
      %s302 = smul.u32 2, %s20
      %p303 = scmp.lt.s32.totalorder %s302, 3
      %s304 = scalar_select %p303, %s302, 3
      %p305 = scmp.lt.s32.totalorder %s21, 0
      %s306 = scalar_select %p305, %s21, 0
      %s307 = sadd.s32 %s306, %s304
      %s308 = smul.addr %s307, 4
      %s309 = scalar_lea.vmem %s4, %s308
      %s310 = smul.u32 2, %s20
      %v312 = vld [vmem:[%s283] sm:$0xff]
      %v313 = vld [vmem:[%s283 + $0x8] sm:$0xff]
      %v314 = vld [vmem:[%s293] sm:$0xf]
      %v315 = vld [vmem:[%s293 + $0x4] sm:$0xf]
      %v316 = vld [vmem:[%s293 + $0x8] sm:$0xf]
      %v317 = vld [vmem:[%s293 + $0xc] sm:$0xf]
      %v318 = vld [vmem:[%s293 + $0x10] sm:$0xf]
      %v319 = vld [vmem:[%s293 + $0x14] sm:$0xf]
      %v320 = vld [vmem:[%s293 + $0x18] sm:$0xf]
      %v321 = vld [vmem:[%s293 + $0x1c] sm:$0xf]
      %v322 = vld [vmem:[%s293 + $0x20] sm:$0xf]
      %v323 = vld [vmem:[%s293 + $0x24] sm:$0xf]
      %v324 = vld [vmem:[%s293 + $0x28] sm:$0xf]
      %v325 = vld [vmem:[%s293 + $0x2c] sm:$0xf]
      %v326 = vld [vmem:[%s293 + $0x30] sm:$0xf]
      %v327 = vld [vmem:[%s293 + $0x34] sm:$0xf]
      %v328 = vld [vmem:[%s293 + $0x38] sm:$0xf]
      %v329 = vld [vmem:[%s293 + $0x3c] sm:$0xf]
      %v330 = vld [vmem:[%s293 + $0x40] sm:$0xf]
      %v331 = vld [vmem:[%s293 + $0x44] sm:$0xf]
      %v332 = vld [vmem:[%s293 + $0x48] sm:$0xf]
      %v333 = vld [vmem:[%s293 + $0x4c] sm:$0xf]
      %v334 = vld [vmem:[%s293 + $0x50] sm:$0xf]
      %v335 = vld [vmem:[%s293 + $0x54] sm:$0xf]
      %v336 = vld [vmem:[%s293 + $0x58] sm:$0xf]
      %v337 = vld [vmem:[%s293 + $0x5c] sm:$0xf]
      %v338 = vld [vmem:[%s297] sm:$0x1]
      %v340 = vlaneseq
      %v341 = vshrl.u32 %v340, 7
      %v342 = vsub.s32 0, %v341
      %v343 = vrot.slane %v338, %v342
      %v347 = vunpack.c.l.b16 %v312
      %v348 = vunpack.c.h.b16 %v312
      %v349 = vunpack.c.l.b16 %v313
      %v350 = vunpack.c.h.b16 %v313
      %v351 = vpack.c.b16 %v349, %v347
      %v352 = vpack.c.b16 %v350, %v348
      %v378 = vunpack.c.l.b16 %v314
      %v379 = vunpack.c.l.b16 %v315
      %v380 = vunpack.c.l.b16 %v316
      %v381 = vunpack.c.l.b16 %v317
      %v382 = vunpack.c.l.b16 %v318
      %v383 = vunpack.c.l.b16 %v319
      %v384 = vunpack.c.l.b16 %v320
      %v385 = vunpack.c.l.b16 %v321
      %v386 = vunpack.c.l.b16 %v322
      %v387 = vunpack.c.l.b16 %v323
      %v388 = vunpack.c.l.b16 %v324
      %v389 = vunpack.c.l.b16 %v325
      %v390 = vunpack.c.l.b16 %v326
      %v391 = vunpack.c.l.b16 %v327
      %v392 = vunpack.c.l.b16 %v328
      %v393 = vunpack.c.l.b16 %v329
      %v394 = vunpack.c.l.b16 %v330
      %v395 = vunpack.c.l.b16 %v331
      %v396 = vunpack.c.l.b16 %v332
      %v397 = vunpack.c.l.b16 %v333
      %v398 = vunpack.c.l.b16 %v334
      %v399 = vunpack.c.l.b16 %v335
      %v400 = vunpack.c.l.b16 %v336
      %v401 = vunpack.c.l.b16 %v337
      %v402 = vpack.c.b16 %v379, %v378
      %v403 = vpack.c.b16 %v381, %v380
      %v404 = vpack.c.b16 %v383, %v382
      %v405 = vpack.c.b16 %v385, %v384
      %v406 = vpack.c.b16 %v387, %v386
      %v407 = vpack.c.b16 %v389, %v388
      %v408 = vpack.c.b16 %v391, %v390
      %v409 = vpack.c.b16 %v393, %v392
      %v410 = vpack.c.b16 %v395, %v394
      %v411 = vpack.c.b16 %v397, %v396
      %v412 = vpack.c.b16 %v399, %v398
      %v413 = vpack.c.b16 %v401, %v400
      %vm426 = vcmask 523264
      %v428 = vsel %vm426, %v352, 0
      %430 = vmatprep.subr.bf16.mxu0 0
      %431 = vmatpush1.bf16.msra.mxu0 %v402
      %432 = vmatprep.subr.bf16.mxu0 0
      %433 = vmatpush1.bf16.msra.mxu0 %v403
      %434 = vmatprep.subr.bf16.mxu0 0
      %435 = vmatpush1.bf16.msra.mxu0 %v404
      %436 = vmatprep.subr.bf16.mxu0 0
      %437 = vmatpush1.bf16.msra.mxu0 %v405
      %438 = vmatprep.subr.bf16.mxu0 0
      %439 = vmatpush1.bf16.msra.mxu0 %v406
      %440 = vmatprep.subr.bf16.mxu0 0
      %441 = vmatpush1.bf16.msra.mxu0 %v407
      %442 = vmatprep.subr.bf16.mxu0 0
      %443 = vmatpush1.bf16.msra.mxu0 %v408
      %444 = vmatprep.subr.bf16.mxu0 0
      %445 = vmatpush1.bf16.msra.mxu0 %v409
      %446 = vmatprep.subr.bf16.mxu0 0
      %447 = vmatpush1.bf16.msra.mxu0 %v410
      %448 = vmatprep.subr.bf16.mxu0 0
      %449 = vmatpush1.bf16.msra.mxu0 %v411
      %450 = vmatprep.subr.bf16.mxu0 0
      %451 = vmatpush1.bf16.msra.mxu0 %v412
      %452 = vmatprep.subr.bf16.mxu0 0
      %453 = vmatpush1.bf16.msra.mxu0 %v413
      %454 = vmatprep.subr.bf16.mxu0 0
      %455 = vmatpush1.bf16.msra.mxu0 0
      %456 = vmatprep.subr.bf16.mxu0 0
      %457 = vmatpush1.bf16.msra.mxu0 0
      %458 = vmatprep.subr.bf16.mxu0 0
      %459 = vmatpush1.bf16.msra.mxu0 0
      %460 = vmatprep.subr.bf16.mxu0 0
      %461 = vmatpush1.bf16.msra.mxu0 0
      %462 = vmatprep.mubr.bf16.mxu0 %v428
      %463 = vmatmul.mubr.bf16.gmra.mrb[0].mxu0 %v351
      %v464 = vpop.f32.mrb[0].mxu0
      %v465 = vadd.f32 %v343, %v464
      %v466 = vpop.f32.mrb[0].mxu0
      %v467 = vpop.f32.mrb[0].mxu0
      %v468 = vadd.f32 %v343, %v467
      %v469 = vpop.f32.mrb[0].mxu0
      %470 = vdwg.mxu0
      %v471 = vld [vmem:[%s301] sm:$0xff]
      %v472 = vld [vmem:[%s301 + $0x8] sm:$0xff]
      %v473 = vadd.f32 %v465, %v471
      %v474 = vadd.f32 %v468, %v472
      %v475 = vpack.c.bf16 %v474, %v473
      %v477 = vunpack.c.l.b16 %v475
      %v478 = vunpack.c.h.b16 %v475
      %v479 = vpack.c.b16 %v477, %v477
      %v480 = vpack.c.b16 %v478, %v478
      %483 = vst [vmem:[%s309] sm:$0xf] %v479
      %484 = vst [vmem:[%s309 + $0x4] sm:$0xf] %v480
      %s485 = smul.u32 2, %s20
      %p486 = scmp.lt.s32.totalorder %s485, 3
      %s487 = scalar_select %p486, %s485, 3
      %p488 = scmp.lt.s32.totalorder %s21, 0
      %s489 = scalar_select %p488, %s21, 0
      %s490 = sadd.s32 %s489, %s487
      %s491 = smul.addr %s490, 4
      %s492 = scalar_lea.vmem %s4, %s491
      // Predicated region
      $region37: #{image_encoder_forward.13} parent=35 // pred_check
        %p493 = pneg %p162
      $region38: #{image_encoder_forward.13} parent=35 // pred_check_branch
        %495 = sbr.rel (%p493) target = $region40
      $region39: #{image_encoder_forward.13} parent=35 // pred_region
        %s496 = smul.u32 2, %s20
      $region40: #{image_encoder_forward.13} parent=35 // pred_fallthru
        _
    $region36: #{image_encoder_forward.13} parent=5 // pred_fallthru
      _
    %p497 = scmp.le.s32.totalorder 2, %s10
    // Predicated region
    $region41: #{image_encoder_forward.13} parent=5 // pred_check
      %p498 = pneg %p497
    $region42: #{image_encoder_forward.13} parent=5 // pred_check_branch
      %500 = sbr.rel (%p498) target = $region44
    $region43: #{image_encoder_forward.13} parent=5 // pred_region
      %s501 = ssub.s32 %s10, 2
      // Predicated region
      $region45: #{image_encoder_forward.13} parent=43 // pred_check
        %p502 = pneg %p168
      $region46: #{image_encoder_forward.13} parent=43 // pred_check_branch
        %504 = sbr.rel (%p502) target = $region48
      $region47: #{image_encoder_forward.13} parent=43 // pred_region
        %s505 = smul.u32 2, %s23
        %p506 = scmp.lt.s32.totalorder %s505, 3
        %s507 = scalar_select %p506, %s505, 3
        %p508 = scmp.lt.s32.totalorder %s24, 0
        %s509 = scalar_select %p508, %s24, 0
        %s510 = sadd.s32 %s509, %s507
        %s511 = smul.addr %s510, 4
        %s512 = scalar_lea.vmem %s4, %s511
      $region48: #{image_encoder_forward.13} parent=43 // pred_fallthru
        _
    $region44: #{image_encoder_forward.13} parent=5 // pred_fallthru
      _
  $region6: #{image_encoder_forward.13} parent=0 // loop_footer
    %s14 = sadd.s32 1, %s10
  $region7: #{image_encoder_forward.13} parent=0 // loop_footer_branch
    %9 = sbr.rel target = $region3
  $region8: #{image_encoder_forward.13} parent=0 // loop_exit
    _

// kernel: image_encoder_forward.16
$region0: #{image_encoder_forward.16}
  #allocation0 [shape = 'u32[]', space=smem, size = 0x4, offset = 0x4, fixed_abs, tag = 'smem constant byte address 0x4 - core index']
  #allocation1 [shape = 'u32[144,128]{1,0:T(1,128)}', space=vmem, size = 0x12000, scoped, tag = 'internal scratch']
  %s0 = inlined_call_operand.vmem [shape: bf16[32,128], index: 0, kind: input, shape index: {}]
  %s1 = inlined_call_operand.vmem [shape: bf16[128,128], index: 1, kind: input, shape index: {}]
  %s2 = inlined_call_operand.vmem [shape: f32[1,128], index: 2, kind: input, shape index: {}]
  %s3 = inlined_call_operand.vmem [shape: bf16[32,128], index: 3, kind: input, shape index: {}]
  %s4 = inlined_call_operand.vmem [shape: bf16[32,128], index: 4, kind: output, shape index: {}]
  %s5 = sld [smem:[#allocation0]]
  $region26: #{image_encoder_forward.16} parent=0
    _
  %s7 = ssub.s32 1, %s5
  %s8 = scalar_select 0, %s7, %s5
  // Predicated region
  $region2: #{image_encoder_forward.16} parent=0 // pred_check
    _
  $region3: #{image_encoder_forward.16} parent=0 // pred_check_branch
    %10 = sbr.rel (0) target = $region5
  $region4: #{image_encoder_forward.16} parent=0 // pred_region
    _
  $region5: #{image_encoder_forward.16} parent=0 // pred_fallthru
    _
  // Predicated region
  $region6: #{image_encoder_forward.16} parent=0 // pred_check
    _
  $region7: #{image_encoder_forward.16} parent=0 // pred_check_branch
    %12 = sbr.rel (0) target = $region9
  $region8: #{image_encoder_forward.16} parent=0 // pred_region
    _
  $region9: #{image_encoder_forward.16} parent=0 // pred_fallthru
    _
  // Predicated region
  $region10: #{image_encoder_forward.16} parent=0 // pred_check
    _
  $region11: #{image_encoder_forward.16} parent=0 // pred_check_branch
    %14 = sbr.rel (0) target = $region13
  $region12: #{image_encoder_forward.16} parent=0 // pred_region
    _
  $region13: #{image_encoder_forward.16} parent=0 // pred_fallthru
    _
  // Predicated region
  $region14: #{image_encoder_forward.16} parent=0 // pred_check
    _
  $region15: #{image_encoder_forward.16} parent=0 // pred_check_branch
    %16 = sbr.rel (0) target = $region17
  $region16: #{image_encoder_forward.16} parent=0 // pred_region
    _
  $region17: #{image_encoder_forward.16} parent=0 // pred_fallthru
    _
  %v18 = vld [vmem:[%s0] sm:$0xf]
  %v19 = vld [vmem:[%s0 + $0x4] sm:$0xf]
  %v20 = vld [vmem:[%s0 + $0x8] sm:$0xf]
  %v21 = vld [vmem:[%s0 + $0xc] sm:$0xf]
  %v22 = vld [vmem:[%s1] sm:$0xf]
  %v23 = vld [vmem:[%s1 + $0x4] sm:$0xf]
  %v24 = vld [vmem:[%s1 + $0x8] sm:$0xf]
  %v25 = vld [vmem:[%s1 + $0xc] sm:$0xf]
  %v26 = vld [vmem:[%s1 + $0x10] sm:$0xf]
  %v27 = vld [vmem:[%s1 + $0x14] sm:$0xf]
  %v28 = vld [vmem:[%s1 + $0x18] sm:$0xf]
  %v29 = vld [vmem:[%s1 + $0x1c] sm:$0xf]
  %v30 = vld [vmem:[%s1 + $0x20] sm:$0xf]
  %v31 = vld [vmem:[%s1 + $0x24] sm:$0xf]
  %v32 = vld [vmem:[%s1 + $0x28] sm:$0xf]
  %v33 = vld [vmem:[%s1 + $0x2c] sm:$0xf]
  %v34 = vld [vmem:[%s1 + $0x30] sm:$0xf]
  %v35 = vld [vmem:[%s1 + $0x34] sm:$0xf]
  %v36 = vld [vmem:[%s1 + $0x38] sm:$0xf]
  %v37 = vld [vmem:[%s1 + $0x3c] sm:$0xf]
  %v38 = vld [vmem:[%s2] sm:$0x1]
  %v40 = vlaneseq
  %v41 = vshrl.u32 %v40, 7
  %v42 = vsub.s32 0, %v41
  %v43 = vrot.slane %v38, %v42
  %v49 = vunpack.c.l.b16 %v18
  %v50 = vunpack.c.l.b16 %v19
  %v51 = vunpack.c.l.b16 %v20
  %v52 = vunpack.c.l.b16 %v21
  %v53 = vpack.c.b16 %v50, %v49
  %v54 = vpack.c.b16 %v52, %v51
  %v73 = vunpack.c.l.b16 %v22
  %v74 = vunpack.c.l.b16 %v23
  %v75 = vunpack.c.l.b16 %v24
  %v76 = vunpack.c.l.b16 %v25
  %v77 = vunpack.c.l.b16 %v26
  %v78 = vunpack.c.l.b16 %v27
  %v79 = vunpack.c.l.b16 %v28
  %v80 = vunpack.c.l.b16 %v29
  %v81 = vunpack.c.l.b16 %v30
  %v82 = vunpack.c.l.b16 %v31
  %v83 = vunpack.c.l.b16 %v32
  %v84 = vunpack.c.l.b16 %v33
  %v85 = vunpack.c.l.b16 %v34
  %v86 = vunpack.c.l.b16 %v35
  %v87 = vunpack.c.l.b16 %v36
  %v88 = vunpack.c.l.b16 %v37
  %v89 = vpack.c.b16 %v74, %v73
  %v90 = vpack.c.b16 %v76, %v75
  %v91 = vpack.c.b16 %v78, %v77
  %v92 = vpack.c.b16 %v80, %v79
  %v93 = vpack.c.b16 %v82, %v81
  %v94 = vpack.c.b16 %v84, %v83
  %v95 = vpack.c.b16 %v86, %v85
  %v96 = vpack.c.b16 %v88, %v87
  %105 = vmatprep.subr.bf16.mxu0 0
  %106 = vmatpush1.bf16.msra.mxu0 %v89
  %107 = vmatprep.subr.bf16.mxu0 0
  %108 = vmatpush1.bf16.msra.mxu0 %v90
  %109 = vmatprep.subr.bf16.mxu0 0
  %110 = vmatpush1.bf16.msra.mxu0 %v91
  %111 = vmatprep.subr.bf16.mxu0 0
  %112 = vmatpush1.bf16.msra.mxu0 %v92
  %113 = vmatprep.subr.bf16.mxu0 0
  %114 = vmatpush1.bf16.msra.mxu0 %v93
  %115 = vmatprep.subr.bf16.mxu0 0
  %116 = vmatpush1.bf16.msra.mxu0 %v94
  %117 = vmatprep.subr.bf16.mxu0 0
  %118 = vmatpush1.bf16.msra.mxu0 %v95
  %119 = vmatprep.subr.bf16.mxu0 0
  %120 = vmatpush1.bf16.msra.mxu0 %v96
  %121 = vmatprep.subr.bf16.mxu0 0
  %122 = vmatpush1.bf16.msra.mxu0 0
  %123 = vmatprep.subr.bf16.mxu0 0
  %124 = vmatpush1.bf16.msra.mxu0 0
  %125 = vmatprep.subr.bf16.mxu0 0
  %126 = vmatpush1.bf16.msra.mxu0 0
  %127 = vmatprep.subr.bf16.mxu0 0
  %128 = vmatpush1.bf16.msra.mxu0 0
  %129 = vmatprep.subr.bf16.mxu0 0
  %130 = vmatpush1.bf16.msra.mxu0 0
  %131 = vmatprep.subr.bf16.mxu0 0
  %132 = vmatpush1.bf16.msra.mxu0 0
  %133 = vmatprep.subr.bf16.mxu0 0
  %134 = vmatpush1.bf16.msra.mxu0 0
  %135 = vmatprep.subr.bf16.mxu0 0
  %136 = vmatpush1.bf16.msra.mxu0 0
  %137 = vmatprep.mubr.bf16.mxu0 0
  %138 = vmatmul.mubr.bf16.gmra.mrb[0].mxu0 %v53
  %v139 = vpop.f32.mrb[0].mxu0
  %v140 = vadd.f32 %v43, %v139
  %v141 = vpop.f32.mrb[0].mxu0
  %v142 = vpop.f32.mrb[0].mxu0
  %v143 = vadd.f32 %v43, %v142
  %v144 = vpop.f32.mrb[0].mxu0
  %145 = vmatprep.mubr.bf16.mxu0 0
  %146 = vmatmul.mubr.bf16.gmra.mrb[0].mxu0 %v54
  %v147 = vpop.f32.mrb[0].mxu0
  %v148 = vadd.f32 %v43, %v147
  %v149 = vpop.f32.mrb[0].mxu0
  %v150 = vpop.f32.mrb[0].mxu0
  %v151 = vadd.f32 %v43, %v150
  %v152 = vpop.f32.mrb[0].mxu0
  %153 = vdwg.mxu0
  %v154 = vld [vmem:[%s3] sm:$0xf]
  %v155 = vld [vmem:[%s3 + $0x4] sm:$0xf]
  %v156 = vld [vmem:[%s3 + $0x8] sm:$0xf]
  %v157 = vld [vmem:[%s3 + $0xc] sm:$0xf]
  %v158 = vunpack.c.l.bf16 %v154
  %v159 = vunpack.c.l.bf16 %v155
  %v160 = vunpack.c.l.bf16 %v156
  %v161 = vunpack.c.l.bf16 %v157
  %v162 = vadd.f32 %v140, %v158
  %v163 = vadd.f32 %v143, %v159
  %v164 = vadd.f32 %v148, %v160
  %v165 = vadd.f32 %v151, %v161
  %v166 = vpack.c.bf16 %v163, %v162
  %v167 = vpack.c.bf16 %v165, %v164
  %v170 = vunpack.c.l.b16 %v166
  %v171 = vunpack.c.h.b16 %v166
  %v172 = vunpack.c.l.b16 %v167
  %v173 = vunpack.c.h.b16 %v167
  %v174 = vpack.c.b16 %v170, %v170
  %v175 = vpack.c.b16 %v171, %v171
  %v176 = vpack.c.b16 %v172, %v172
  %v177 = vpack.c.b16 %v173, %v173
  %182 = vst [vmem:[%s4] sm:$0xf] %v174
  %183 = vst [vmem:[%s4 + $0x4] sm:$0xf] %v175
  %184 = vst [vmem:[%s4 + $0x8] sm:$0xf] %v176
  %185 = vst [vmem:[%s4 + $0xc] sm:$0xf] %v177
  // Predicated region
  $region18: #{image_encoder_forward.16} parent=0 // pred_check
    _
  $region19: #{image_encoder_forward.16} parent=0 // pred_check_branch
    %187 = sbr.rel (0) target = $region21
  $region20: #{image_encoder_forward.16} parent=0 // pred_region
    _
  $region21: #{image_encoder_forward.16} parent=0 // pred_fallthru
    _
  // Predicated region
  $region22: #{image_encoder_forward.16} parent=0 // pred_check
    _
  $region23: #{image_encoder_forward.16} parent=0 // pred_check_branch
    %189 = sbr.rel (0) target = $region25
  $region24: #{image_encoder_forward.16} parent=0 // pred_region
    _
  $region25: #{image_encoder_forward.16} parent=0 // pred_fallthru
    _

// kernel: image_encoder_forward.14
$region0: #{image_encoder_forward.14}
  #allocation0 [shape = 'u32[]', space=smem, size = 0x4, offset = 0x4, fixed_abs, tag = 'smem constant byte address 0x4 - core index']
  #allocation1 [shape = 'u32[144,128]{1,0:T(1,128)}', space=vmem, size = 0x12000, scoped, tag = 'internal scratch']
  #allocation2 [shape = 'bf16[32,128]{1,0:T(16,128)(2,1)}', space=vmem, size = 0x2000, scoped, tag = 'scratch operand']
  %s0 = inlined_call_operand.vmem [shape: bf16[32,128], index: 0, kind: input, shape index: {}]
  %s1 = inlined_call_operand.vmem [shape: bf16[128,384], index: 1, kind: input, shape index: {}]
  %s2 = inlined_call_operand.vmem [shape: f32[1,128], index: 2, kind: input, shape index: {}]
  %s3 = inlined_call_operand.vmem [shape: f32[1,128], index: 3, kind: input, shape index: {}]
  %s4 = inlined_call_operand.vmem [shape: bf16[32,384], index: 4, kind: output, shape index: {}]
  %s5 = sld [smem:[#allocation0]]
  $region30: #{image_encoder_forward.14} parent=0
    _
  %s7 = ssub.s32 1, %s5
  %s8 = scalar_select 0, %s7, %s5
  // Predicated region
  $region2: #{image_encoder_forward.14} parent=0 // pred_check
    _
  $region3: #{image_encoder_forward.14} parent=0 // pred_check_branch
    %10 = sbr.rel (0) target = $region5
  $region4: #{image_encoder_forward.14} parent=0 // pred_region
    _
  $region5: #{image_encoder_forward.14} parent=0 // pred_fallthru
    _
  // Predicated region
  $region6: #{image_encoder_forward.14} parent=0 // pred_check
    _
  $region7: #{image_encoder_forward.14} parent=0 // pred_check_branch
    %12 = sbr.rel (0) target = $region9
  $region8: #{image_encoder_forward.14} parent=0 // pred_region
    _
  $region9: #{image_encoder_forward.14} parent=0 // pred_fallthru
    _
  // Predicated region
  $region10: #{image_encoder_forward.14} parent=0 // pred_check
    _
  $region11: #{image_encoder_forward.14} parent=0 // pred_check_branch
    %14 = sbr.rel (0) target = $region13
  $region12: #{image_encoder_forward.14} parent=0 // pred_region
    _
  $region13: #{image_encoder_forward.14} parent=0 // pred_fallthru
    _
  // Predicated region
  $region14: #{image_encoder_forward.14} parent=0 // pred_check
    _
  $region15: #{image_encoder_forward.14} parent=0 // pred_check_branch
    %16 = sbr.rel (0) target = $region17
  $region16: #{image_encoder_forward.14} parent=0 // pred_region
    _
  $region17: #{image_encoder_forward.14} parent=0 // pred_fallthru
    _
  %p18 = scmp.eq.s32.totalorder 0, 0
  // Predicated region
  $region18: #{image_encoder_forward.14} parent=0 // pred_check
    %p19 = pneg %p18
  $region19: #{image_encoder_forward.14} parent=0 // pred_check_branch
    %21 = sbr.rel (%p19) target = $region21
  $region20: #{image_encoder_forward.14} parent=0 // pred_region
    %v22 = vld [vmem:[%s0] sm:$0xf]
    %v23 = vld [vmem:[%s0 + $0x4] sm:$0xf]
    %v24 = vld [vmem:[%s0 + $0x8] sm:$0xf]
    %v25 = vld [vmem:[%s0 + $0xc] sm:$0xf]
    %v26 = vunpack.c.l.bf16 %v22
    %v27 = vunpack.c.l.bf16 %v23
    %v28 = vunpack.c.l.bf16 %v24
    %v29 = vunpack.c.l.bf16 %v25
    %v30 = vld [vmem:[%s2] sm:$0x1]
    %v31 = vld [vmem:[%s3] sm:$0x1]
    %32 = vadd.xlane.f32.xlu0 %v26
    %v33 = vpop.xlane.xlu0 %32
    %34 = vadd.xlane.f32.xlu0 %v27
    %v35 = vpop.xlane.xlu0 %34
    %36 = vadd.xlane.f32.xlu0 %v28
    %v37 = vpop.xlane.xlu0 %36
    %38 = vadd.xlane.f32.xlu0 %v29
    %v39 = vpop.xlane.xlu0 %38
    %v40 = vrcp.pop 128.0
    %v41 = vmul.f32 %v33, %v40
    %v42 = vmul.f32 %v35, %v40
    %v43 = vmul.f32 %v37, %v40
    %v44 = vmul.f32 %v39, %v40
    %v45 = vsub.f32 %v26, %v41
    %v46 = vsub.f32 %v27, %v42
    %v47 = vsub.f32 %v28, %v43
    %v48 = vsub.f32 %v29, %v44
    %v49 = vmul.f32 %v45, %v45
    %v50 = vmul.f32 %v46, %v46
    %v51 = vmul.f32 %v47, %v47
    %v52 = vmul.f32 %v48, %v48
    %53 = vadd.xlane.f32.xlu0 %v49
    %v54 = vpop.xlane.xlu0 %53
    %55 = vadd.xlane.f32.xlu0 %v50
    %v56 = vpop.xlane.xlu0 %55
    %57 = vadd.xlane.f32.xlu0 %v51
    %v58 = vpop.xlane.xlu0 %57
    %59 = vadd.xlane.f32.xlu0 %v52
    %v60 = vpop.xlane.xlu0 %59
    %v61 = vmul.f32 %v54, %v40
    %v62 = vmul.f32 %v56, %v40
    %v63 = vmul.f32 %v58, %v40
    %v64 = vmul.f32 %v60, %v40
    %v65 = vadd.f32 %v61, 1e-05
    %v66 = vadd.f32 %v62, 1e-05
    %v67 = vadd.f32 %v63, 1e-05
    %v68 = vadd.f32 %v64, 1e-05
    %v69 = vrsqrt.pop %v65
    %v70 = vrsqrt.pop %v66
    %v71 = vrsqrt.pop %v67
    %v72 = vrsqrt.pop %v68
    %v73 = vmul.f32 %v45, %v69
    %v74 = vmul.f32 %v46, %v70
    %v75 = vmul.f32 %v47, %v71
    %v76 = vmul.f32 %v48, %v72
    %v78 = vlaneseq
    %v79 = vshrl.u32 %v78, 7
    %v80 = vsub.s32 0, %v79
    %v81 = vrot.slane %v30, %v80
    %v83 = vmul.f32 %v73, %v81
    %v84 = vmul.f32 %v74, %v81
    %v85 = vmul.f32 %v75, %v81
    %v86 = vmul.f32 %v76, %v81
    %v88 = vlaneseq
    %v89 = vshrl.u32 %v88, 7
    %v90 = vsub.s32 0, %v89
    %v91 = vrot.slane %v31, %v90
    %v93 = vadd.f32 %v83, %v91
    %v94 = vadd.f32 %v84, %v91
    %v95 = vadd.f32 %v85, %v91
    %v96 = vadd.f32 %v86, %v91
    %v97 = vpack.c.bf16 %v94, %v93
    %v98 = vpack.c.bf16 %v96, %v95
    %99 = vst [vmem:[#allocation2] sm:$0xff] %v97
    %100 = vst [vmem:[#allocation2 + $0x8] sm:$0xff] %v98
  $region21: #{image_encoder_forward.14} parent=0 // pred_fallthru
    _
  %v101 = vld [vmem:[#allocation2] sm:$0xff]
  %v102 = vld [vmem:[#allocation2 + $0x8] sm:$0xff]
  %v103 = vld [vmem:[%s1] sm:$0xff]
  %v104 = vld [vmem:[%s1 + $0x8] sm:$0xf]
  %v105 = vld [vmem:[%s1 + $0xc] sm:$0xff]
  %v106 = vld [vmem:[%s1 + $0x14] sm:$0xf]
  %v107 = vld [vmem:[%s1 + $0x18] sm:$0xff]
  %v108 = vld [vmem:[%s1 + $0x20] sm:$0xf]
  %v109 = vld [vmem:[%s1 + $0x24] sm:$0xff]
  %v110 = vld [vmem:[%s1 + $0x2c] sm:$0xf]
  %v111 = vld [vmem:[%s1 + $0x30] sm:$0xff]
  %v112 = vld [vmem:[%s1 + $0x38] sm:$0xf]
  %v113 = vld [vmem:[%s1 + $0x3c] sm:$0xff]
  %v114 = vld [vmem:[%s1 + $0x44] sm:$0xf]
  %v115 = vld [vmem:[%s1 + $0x48] sm:$0xff]
  %v116 = vld [vmem:[%s1 + $0x50] sm:$0xf]
  %v117 = vld [vmem:[%s1 + $0x54] sm:$0xff]
  %v118 = vld [vmem:[%s1 + $0x5c] sm:$0xf]
  %v119 = vld [vmem:[%s1 + $0x60] sm:$0xff]
  %v120 = vld [vmem:[%s1 + $0x68] sm:$0xf]
  %v121 = vld [vmem:[%s1 + $0x6c] sm:$0xff]
  %v122 = vld [vmem:[%s1 + $0x74] sm:$0xf]
  %v123 = vld [vmem:[%s1 + $0x78] sm:$0xff]
  %v124 = vld [vmem:[%s1 + $0x80] sm:$0xf]
  %v125 = vld [vmem:[%s1 + $0x84] sm:$0xff]
  %v126 = vld [vmem:[%s1 + $0x8c] sm:$0xf]
  %v127 = vld [vmem:[%s1 + $0x90] sm:$0xff]
  %v128 = vld [vmem:[%s1 + $0x98] sm:$0xf]
  %v129 = vld [vmem:[%s1 + $0x9c] sm:$0xff]
  %v130 = vld [vmem:[%s1 + $0xa4] sm:$0xf]
  %v131 = vld [vmem:[%s1 + $0xa8] sm:$0xff]
  %v132 = vld [vmem:[%s1 + $0xb0] sm:$0xf]
  %v133 = vld [vmem:[%s1 + $0xb4] sm:$0xff]
  %v134 = vld [vmem:[%s1 + $0xbc] sm:$0xf]
  %v167 = vunpack.c.l.b16 %v103
  %v168 = vunpack.c.h.b16 %v103
  %v169 = vunpack.c.l.b16 %v104
  %v170 = vunpack.c.l.b16 %v105
  %v171 = vunpack.c.h.b16 %v105
  %v172 = vunpack.c.l.b16 %v106
  %v173 = vunpack.c.l.b16 %v107
  %v174 = vunpack.c.h.b16 %v107
  %v175 = vunpack.c.l.b16 %v108
  %v176 = vunpack.c.l.b16 %v109
  %v177 = vunpack.c.h.b16 %v109
  %v178 = vunpack.c.l.b16 %v110
  %v179 = vunpack.c.l.b16 %v111
  %v180 = vunpack.c.h.b16 %v111
  %v181 = vunpack.c.l.b16 %v112
  %v182 = vunpack.c.l.b16 %v113
  %v183 = vunpack.c.h.b16 %v113
  %v184 = vunpack.c.l.b16 %v114
  %v185 = vunpack.c.l.b16 %v115
  %v186 = vunpack.c.h.b16 %v115
  %v187 = vunpack.c.l.b16 %v116
  %v188 = vunpack.c.l.b16 %v117
  %v189 = vunpack.c.h.b16 %v117
  %v190 = vunpack.c.l.b16 %v118
  %v191 = vunpack.c.l.b16 %v119
  %v192 = vunpack.c.h.b16 %v119
  %v193 = vunpack.c.l.b16 %v120
  %v194 = vunpack.c.l.b16 %v121
  %v195 = vunpack.c.h.b16 %v121
  %v196 = vunpack.c.l.b16 %v122
  %v197 = vunpack.c.l.b16 %v123
  %v198 = vunpack.c.h.b16 %v123
  %v199 = vunpack.c.l.b16 %v124
  %v200 = vunpack.c.l.b16 %v125
  %v201 = vunpack.c.h.b16 %v125
  %v202 = vunpack.c.l.b16 %v126
  %v203 = vunpack.c.l.b16 %v127
  %v204 = vunpack.c.h.b16 %v127
  %v205 = vunpack.c.l.b16 %v128
  %v206 = vunpack.c.l.b16 %v129
  %v207 = vunpack.c.h.b16 %v129
  %v208 = vunpack.c.l.b16 %v130
  %v209 = vunpack.c.l.b16 %v131
  %v210 = vunpack.c.h.b16 %v131
  %v211 = vunpack.c.l.b16 %v132
  %v212 = vunpack.c.l.b16 %v133
  %v213 = vunpack.c.h.b16 %v133
  %v214 = vunpack.c.l.b16 %v134
  %v215 = vpack.c.b16 %v170, %v167
  %v216 = vpack.c.b16 %v171, %v168
  %v217 = vpack.c.b16 %v172, %v169
  %v218 = vpack.c.b16 %v176, %v173
  %v219 = vpack.c.b16 %v177, %v174
  %v220 = vpack.c.b16 %v178, %v175
  %v221 = vpack.c.b16 %v182, %v179
  %v222 = vpack.c.b16 %v183, %v180
  %v223 = vpack.c.b16 %v184, %v181
  %v224 = vpack.c.b16 %v188, %v185
  %v225 = vpack.c.b16 %v189, %v186
  %v226 = vpack.c.b16 %v190, %v187
  %v227 = vpack.c.b16 %v194, %v191
  %v228 = vpack.c.b16 %v195, %v192
  %v229 = vpack.c.b16 %v196, %v193
  %v230 = vpack.c.b16 %v200, %v197
  %v231 = vpack.c.b16 %v201, %v198
  %v232 = vpack.c.b16 %v202, %v199
  %v233 = vpack.c.b16 %v206, %v203
  %v234 = vpack.c.b16 %v207, %v204
  %v235 = vpack.c.b16 %v208, %v205
  %v236 = vpack.c.b16 %v212, %v209
  %v237 = vpack.c.b16 %v213, %v210
  %v238 = vpack.c.b16 %v214, %v211
  %263 = vmatprep.subr.bf16.mxu0 %v216
  %264 = vmatpush1.bf16.msra.mxu0 %v215
  %265 = vmatprep.subr.bf16.mxu0 %v219
  %266 = vmatpush1.bf16.msra.mxu0 %v218
  %267 = vmatprep.subr.bf16.mxu0 %v222
  %268 = vmatpush1.bf16.msra.mxu0 %v221
  %269 = vmatprep.subr.bf16.mxu0 %v225
  %270 = vmatpush1.bf16.msra.mxu0 %v224
  %271 = vmatprep.subr.bf16.mxu0 %v228
  %272 = vmatpush1.bf16.msra.mxu0 %v227
  %273 = vmatprep.subr.bf16.mxu0 %v231
  %274 = vmatpush1.bf16.msra.mxu0 %v230
  %275 = vmatprep.subr.bf16.mxu0 %v234
  %276 = vmatpush1.bf16.msra.mxu0 %v233
  %277 = vmatprep.subr.bf16.mxu0 %v237
  %278 = vmatpush1.bf16.msra.mxu0 %v236
  %279 = vmatprep.subr.bf16.mxu0 0
  %280 = vmatpush1.bf16.msra.mxu0 0
  %281 = vmatprep.subr.bf16.mxu0 0
  %282 = vmatpush1.bf16.msra.mxu0 0
  %283 = vmatprep.subr.bf16.mxu0 0
  %284 = vmatpush1.bf16.msra.mxu0 0
  %285 = vmatprep.subr.bf16.mxu0 0
  %286 = vmatpush1.bf16.msra.mxu0 0
  %287 = vmatprep.subr.bf16.mxu0 0
  %288 = vmatpush1.bf16.msra.mxu0 0
  %289 = vmatprep.subr.bf16.mxu0 0
  %290 = vmatpush1.bf16.msra.mxu0 0
  %291 = vmatprep.subr.bf16.mxu0 0
  %292 = vmatpush1.bf16.msra.mxu0 0
  %293 = vmatprep.subr.bf16.mxu0 0
  %294 = vmatpush1.bf16.msra.mxu0 0
  %295 = vmatprep.mubr.bf16.mxu0 0
  %296 = vmatmul.mubr.bf16.gmra.mrb[0].mxu0 %v101
  %v297 = vpop.f32.mrb[0].mxu0
  %v298 = vadd.f32 0.0, %v297
  %v299 = vpop.f32.mrb[0].mxu0
  %v300 = vadd.f32 0.0, %v299
  %v301 = vpop.f32.mrb[0].mxu0
  %v302 = vadd.f32 0.0, %v301
  %v303 = vpop.f32.mrb[0].mxu0
  %v304 = vadd.f32 0.0, %v303
  %305 = vmatprep.mubr.bf16.mxu0 0
  %306 = vmatmul.mubr.bf16.gmra.mrb[0].mxu0 %v102
  %v307 = vpop.f32.mrb[0].mxu0
  %v308 = vadd.f32 0.0, %v307
  %v309 = vpop.f32.mrb[0].mxu0
  %v310 = vadd.f32 0.0, %v309
  %v311 = vpop.f32.mrb[0].mxu0
  %v312 = vadd.f32 0.0, %v311
  %v313 = vpop.f32.mrb[0].mxu0
  %v314 = vadd.f32 0.0, %v313
  %315 = vdwg.mxu0
  %316 = vmatprep.subr.bf16.mxu0 0
  %317 = vmatpush1.bf16.msra.mxu0 %v217
  %318 = vmatprep.subr.bf16.mxu0 0
  %319 = vmatpush1.bf16.msra.mxu0 %v220
  %320 = vmatprep.subr.bf16.mxu0 0
  %321 = vmatpush1.bf16.msra.mxu0 %v223
  %322 = vmatprep.subr.bf16.mxu0 0
  %323 = vmatpush1.bf16.msra.mxu0 %v226
  %324 = vmatprep.subr.bf16.mxu0 0
  %325 = vmatpush1.bf16.msra.mxu0 %v229
  %326 = vmatprep.subr.bf16.mxu0 0
  %327 = vmatpush1.bf16.msra.mxu0 %v232
  %328 = vmatprep.subr.bf16.mxu0 0
  %329 = vmatpush1.bf16.msra.mxu0 %v235
  %330 = vmatprep.subr.bf16.mxu0 0
  %331 = vmatpush1.bf16.msra.mxu0 %v238
  %332 = vmatprep.subr.bf16.mxu0 0
  %333 = vmatpush1.bf16.msra.mxu0 0
  %334 = vmatprep.subr.bf16.mxu0 0
  %335 = vmatpush1.bf16.msra.mxu0 0
  %336 = vmatprep.subr.bf16.mxu0 0
  %337 = vmatpush1.bf16.msra.mxu0 0
  %338 = vmatprep.subr.bf16.mxu0 0
  %339 = vmatpush1.bf16.msra.mxu0 0
  %340 = vmatprep.subr.bf16.mxu0 0
  %341 = vmatpush1.bf16.msra.mxu0 0
  %342 = vmatprep.subr.bf16.mxu0 0
  %343 = vmatpush1.bf16.msra.mxu0 0
  %344 = vmatprep.subr.bf16.mxu0 0
  %345 = vmatpush1.bf16.msra.mxu0 0
  %346 = vmatprep.subr.bf16.mxu0 0
  %347 = vmatpush1.bf16.msra.mxu0 0
  %348 = vmatprep.mubr.bf16.mxu0 0
  %349 = vmatmul.mubr.bf16.gmra.mrb[0].mxu0 %v101
  %v350 = vpop.f32.mrb[0].mxu0
  %v351 = vadd.f32 0.0, %v350
  %v352 = vpop.f32.mrb[0].mxu0
  %v353 = vpop.f32.mrb[0].mxu0
  %v354 = vadd.f32 0.0, %v353
  %v355 = vpop.f32.mrb[0].mxu0
  %356 = vmatprep.mubr.bf16.mxu0 0
  %357 = vmatmul.mubr.bf16.gmra.mrb[0].mxu0 %v102
  %v358 = vpop.f32.mrb[0].mxu0
  %v359 = vadd.f32 0.0, %v358
  %v360 = vpop.f32.mrb[0].mxu0
  %v361 = vpop.f32.mrb[0].mxu0
  %v362 = vadd.f32 0.0, %v361
  %v363 = vpop.f32.mrb[0].mxu0
  %364 = vdwg.mxu0
  %v365 = vpack.c.bf16 %v302, %v298
  %v366 = vpack.c.bf16 %v304, %v300
  %v367 = vpack.c.bf16 %v354, %v351
  %v368 = vpack.c.bf16 %v312, %v308
  %v369 = vpack.c.bf16 %v314, %v310
  %v370 = vpack.c.bf16 %v362, %v359
  %v377 = vunpack.c.l.b16 %v365
  %v378 = vunpack.c.l.b16 %v366
  %v379 = vunpack.c.l.b16 %v367
  %v380 = vunpack.c.h.b16 %v365
  %v381 = vunpack.c.h.b16 %v366
  %v382 = vunpack.c.h.b16 %v367
  %v383 = vunpack.c.l.b16 %v368
  %v384 = vunpack.c.l.b16 %v369
  %v385 = vunpack.c.l.b16 %v370
  %v386 = vunpack.c.h.b16 %v368
  %v387 = vunpack.c.h.b16 %v369
  %v388 = vunpack.c.h.b16 %v370
  %v389 = vpack.c.b16 %v378, %v377
  %v390 = vpack.c.b16 %v379, %v379
  %v391 = vpack.c.b16 %v381, %v380
  %v392 = vpack.c.b16 %v382, %v382
  %v393 = vpack.c.b16 %v384, %v383
  %v394 = vpack.c.b16 %v385, %v385
  %v395 = vpack.c.b16 %v387, %v386
  %v396 = vpack.c.b16 %v388, %v388
  %405 = vst [vmem:[%s4] sm:$0xff] %v389
  %406 = vst [vmem:[%s4 + $0x8] sm:$0xf] %v390
  %407 = vst [vmem:[%s4 + $0xc] sm:$0xff] %v391
  %408 = vst [vmem:[%s4 + $0x14] sm:$0xf] %v392
  %409 = vst [vmem:[%s4 + $0x18] sm:$0xff] %v393
  %410 = vst [vmem:[%s4 + $0x20] sm:$0xf] %v394
  %411 = vst [vmem:[%s4 + $0x24] sm:$0xff] %v395
  %412 = vst [vmem:[%s4 + $0x2c] sm:$0xf] %v396
  // Predicated region
  $region22: #{image_encoder_forward.14} parent=0 // pred_check
    _
  $region23: #{image_encoder_forward.14} parent=0 // pred_check_branch
    %414 = sbr.rel (0) target = $region25
  $region24: #{image_encoder_forward.14} parent=0 // pred_region
    _
  $region25: #{image_encoder_forward.14} parent=0 // pred_fallthru
    _
  // Predicated region
  $region26: #{image_encoder_forward.14} parent=0 // pred_check
    _
  $region27: #{image_encoder_forward.14} parent=0 // pred_check_branch
    %416 = sbr.rel (0) target = $region29
  $region28: #{image_encoder_forward.14} parent=0 // pred_region
    _
  $region29: #{image_encoder_forward.14} parent=0 // pred_fallthru
    _

// kernel: image_encoder_forward.15
$region0: #{image_encoder_forward.15}
  #allocation0 [shape = 'u32[]', space=smem, size = 0x4, offset = 0x4, fixed_abs, tag = 'smem constant byte address 0x4 - core index']
  #allocation1 [shape = 'u32[144,128]{1,0:T(1,128)}', space=vmem, size = 0x12000, scoped, tag = 'internal scratch']
  #allocation2 [shape = 'f32[4,16,1]{2,1,0:T(8,128)}', space=vmem, size = 0x8000, scoped, tag = 'scratch operand']
  #allocation3 [shape = 'f32[4,16,1]{2,1,0:T(8,128)}', space=vmem, size = 0x8000, scoped, tag = 'scratch operand']
  #allocation4 [shape = 'f32[4,16,32]{2,1,0:T(8,128)}', space=vmem, size = 0x8000, scoped, tag = 'scratch operand']
  %s0 = inlined_call_operand.vmem [shape: bf16[2,16,384], index: 0, kind: input, shape index: {}, may-alias: {0,1,2}]
  %s1 = inlined_call_operand.vmem [shape: bf16[2,16,384], index: 1, kind: input, shape index: {}, may-alias: {0,1,2}]
  %s2 = inlined_call_operand.vmem [shape: bf16[2,16,384], index: 2, kind: input, shape index: {}, may-alias: {0,1,2}]
  %s3 = inlined_call_operand.vmem [shape: bf16[2,16,128], index: 3, kind: output, shape index: {}]
  %s4 = sld [smem:[#allocation0]]
  $region176: #{image_encoder_forward.15} parent=0
    _
  %s6 = ssub.s32 1, %s4
  %s7 = scalar_select 0, %s6, %s4
  $region1: #{image_encoder_forward.15} parent=0
    #allocation5 [shape = 'u8[8192]{0}', space=vmem, size = 0x2000, scoped, tag = 'input window, operand 0']
    #allocation6 [shape = 'u8[8192]{0}', space=vmem, size = 0x2000, scoped, tag = 'input window, operand 1']
    #allocation7 [shape = 'u8[8192]{0}', space=vmem, size = 0x2000, scoped, tag = 'input window, operand 2']
    loop: start=0, step=1, limit=4
    $region2: #{image_encoder_forward.15} parent=1 // loop_pre_header
      _
    $region3: #{image_encoder_forward.15} parent=1 // loop_header
      %s9 = sphi 0, %s13
      %p10 = scmp.ge.s32.totalorder %s9, 4
      %s16 = sphi 0, %s35
      %s17 = sphi 0, %s31
      %s18 = sphi 0, %s27
      %s19 = sphi 0, %s16
      %s20 = sphi 0, %s17
      %s21 = sphi 0, %s18
      %s22 = sphi 0, %s19
      %s23 = sphi 0, %s20
      %s24 = sphi 0, %s21
      %s40 = sphi 0, %s42
      %s43 = sphi 0, %s40
      %s44 = sphi 0, %s43
      %s60 = sphi 0, %s44
      %s68 = sphi 0, %s70
      %s71 = sphi 0, %s68
      %s72 = sphi 0, %s71
      %s88 = sphi 0, %s72
      %s96 = sphi 0, %s98
      %s99 = sphi 0, %s96
      %s100 = sphi 0, %s99
      %s116 = sphi 0, %s100
      %s124 = sphi 0, %s126
      %s127 = sphi 0, %s124
      %s128 = sphi 0, %s127
      %s144 = sphi 0, %s128
    $region4: #{image_encoder_forward.15} parent=1 // loop_header_branch
      %12 = sbr.rel (%p10) target = $region8
    $region5: #{image_encoder_forward.15} parent=1 // loop_body
      %s14 = ssub.s32 %s9, 1
      %s15 = ssub.s32 %s9, 2
      %s25 = sadd.s32 1, %s18
      %p26 = scmp.ge.s32.totalorder %s25, 1
      %s27 = scalar_select %p26, 0, %s25
      %s28 = sadd.s32 1, %s17
      %s29 = scalar_select %p26, %s28, %s17
      %p30 = scmp.ge.s32.totalorder %s29, 1
      %s31 = scalar_select %p30, 0, %s29
      %s32 = sadd.s32 1, %s16
      %s33 = scalar_select %p30, %s32, %s16
      %p34 = scmp.ge.s32.totalorder %s33, 2
      %s35 = scalar_select %p34, 0, %s33
      %s36 = ssub.s32 %s16, %s35
      %s37 = ssub.s32 %s17, %s31
      %s38 = sor.u32 %s36, %s37
      %p39 = scmp.eq.s32.totalorder %s38, 0
      %s41 = sadd.s32 %s40, 1
      %s42 = scalar_select %p39, %s40, %s41
      %p45 = pneg %p39
      %p46 = scmp.eq.s32.totalorder %s9, 1
      %p47 = por %p45, %p46
      %p48 = scmp.ne.s32.totalorder %s40, %s43
      %p49 = scmp.eq.s32.totalorder %s9, 0
      %p50 = por %p48, %p49
      %p51 = scmp.ne.s32.totalorder %s40, %s43
      %p52 = scmp.eq.s32.totalorder %s14, 1
      %p53 = por %p51, %p52
      %p54 = scmp.ne.s32.totalorder %s43, %s44
      %p55 = scmp.eq.s32.totalorder %s14, 0
      %p56 = por %p54, %p55
      %p57 = scmp.ne.s32.totalorder %s43, %s44
      %p58 = scmp.eq.s32.totalorder %s15, 1
      %p59 = por %p57, %p58
      %p61 = scmp.ne.s32.totalorder %s44, %s60
      %p62 = scmp.eq.s32.totalorder %s15, 0
      %p63 = por %p61, %p62
      %s64 = ssub.s32 %s16, %s35
      %s65 = ssub.s32 %s18, %s27
      %s66 = sor.u32 %s64, %s65
      %p67 = scmp.eq.s32.totalorder %s66, 0
      %s69 = sadd.s32 %s68, 1
      %s70 = scalar_select %p67, %s68, %s69
      %p73 = pneg %p67
      %p74 = scmp.eq.s32.totalorder %s9, 1
      %p75 = por %p73, %p74
      %p76 = scmp.ne.s32.totalorder %s68, %s71
      %p77 = scmp.eq.s32.totalorder %s9, 0
      %p78 = por %p76, %p77
      %p79 = scmp.ne.s32.totalorder %s68, %s71
      %p80 = scmp.eq.s32.totalorder %s14, 1
      %p81 = por %p79, %p80
      %p82 = scmp.ne.s32.totalorder %s71, %s72
      %p83 = scmp.eq.s32.totalorder %s14, 0
      %p84 = por %p82, %p83
      %p85 = scmp.ne.s32.totalorder %s71, %s72
      %p86 = scmp.eq.s32.totalorder %s15, 1
      %p87 = por %p85, %p86
      %p89 = scmp.ne.s32.totalorder %s72, %s88
      %p90 = scmp.eq.s32.totalorder %s15, 0
      %p91 = por %p89, %p90
      %s92 = ssub.s32 %s16, %s35
      %s93 = ssub.s32 %s18, %s27
      %s94 = sor.u32 %s92, %s93
      %p95 = scmp.eq.s32.totalorder %s94, 0
      %s97 = sadd.s32 %s96, 1
      %s98 = scalar_select %p95, %s96, %s97
      %p101 = pneg %p95
      %p102 = scmp.eq.s32.totalorder %s9, 1
      %p103 = por %p101, %p102
      %p104 = scmp.ne.s32.totalorder %s96, %s99
      %p105 = scmp.eq.s32.totalorder %s9, 0
      %p106 = por %p104, %p105
      %p107 = scmp.ne.s32.totalorder %s96, %s99
      %p108 = scmp.eq.s32.totalorder %s14, 1
      %p109 = por %p107, %p108
      %p110 = scmp.ne.s32.totalorder %s99, %s100
      %p111 = scmp.eq.s32.totalorder %s14, 0
      %p112 = por %p110, %p111
      %p113 = scmp.ne.s32.totalorder %s99, %s100
      %p114 = scmp.eq.s32.totalorder %s15, 1
      %p115 = por %p113, %p114
      %p117 = scmp.ne.s32.totalorder %s100, %s116
      %p118 = scmp.eq.s32.totalorder %s15, 0
      %p119 = por %p117, %p118
      %s120 = ssub.s32 %s16, %s35
      %s121 = ssub.s32 %s17, %s31
      %s122 = sor.u32 %s120, %s121
      %p123 = scmp.eq.s32.totalorder %s122, 0
      %s125 = sadd.s32 %s124, 1
      %s126 = scalar_select %p123, %s124, %s125
      %p129 = pneg %p123
      %p130 = scmp.eq.s32.totalorder %s9, 1
      %p131 = por %p129, %p130
      %p132 = scmp.ne.s32.totalorder %s124, %s127
      %p133 = scmp.eq.s32.totalorder %s9, 0
      %p134 = por %p132, %p133
      %p135 = scmp.ne.s32.totalorder %s124, %s127
      %p136 = scmp.eq.s32.totalorder %s14, 1
      %p137 = por %p135, %p136
      %p138 = scmp.ne.s32.totalorder %s127, %s128
      %p139 = scmp.eq.s32.totalorder %s14, 0
      %p140 = por %p138, %p139
      %p141 = scmp.ne.s32.totalorder %s127, %s128
      %p142 = scmp.eq.s32.totalorder %s15, 1
      %p143 = por %p141, %p142
      %p145 = scmp.ne.s32.totalorder %s128, %s144
      %p146 = scmp.eq.s32.totalorder %s15, 0
      %p147 = por %p145, %p146
      %p148 = scmp.le.s32.totalorder 1, %s9
      %p149 = scmp.lt.s32.totalorder %s9, 3
      %p150 = pnand %p148, %p149
      %p151 = pneg %p150
      // Predicated region
      $region9: #{image_encoder_forward.15} parent=5 // pred_check
        _
      $region10: #{image_encoder_forward.15} parent=5 // pred_check_branch
        %153 = sbr.rel (%p150) target = $region12
      $region11: #{image_encoder_forward.15} parent=5 // pred_region
        %s154 = ssub.s32 %s9, 1
      $region12: #{image_encoder_forward.15} parent=5 // pred_fallthru
        _
      %p155 = scmp.lt.s32.totalorder %s9, 2
      // Predicated region
      $region13: #{image_encoder_forward.15} parent=5 // pred_check
        %p156 = pneg %p155
      $region14: #{image_encoder_forward.15} parent=5 // pred_check_branch
        %158 = sbr.rel (%p156) target = $region16
      $region15: #{image_encoder_forward.15} parent=5 // pred_region
        // Predicated region
        $region17: #{image_encoder_forward.15} parent=15 // pred_check
          %p159 = pneg %p50
        $region18: #{image_encoder_forward.15} parent=15 // pred_check_branch
          %161 = sbr.rel (%p159) target = $region20
        $region19: #{image_encoder_forward.15} parent=15 // pred_region
          %s162 = sand.u32 %s40, 1
          %s163 = sand.u32 %s40, 1
          %s164 = smul.addr %s163, 8
          %s165 = scalar_lea.vmem [#allocation5], %s164
          %s166 = smul.u32 2, %s17
          %s167 = smul.addr %s166, 3
          %s168 = smul.addr %s16, 6
          %s169 = sadd.s32 %s167, %s168
          %s170 = smul.addr %s169, 4
          %s171 = scalar_lea.vmem %s0, %s170
          // Predicated region
          $region21: #{image_encoder_forward.15} parent=19 // pred_check
            _
          $region22: #{image_encoder_forward.15} parent=19 // pred_check_branch
            %173 = sbr.rel (0) target = $region24
          $region23: #{image_encoder_forward.15} parent=19 // pred_region
            // Predicated region
            $region25: #{image_encoder_forward.15} parent=23 // pred_check
              _
            $region26: #{image_encoder_forward.15} parent=23 // pred_check_branch
              %175 = sbr.rel target = $region28
            $region27: #{image_encoder_forward.15} parent=23 // pred_region
              // Predicated region
              $region40: #{image_encoder_forward.15} parent=27 // pred_check
                _
              $region41: #{image_encoder_forward.15} parent=27 // pred_check_branch
                %192 = sbr.rel (0) target = $region43
              $region42: #{image_encoder_forward.15} parent=27 // pred_region
                loop: start=0, step=1, limit=1
                $region44: #{image_encoder_forward.15} parent=42 // loop_pre_header
                  _
                $region45: #{image_encoder_forward.15} parent=42 // loop_header
                  %s194 = sphi 0, %s198
                  %p195 = scmp.ge.s32.totalorder %s194, 1
                  %s199 = sphi %s171, %s171
                  %s200 = sphi %s165, %s165
                $region46: #{image_encoder_forward.15} parent=42 // loop_header_branch
                  %197 = sbr.rel (%p195) target = $region50
                $region47: #{image_encoder_forward.15} parent=42 // loop_body
                  _
                $region48: #{image_encoder_forward.15} parent=42 // loop_footer
                  %s198 = sadd.s32 1, %s194
                $region49: #{image_encoder_forward.15} parent=42 // loop_footer_branch
                  %193 = sbr.rel target = $region45
                $region50: #{image_encoder_forward.15} parent=42 // loop_exit
                  _
                loop: start=0, step=1, limit=1
                $region51: #{image_encoder_forward.15} parent=42 // loop_pre_header
                  _
                $region52: #{image_encoder_forward.15} parent=42 // loop_header
                  %s203 = sphi 0, %s207
                  %p204 = scmp.ge.s32.totalorder %s203, 1
                  %s208 = sphi %s171, %s171
                  %s209 = sphi %s165, %s165
                $region53: #{image_encoder_forward.15} parent=42 // loop_header_branch
                  %206 = sbr.rel (%p204) target = $region57
                $region54: #{image_encoder_forward.15} parent=42 // loop_body
                  %v210 = vld [vmem:[%s208] sm:$0xf]
                  %211 = vst [vmem:[%s209] sm:$0xf] %v210
                  %v212 = vld [vmem:[%s208 + $0xc] sm:$0xf]
                  %213 = vst [vmem:[%s209 + $0x4] sm:$0xf] %v212
                $region55: #{image_encoder_forward.15} parent=42 // loop_footer
                  %s207 = sadd.s32 1, %s203
                $region56: #{image_encoder_forward.15} parent=42 // loop_footer_branch
                  %202 = sbr.rel target = $region52
                $region57: #{image_encoder_forward.15} parent=42 // loop_exit
                  _
              $region43: #{image_encoder_forward.15} parent=27 // pred_fallthru
                _
            $region28: #{image_encoder_forward.15} parent=23 // pred_fallthru
              _
            // Predicated region
            $region29: #{image_encoder_forward.15} parent=23 // pred_check
              _
            $region30: #{image_encoder_forward.15} parent=23 // pred_check_branch
              %177 = sbr.rel (0) target = $region32
            $region31: #{image_encoder_forward.15} parent=23 // pred_region
              loop: start=0, step=1, limit=1
              $region33: #{image_encoder_forward.15} parent=31 // loop_pre_header
                _
              $region34: #{image_encoder_forward.15} parent=31 // loop_header
                %s180 = sphi 0, %s184
                %p181 = scmp.ge.s32.totalorder %s180, 1
                %s185 = sphi %s171, %s171
                %s186 = sphi %s165, %s165
              $region35: #{image_encoder_forward.15} parent=31 // loop_header_branch
                %183 = sbr.rel (%p181) target = $region39
              $region36: #{image_encoder_forward.15} parent=31 // loop_body
                %v187 = vld [vmem:[%s185] sm:$0xf]
                %188 = vst [vmem:[%s186] sm:$0xf] %v187
                %v189 = vld [vmem:[%s185 + $0xc] sm:$0xf]
                %190 = vst [vmem:[%s186 + $0x4] sm:$0xf] %v189
              $region37: #{image_encoder_forward.15} parent=31 // loop_footer
                %s184 = sadd.s32 1, %s180
              $region38: #{image_encoder_forward.15} parent=31 // loop_footer_branch
                %179 = sbr.rel target = $region34
              $region39: #{image_encoder_forward.15} parent=31 // loop_exit
                _
            $region32: #{image_encoder_forward.15} parent=23 // pred_fallthru
              _
          $region24: #{image_encoder_forward.15} parent=19 // pred_fallthru
            _
          %214 = vnop
        $region20: #{image_encoder_forward.15} parent=15 // pred_fallthru
          _
        // Predicated region
        $region58: #{image_encoder_forward.15} parent=15 // pred_check
          %p215 = pneg %p78
        $region59: #{image_encoder_forward.15} parent=15 // pred_check_branch
          %217 = sbr.rel (%p215) target = $region61
        $region60: #{image_encoder_forward.15} parent=15 // pred_region
          %s218 = sand.u32 %s68, 1
          %s219 = sand.u32 %s68, 1
          %s220 = smul.addr %s219, 8
          %s221 = scalar_lea.vmem [#allocation6], %s220
          %s222 = smul.u32 2, %s18
          %s223 = smul.addr %s222, 3
          %s224 = sadd.s32 1, %s223
          %s225 = smul.addr %s16, 6
          %s226 = sadd.s32 %s224, %s225
          %s227 = smul.addr %s226, 4
          %s228 = scalar_lea.vmem %s1, %s227
          // Predicated region
          $region62: #{image_encoder_forward.15} parent=60 // pred_check
            _
          $region63: #{image_encoder_forward.15} parent=60 // pred_check_branch
            %230 = sbr.rel (0) target = $region65
          $region64: #{image_encoder_forward.15} parent=60 // pred_region
            // Predicated region
            $region66: #{image_encoder_forward.15} parent=64 // pred_check
              _
            $region67: #{image_encoder_forward.15} parent=64 // pred_check_branch
              %232 = sbr.rel target = $region69
            $region68: #{image_encoder_forward.15} parent=64 // pred_region
              // Predicated region
              $region81: #{image_encoder_forward.15} parent=68 // pred_check
                _
              $region82: #{image_encoder_forward.15} parent=68 // pred_check_branch
                %249 = sbr.rel (0) target = $region84
              $region83: #{image_encoder_forward.15} parent=68 // pred_region
                loop: start=0, step=1, limit=1
                $region85: #{image_encoder_forward.15} parent=83 // loop_pre_header
                  _
                $region86: #{image_encoder_forward.15} parent=83 // loop_header
                  %s251 = sphi 0, %s255
                  %p252 = scmp.ge.s32.totalorder %s251, 1
                  %s256 = sphi %s228, %s228
                  %s257 = sphi %s221, %s221
                $region87: #{image_encoder_forward.15} parent=83 // loop_header_branch
                  %254 = sbr.rel (%p252) target = $region91
                $region88: #{image_encoder_forward.15} parent=83 // loop_body
                  _
                $region89: #{image_encoder_forward.15} parent=83 // loop_footer
                  %s255 = sadd.s32 1, %s251
                $region90: #{image_encoder_forward.15} parent=83 // loop_footer_branch
                  %250 = sbr.rel target = $region86
                $region91: #{image_encoder_forward.15} parent=83 // loop_exit
                  _
                loop: start=0, step=1, limit=1
                $region92: #{image_encoder_forward.15} parent=83 // loop_pre_header
                  _
                $region93: #{image_encoder_forward.15} parent=83 // loop_header
                  %s260 = sphi 0, %s264
                  %p261 = scmp.ge.s32.totalorder %s260, 1
                  %s265 = sphi %s228, %s228
                  %s266 = sphi %s221, %s221
                $region94: #{image_encoder_forward.15} parent=83 // loop_header_branch
                  %263 = sbr.rel (%p261) target = $region98
                $region95: #{image_encoder_forward.15} parent=83 // loop_body
                  %v267 = vld [vmem:[%s265] sm:$0xf]
                  %268 = vst [vmem:[%s266] sm:$0xf] %v267
                  %v269 = vld [vmem:[%s265 + $0xc] sm:$0xf]
                  %270 = vst [vmem:[%s266 + $0x4] sm:$0xf] %v269
                $region96: #{image_encoder_forward.15} parent=83 // loop_footer
                  %s264 = sadd.s32 1, %s260
                $region97: #{image_encoder_forward.15} parent=83 // loop_footer_branch
                  %259 = sbr.rel target = $region93
                $region98: #{image_encoder_forward.15} parent=83 // loop_exit
                  _
              $region84: #{image_encoder_forward.15} parent=68 // pred_fallthru
                _
            $region69: #{image_encoder_forward.15} parent=64 // pred_fallthru
              _
            // Predicated region
            $region70: #{image_encoder_forward.15} parent=64 // pred_check
              _
            $region71: #{image_encoder_forward.15} parent=64 // pred_check_branch
              %234 = sbr.rel (0) target = $region73
            $region72: #{image_encoder_forward.15} parent=64 // pred_region
              loop: start=0, step=1, limit=1
              $region74: #{image_encoder_forward.15} parent=72 // loop_pre_header
                _
              $region75: #{image_encoder_forward.15} parent=72 // loop_header
                %s237 = sphi 0, %s241
                %p238 = scmp.ge.s32.totalorder %s237, 1
                %s242 = sphi %s228, %s228
                %s243 = sphi %s221, %s221
              $region76: #{image_encoder_forward.15} parent=72 // loop_header_branch
                %240 = sbr.rel (%p238) target = $region80
              $region77: #{image_encoder_forward.15} parent=72 // loop_body
                %v244 = vld [vmem:[%s242] sm:$0xf]
                %245 = vst [vmem:[%s243] sm:$0xf] %v244
                %v246 = vld [vmem:[%s242 + $0xc] sm:$0xf]
                %247 = vst [vmem:[%s243 + $0x4] sm:$0xf] %v246
              $region78: #{image_encoder_forward.15} parent=72 // loop_footer
                %s241 = sadd.s32 1, %s237
              $region79: #{image_encoder_forward.15} parent=72 // loop_footer_branch
                %236 = sbr.rel target = $region75
              $region80: #{image_encoder_forward.15} parent=72 // loop_exit
                _
            $region73: #{image_encoder_forward.15} parent=64 // pred_fallthru
              _
          $region65: #{image_encoder_forward.15} parent=60 // pred_fallthru
            _
          %271 = vnop
        $region61: #{image_encoder_forward.15} parent=15 // pred_fallthru
          _
        // Predicated region
        $region99: #{image_encoder_forward.15} parent=15 // pred_check
          %p272 = pneg %p106
        $region100: #{image_encoder_forward.15} parent=15 // pred_check_branch
          %274 = sbr.rel (%p272) target = $region102
        $region101: #{image_encoder_forward.15} parent=15 // pred_region
          %s275 = sand.u32 %s96, 1
          %s276 = sand.u32 %s96, 1
          %s277 = smul.addr %s276, 8
          %s278 = scalar_lea.vmem [#allocation7], %s277
          %s279 = smul.u32 2, %s18
          %s280 = smul.addr %s279, 3
          %s281 = sadd.s32 2, %s280
          %s282 = smul.addr %s16, 6
          %s283 = sadd.s32 %s281, %s282
          %s284 = smul.addr %s283, 4
          %s285 = scalar_lea.vmem %s2, %s284
          // Predicated region
          $region103: #{image_encoder_forward.15} parent=101 // pred_check
            _
          $region104: #{image_encoder_forward.15} parent=101 // pred_check_branch
            %287 = sbr.rel (0) target = $region106
          $region105: #{image_encoder_forward.15} parent=101 // pred_region
            // Predicated region
            $region107: #{image_encoder_forward.15} parent=105 // pred_check
              _
            $region108: #{image_encoder_forward.15} parent=105 // pred_check_branch
              %289 = sbr.rel target = $region110
            $region109: #{image_encoder_forward.15} parent=105 // pred_region
              // Predicated region
              $region122: #{image_encoder_forward.15} parent=109 // pred_check
                _
              $region123: #{image_encoder_forward.15} parent=109 // pred_check_branch
                %306 = sbr.rel (0) target = $region125
              $region124: #{image_encoder_forward.15} parent=109 // pred_region
                loop: start=0, step=1, limit=1
                $region126: #{image_encoder_forward.15} parent=124 // loop_pre_header
                  _
                $region127: #{image_encoder_forward.15} parent=124 // loop_header
                  %s308 = sphi 0, %s312
                  %p309 = scmp.ge.s32.totalorder %s308, 1
                  %s313 = sphi %s285, %s285
                  %s314 = sphi %s278, %s278
                $region128: #{image_encoder_forward.15} parent=124 // loop_header_branch
                  %311 = sbr.rel (%p309) target = $region132
                $region129: #{image_encoder_forward.15} parent=124 // loop_body
                  _
                $region130: #{image_encoder_forward.15} parent=124 // loop_footer
                  %s312 = sadd.s32 1, %s308
                $region131: #{image_encoder_forward.15} parent=124 // loop_footer_branch
                  %307 = sbr.rel target = $region127
                $region132: #{image_encoder_forward.15} parent=124 // loop_exit
                  _
                loop: start=0, step=1, limit=1
                $region133: #{image_encoder_forward.15} parent=124 // loop_pre_header
                  _
                $region134: #{image_encoder_forward.15} parent=124 // loop_header
                  %s317 = sphi 0, %s321
                  %p318 = scmp.ge.s32.totalorder %s317, 1
                  %s322 = sphi %s285, %s285
                  %s323 = sphi %s278, %s278
                $region135: #{image_encoder_forward.15} parent=124 // loop_header_branch
                  %320 = sbr.rel (%p318) target = $region139
                $region136: #{image_encoder_forward.15} parent=124 // loop_body
                  %v324 = vld [vmem:[%s322] sm:$0xf]
                  %325 = vst [vmem:[%s323] sm:$0xf] %v324
                  %v326 = vld [vmem:[%s322 + $0xc] sm:$0xf]
                  %327 = vst [vmem:[%s323 + $0x4] sm:$0xf] %v326
                $region137: #{image_encoder_forward.15} parent=124 // loop_footer
                  %s321 = sadd.s32 1, %s317
                $region138: #{image_encoder_forward.15} parent=124 // loop_footer_branch
                  %316 = sbr.rel target = $region134
                $region139: #{image_encoder_forward.15} parent=124 // loop_exit
                  _
              $region125: #{image_encoder_forward.15} parent=109 // pred_fallthru
                _
            $region110: #{image_encoder_forward.15} parent=105 // pred_fallthru
              _
            // Predicated region
            $region111: #{image_encoder_forward.15} parent=105 // pred_check
              _
            $region112: #{image_encoder_forward.15} parent=105 // pred_check_branch
              %291 = sbr.rel (0) target = $region114
            $region113: #{image_encoder_forward.15} parent=105 // pred_region
              loop: start=0, step=1, limit=1
              $region115: #{image_encoder_forward.15} parent=113 // loop_pre_header
                _
              $region116: #{image_encoder_forward.15} parent=113 // loop_header
                %s294 = sphi 0, %s298
                %p295 = scmp.ge.s32.totalorder %s294, 1
                %s299 = sphi %s285, %s285
                %s300 = sphi %s278, %s278
              $region117: #{image_encoder_forward.15} parent=113 // loop_header_branch
                %297 = sbr.rel (%p295) target = $region121
              $region118: #{image_encoder_forward.15} parent=113 // loop_body
                %v301 = vld [vmem:[%s299] sm:$0xf]
                %302 = vst [vmem:[%s300] sm:$0xf] %v301
                %v303 = vld [vmem:[%s299 + $0xc] sm:$0xf]
                %304 = vst [vmem:[%s300 + $0x4] sm:$0xf] %v303
              $region119: #{image_encoder_forward.15} parent=113 // loop_footer
                %s298 = sadd.s32 1, %s294
              $region120: #{image_encoder_forward.15} parent=113 // loop_footer_branch
                %293 = sbr.rel target = $region116
              $region121: #{image_encoder_forward.15} parent=113 // loop_exit
                _
            $region114: #{image_encoder_forward.15} parent=105 // pred_fallthru
              _
          $region106: #{image_encoder_forward.15} parent=101 // pred_fallthru
            _
          %328 = vnop
        $region102: #{image_encoder_forward.15} parent=15 // pred_fallthru
          _
      $region16: #{image_encoder_forward.15} parent=5 // pred_fallthru
        _
      %p329 = scmp.le.s32.totalorder 1, %s9
      %p330 = scmp.lt.s32.totalorder %s9, 3
      %p331 = pnand %p329, %p330
      %p332 = pneg %p331
      // Predicated region
      $region140: #{image_encoder_forward.15} parent=5 // pred_check
        _
      $region141: #{image_encoder_forward.15} parent=5 // pred_check_branch
        %334 = sbr.rel (%p331) target = $region143
      $region142: #{image_encoder_forward.15} parent=5 // pred_region
        %s335 = ssub.s32 %s9, 1
        %s336 = sand.u32 %s43, 1
        %s337 = sand.u32 %s43, 1
        %s338 = smul.addr %s337, 8
        %s339 = scalar_lea.vmem [#allocation5], %s338
        // Predicated region
        $region144: #{image_encoder_forward.15} parent=142 // pred_check
          %p340 = pneg %p56
        $region145: #{image_encoder_forward.15} parent=142 // pred_check_branch
          %342 = sbr.rel (%p340) target = $region147
        $region146: #{image_encoder_forward.15} parent=142 // pred_region
          _
        $region147: #{image_encoder_forward.15} parent=142 // pred_fallthru
          _
        %s343 = sand.u32 %s71, 1
        %s344 = sand.u32 %s71, 1
        %s345 = smul.addr %s344, 8
        %s346 = scalar_lea.vmem [#allocation6], %s345
        // Predicated region
        $region148: #{image_encoder_forward.15} parent=142 // pred_check
          %p347 = pneg %p84
        $region149: #{image_encoder_forward.15} parent=142 // pred_check_branch
          %349 = sbr.rel (%p347) target = $region151
        $region150: #{image_encoder_forward.15} parent=142 // pred_region
          _
        $region151: #{image_encoder_forward.15} parent=142 // pred_fallthru
          _
        %s350 = sand.u32 %s99, 1
        %s351 = sand.u32 %s99, 1
        %s352 = smul.addr %s351, 8
        %s353 = scalar_lea.vmem [#allocation7], %s352
        // Predicated region
        $region152: #{image_encoder_forward.15} parent=142 // pred_check
          %p354 = pneg %p112
        $region153: #{image_encoder_forward.15} parent=142 // pred_check_branch
          %356 = sbr.rel (%p354) target = $region155
        $region154: #{image_encoder_forward.15} parent=142 // pred_region
          _
        $region155: #{image_encoder_forward.15} parent=142 // pred_fallthru
          _
        %s357 = sand.u32 %s43, 1
        %s358 = sand.u32 %s43, 1
        %s359 = smul.addr %s358, 8
        %s360 = scalar_lea.vmem [#allocation5], %s359
        %p361 = pneg %p56
        %p362 = pneg %p53
        %s363 = sand.u32 %s71, 1
        %s364 = sand.u32 %s71, 1
        %s365 = smul.addr %s364, 8
        %s366 = scalar_lea.vmem [#allocation6], %s365
        %p367 = pneg %p84
        %p368 = pneg %p81
        %s369 = sand.u32 %s99, 1
        %s370 = sand.u32 %s99, 1
        %s371 = smul.addr %s370, 8
        %s372 = scalar_lea.vmem [#allocation7], %s371
        %p373 = pneg %p112
        %p374 = pneg %p109
        %p375 = pneg %p140
        %p376 = pneg %p137
        %s377 = smul.u32 2, %s20
        %p378 = scmp.lt.s32.totalorder %s19, 1
        %s379 = scalar_select %p378, %s19, 1
        %p380 = scmp.lt.s32.totalorder %s377, 1
        %s381 = scalar_select %p380, %s377, 1
        %s382 = smul.addr %s379, 2
        %s383 = sadd.s32 %s381, %s382
        %s384 = smul.addr %s383, 4
        %s385 = scalar_lea.vmem %s3, %s384
        %s386 = smul.u32 2, %s20
        %s387 = smul.u32 2, %s21
        %s388 = smul.u32 2, %s21
        %s389 = smul.u32 2, %s20
        %p390 = scmp.lt.s32.totalorder %s19, 1
        %s391 = scalar_select %p390, %s19, 1
        %p392 = scmp.lt.s32.totalorder %s389, 1
        %s393 = scalar_select %p392, %s389, 1
        %s394 = smul.addr %s391, 2
        %s395 = sadd.s32 %s393, %s394
        %s396 = smul.addr %s395, 4
        %s397 = scalar_lea.vmem %s3, %s396
        %s398 = smul.u32 2, %s20
        %p400 = scmp.eq.s32.totalorder %s21, 0
        // Predicated region
        $region156: #{image_encoder_forward.15} parent=142 // pred_check
          %p401 = pneg %p400
        $region157: #{image_encoder_forward.15} parent=142 // pred_check_branch
          %403 = sbr.rel (%p401) target = $region159
        $region158: #{image_encoder_forward.15} parent=142 // pred_region
          %vm404 = vcmask 7168
          %405 = vst.msk [vmem:[#allocation2] sm:$0xff] %vm404, -inf
          %406 = vst.msk [vmem:[#allocation2 + $0x8] sm:$0xff] %vm404, -inf
          %407 = vst.msk [vmem:[#allocation2 + $0x10] sm:$0xff] %vm404, -inf
          %408 = vst.msk [vmem:[#allocation2 + $0x18] sm:$0xff] %vm404, -inf
          %409 = vst.msk [vmem:[#allocation2 + $0x20] sm:$0xff] %vm404, -inf
          %410 = vst.msk [vmem:[#allocation2 + $0x28] sm:$0xff] %vm404, -inf
          %411 = vst.msk [vmem:[#allocation2 + $0x30] sm:$0xff] %vm404, -inf
          %412 = vst.msk [vmem:[#allocation2 + $0x38] sm:$0xff] %vm404, -inf
          %413 = vst.msk [vmem:[#allocation3] sm:$0xff] %vm404, 0.0
          %414 = vst.msk [vmem:[#allocation3 + $0x8] sm:$0xff] %vm404, 0.0
          %415 = vst.msk [vmem:[#allocation3 + $0x10] sm:$0xff] %vm404, 0.0
          %416 = vst.msk [vmem:[#allocation3 + $0x18] sm:$0xff] %vm404, 0.0
          %417 = vst.msk [vmem:[#allocation3 + $0x20] sm:$0xff] %vm404, 0.0
          %418 = vst.msk [vmem:[#allocation3 + $0x28] sm:$0xff] %vm404, 0.0
          %419 = vst.msk [vmem:[#allocation3 + $0x30] sm:$0xff] %vm404, 0.0
          %420 = vst.msk [vmem:[#allocation3 + $0x38] sm:$0xff] %vm404, 0.0
          %vm421 = vcmask 261120
          %422 = vst.msk [vmem:[#allocation4] sm:$0xff] %vm421, 0.0
          %423 = vst.msk [vmem:[#allocation4 + $0x8] sm:$0xff] %vm421, 0.0
          %424 = vst.msk [vmem:[#allocation4 + $0x10] sm:$0xff] %vm421, 0.0
          %425 = vst.msk [vmem:[#allocation4 + $0x18] sm:$0xff] %vm421, 0.0
          %426 = vst.msk [vmem:[#allocation4 + $0x20] sm:$0xff] %vm421, 0.0
          %427 = vst.msk [vmem:[#allocation4 + $0x28] sm:$0xff] %vm421, 0.0
          %428 = vst.msk [vmem:[#allocation4 + $0x30] sm:$0xff] %vm421, 0.0
          %429 = vst.msk [vmem:[#allocation4 + $0x38] sm:$0xff] %vm421, 0.0
        $region159: #{image_encoder_forward.15} parent=142 // pred_fallthru
          _
        %v430 = vld [vmem:[%s339] sm:$0xf]
        %v431 = vld [vmem:[%s339 + $0x4] sm:$0xf]
        %v432 = vld [vmem:[%s346] sm:$0xf]
        %v433 = vld [vmem:[%s346 + $0x4] sm:$0xf]
        %v434 = vld [vmem:[%s353] sm:$0xf]
        %v435 = vld [vmem:[%s353 + $0x4] sm:$0xf]
        %v438 = vunpack.c.l.b16 %v430
        %v439 = vunpack.c.l.b16 %v431
        %v440 = vpack.c.b16 %v439, %v438
        %v443 = vunpack.c.l.b16 %v432
        %v444 = vunpack.c.l.b16 %v433
        %v445 = vpack.c.b16 %v444, %v443
        %vm446 = vcmask 261120
        %v448 = vsel %vm446, %v440, 0
        %v451 = vsel %vm446, %v445, 0
        %453 = vmatprep.subr.bf16.mxu0 0
        %454 = vmatpush1.bf16.xpose.msra.mxu0 %v451
        %455 = vmatprep.subr.bf16.mxu0 0
        %456 = vmatpush1.bf16.xpose.msra.mxu0 0
        %457 = vmatprep.subr.bf16.mxu0 0
        %458 = vmatpush1.bf16.xpose.msra.mxu0 0
        %459 = vmatprep.subr.bf16.mxu0 0
        %460 = vmatpush1.bf16.xpose.msra.mxu0 0
        %461 = vmatprep.subr.bf16.mxu0 0
        %462 = vmatpush1.bf16.xpose.msra.mxu0 0
        %463 = vmatprep.subr.bf16.mxu0 0
        %464 = vmatpush1.bf16.xpose.msra.mxu0 0
        %465 = vmatprep.subr.bf16.mxu0 0
        %466 = vmatpush1.bf16.xpose.msra.mxu0 0
        %467 = vmatprep.subr.bf16.mxu0 0
        %468 = vmatpush1.bf16.xpose.msra.mxu0 0
        %469 = vmatprep.subr.bf16.mxu0 0
        %470 = vmatpush1.bf16.xpose.msra.mxu0 0
        %471 = vmatprep.subr.bf16.mxu0 0
        %472 = vmatpush1.bf16.xpose.msra.mxu0 0
        %473 = vmatprep.subr.bf16.mxu0 0
        %474 = vmatpush1.bf16.xpose.msra.mxu0 0
        %475 = vmatprep.subr.bf16.mxu0 0
        %476 = vmatpush1.bf16.xpose.msra.mxu0 0
        %477 = vmatprep.subr.bf16.mxu0 0
        %478 = vmatpush1.bf16.xpose.msra.mxu0 0
        %479 = vmatprep.subr.bf16.mxu0 0
        %480 = vmatpush1.bf16.xpose.msra.mxu0 0
        %481 = vmatprep.subr.bf16.mxu0 0
        %482 = vmatpush1.bf16.xpose.msra.mxu0 0
        %483 = vmatprep.subr.bf16.mxu0 0
        %484 = vmatpush1.bf16.xpose.msra.mxu0 0
        %485 = vmatprep.mubr.bf16.mxu0 0
        %486 = vmatmul.mubr.bf16.gmra.mrb[0].mxu0 %v448
        %v487 = vpop.f32.mrb[0].mxu0
        %v488 = vadd.f32 0.0, %v487
        %v489 = vpop.f32.mrb[0].mxu0
        %v490 = vpop.f32.mrb[0].mxu0
        %v491 = vadd.f32 0.0, %v490
        %v492 = vpop.f32.mrb[0].mxu0
        %493 = vdwg.mxu0
        %v494 = vld [vmem:[#allocation2] sm:$0xff]
        %v495 = vld [vmem:[#allocation2 + $0x8] sm:$0xff]
        %vm496 = vcmask 130048
        %v497 = vsel %vm496, %v488, -inf
        %498 = vmax.xlane.f32.xlu0 %v497
        %v499 = vpop.xlane.xlu0 %498
        %v500 = vsel %vm496, %v491, -inf
        %501 = vmax.xlane.f32.xlu0 %v500
        %v502 = vpop.xlane.xlu0 %501
        %v503 = vmax.f32 %v494, %v499
        %v504 = vmax.f32 %v495, %v502
        %v505 = vsub.f32 %v494, %v503
        %v506 = vsub.f32 %v495, %v504
        %v507 = vmul.f32 %v505, 1.442695
        %v508 = vpow.pop %v507
        %v509 = vmul.f32 %v506, 1.442695
        %v510 = vpow.pop %v509
        %512 = vset.pattern.permute.xlu0 0
        %513 = vperm.xlu0 %512, %v503
        %v514 = vpop.permute.xlu0 %513
        %517 = vset.pattern.permute.xlu0 0
        %518 = vperm.xlu0 %517, %v504
        %v519 = vpop.permute.xlu0 %518
        %v521 = vsub.f32 %v488, %v514
        %v522 = vsub.f32 %v491, %v519
        %v523 = vmul.f32 %v521, 1.442695
        %v524 = vpow.pop %v523
        %v525 = vmul.f32 %v522, 1.442695
        %v526 = vpow.pop %v525
        %v527 = vld [vmem:[#allocation3] sm:$0xff]
        %v528 = vld [vmem:[#allocation3 + $0x8] sm:$0xff]
        %v529 = vmul.f32 %v508, %v527
        %v530 = vmul.f32 %v510, %v528
        %v531 = vsel %vm496, %v524, 0.0
        %532 = vadd.xlane.f32.xlu0 %v531
        %v533 = vpop.xlane.xlu0 %532
        %v534 = vsel %vm496, %v526, 0.0
        %535 = vadd.xlane.f32.xlu0 %v534
        %v536 = vpop.xlane.xlu0 %535
        %v537 = vadd.f32 %v529, %v533
        %v538 = vadd.f32 %v530, %v536
        %vm539 = vcmask 7168
        %540 = vst.msk [vmem:[#allocation3] sm:$0xff] %vm539, %v537
        %541 = vst.msk [vmem:[#allocation3 + $0x8] sm:$0xff] %vm539, %v538
        %v542 = vld [vmem:[#allocation4] sm:$0xff]
        %v543 = vld [vmem:[#allocation4 + $0x8] sm:$0xff]
        %545 = vset.pattern.permute.xlu0 0
        %546 = vperm.xlu0 %545, %v508
        %v547 = vpop.permute.xlu0 %546
        %550 = vset.pattern.permute.xlu0 0
        %551 = vperm.xlu0 %550, %v510
        %v552 = vpop.permute.xlu0 %551
        %v554 = vmul.f32 %v547, %v542
        %v555 = vmul.f32 %v552, %v543
        %v556 = vpack.c.bf16 %v526, %v524
        %v559 = vunpack.c.l.b16 %v434
        %v560 = vunpack.c.l.b16 %v435
        %v561 = vpack.c.b16 %v560, %v559
        %v564 = vsel %vm496, %v556, 0
        %566 = vmatprep.subr.bf16.mxu0 0
        %567 = vmatpush1.bf16.msra.mxu0 %v561
        %568 = vmatprep.subr.bf16.mxu0 0
        %569 = vmatpush1.bf16.msra.mxu0 0
        %570 = vmatprep.subr.bf16.mxu0 0
        %571 = vmatpush1.bf16.msra.mxu0 0
        %572 = vmatprep.subr.bf16.mxu0 0
        %573 = vmatpush1.bf16.msra.mxu0 0
        %574 = vmatprep.subr.bf16.mxu0 0
        %575 = vmatpush1.bf16.msra.mxu0 0
        %576 = vmatprep.subr.bf16.mxu0 0
        %577 = vmatpush1.bf16.msra.mxu0 0
        %578 = vmatprep.subr.bf16.mxu0 0
        %579 = vmatpush1.bf16.msra.mxu0 0
        %580 = vmatprep.subr.bf16.mxu0 0
        %581 = vmatpush1.bf16.msra.mxu0 0
        %582 = vmatprep.subr.bf16.mxu0 0
        %583 = vmatpush1.bf16.msra.mxu0 0
        %584 = vmatprep.subr.bf16.mxu0 0
        %585 = vmatpush1.bf16.msra.mxu0 0
        %586 = vmatprep.subr.bf16.mxu0 0
        %587 = vmatpush1.bf16.msra.mxu0 0
        %588 = vmatprep.subr.bf16.mxu0 0
        %589 = vmatpush1.bf16.msra.mxu0 0
        %590 = vmatprep.subr.bf16.mxu0 0
        %591 = vmatpush1.bf16.msra.mxu0 0
        %592 = vmatprep.subr.bf16.mxu0 0
        %593 = vmatpush1.bf16.msra.mxu0 0
        %594 = vmatprep.subr.bf16.mxu0 0
        %595 = vmatpush1.bf16.msra.mxu0 0
        %596 = vmatprep.subr.bf16.mxu0 0
        %597 = vmatpush1.bf16.msra.mxu0 0
        %598 = vmatprep.mubr.bf16.mxu0 0
        %599 = vmatmul.mubr.bf16.gmra.mrb[0].mxu0 %v564
        %v600 = vpop.f32.mrb[0].mxu0
        %v601 = vadd.f32 0.0, %v600
        %v602 = vpop.f32.mrb[0].mxu0
        %v603 = vpop.f32.mrb[0].mxu0
        %v604 = vadd.f32 0.0, %v603
        %v605 = vpop.f32.mrb[0].mxu0
        %606 = vdwg.mxu0
        %v607 = vadd.f32 %v554, %v601
        %v608 = vadd.f32 %v555, %v604
        %609 = vst.msk [vmem:[#allocation4] sm:$0xff] %vm446, %v607
        %610 = vst.msk [vmem:[#allocation4 + $0x8] sm:$0xff] %vm446, %v608
        %611 = vst.msk [vmem:[#allocation2] sm:$0xff] %vm539, %v503
        %612 = vst.msk [vmem:[#allocation2 + $0x8] sm:$0xff] %vm539, %v504
        %613 = vrot.lane.b32.xlu0 %v440, 96
        %v614 = vpop.permute.xlu0 %613
        %615 = vrot.lane.b32.xlu0 %v445, 96
        %v616 = vpop.permute.xlu0 %615
        %v618 = vsel %vm446, %v614, 0
        %v621 = vsel %vm446, %v616, 0
        %623 = vmatprep.subr.bf16.mxu0 0
        %624 = vmatpush1.bf16.xpose.msra.mxu0 %v621
        %625 = vmatprep.subr.bf16.mxu0 0
        %626 = vmatpush1.bf16.xpose.msra.mxu0 0
        %627 = vmatprep.subr.bf16.mxu0 0
        %628 = vmatpush1.bf16.xpose.msra.mxu0 0
        %629 = vmatprep.subr.bf16.mxu0 0
        %630 = vmatpush1.bf16.xpose.msra.mxu0 0
        %631 = vmatprep.subr.bf16.mxu0 0
        %632 = vmatpush1.bf16.xpose.msra.mxu0 0
        %633 = vmatprep.subr.bf16.mxu0 0
        %634 = vmatpush1.bf16.xpose.msra.mxu0 0
        %635 = vmatprep.subr.bf16.mxu0 0
        %636 = vmatpush1.bf16.xpose.msra.mxu0 0
        %637 = vmatprep.subr.bf16.mxu0 0
        %638 = vmatpush1.bf16.xpose.msra.mxu0 0
        %639 = vmatprep.subr.bf16.mxu0 0
        %640 = vmatpush1.bf16.xpose.msra.mxu0 0
        %641 = vmatprep.subr.bf16.mxu0 0
        %642 = vmatpush1.bf16.xpose.msra.mxu0 0
        %643 = vmatprep.subr.bf16.mxu0 0
        %644 = vmatpush1.bf16.xpose.msra.mxu0 0
        %645 = vmatprep.subr.bf16.mxu0 0
        %646 = vmatpush1.bf16.xpose.msra.mxu0 0
        %647 = vmatprep.subr.bf16.mxu0 0
        %648 = vmatpush1.bf16.xpose.msra.mxu0 0
        %649 = vmatprep.subr.bf16.mxu0 0
        %650 = vmatpush1.bf16.xpose.msra.mxu0 0
        %651 = vmatprep.subr.bf16.mxu0 0
        %652 = vmatpush1.bf16.xpose.msra.mxu0 0
        %653 = vmatprep.subr.bf16.mxu0 0
        %654 = vmatpush1.bf16.xpose.msra.mxu0 0
        %655 = vmatprep.mubr.bf16.mxu0 0
        %656 = vmatmul.mubr.bf16.gmra.mrb[0].mxu0 %v618
        %v657 = vpop.f32.mrb[0].mxu0
        %v658 = vadd.f32 0.0, %v657
        %v659 = vpop.f32.mrb[0].mxu0
        %v660 = vpop.f32.mrb[0].mxu0
        %v661 = vadd.f32 0.0, %v660
        %v662 = vpop.f32.mrb[0].mxu0
        %663 = vdwg.mxu0
        %s664 = scalar_lea.vmem [#allocation2], 16
        %v665 = vld [vmem:[%s664] sm:$0xff]
        %v666 = vld [vmem:[%s664 + $0x8] sm:$0xff]
        %v667 = vsel %vm496, %v658, -inf
        %668 = vmax.xlane.f32.xlu0 %v667
        %v669 = vpop.xlane.xlu0 %668
        %v670 = vsel %vm496, %v661, -inf
        %671 = vmax.xlane.f32.xlu0 %v670
        %v672 = vpop.xlane.xlu0 %671
        %v673 = vmax.f32 %v665, %v669
        %v674 = vmax.f32 %v666, %v672
        %v675 = vsub.f32 %v665, %v673
        %v676 = vsub.f32 %v666, %v674
        %v677 = vmul.f32 %v675, 1.442695
        %v678 = vpow.pop %v677
        %v679 = vmul.f32 %v676, 1.442695
        %v680 = vpow.pop %v679
        %682 = vset.pattern.permute.xlu0 0
        %683 = vperm.xlu0 %682, %v673
        %v684 = vpop.permute.xlu0 %683
        %687 = vset.pattern.permute.xlu0 0
        %688 = vperm.xlu0 %687, %v674
        %v689 = vpop.permute.xlu0 %688
        %v691 = vsub.f32 %v658, %v684
        %v692 = vsub.f32 %v661, %v689
        %v693 = vmul.f32 %v691, 1.442695
        %v694 = vpow.pop %v693
        %v695 = vmul.f32 %v692, 1.442695
        %v696 = vpow.pop %v695
        %s697 = scalar_lea.vmem [#allocation3], 16
        %v698 = vld [vmem:[%s697] sm:$0xff]
        %v699 = vld [vmem:[%s697 + $0x8] sm:$0xff]
        %v700 = vmul.f32 %v678, %v698
        %v701 = vmul.f32 %v680, %v699
        %v702 = vsel %vm496, %v694, 0.0
        %703 = vadd.xlane.f32.xlu0 %v702
        %v704 = vpop.xlane.xlu0 %703
        %v705 = vsel %vm496, %v696, 0.0
        %706 = vadd.xlane.f32.xlu0 %v705
        %v707 = vpop.xlane.xlu0 %706
        %v708 = vadd.f32 %v700, %v704
        %v709 = vadd.f32 %v701, %v707
        %710 = vst.msk [vmem:[%s697] sm:$0xff] %vm539, %v708
        %711 = vst.msk [vmem:[%s697 + $0x8] sm:$0xff] %vm539, %v709
        %s712 = scalar_lea.vmem [#allocation4], 16
        %v713 = vld [vmem:[%s712] sm:$0xff]
        %v714 = vld [vmem:[%s712 + $0x8] sm:$0xff]
        %716 = vset.pattern.permute.xlu0 0
        %717 = vperm.xlu0 %716, %v678
        %v718 = vpop.permute.xlu0 %717
        %721 = vset.pattern.permute.xlu0 0
        %722 = vperm.xlu0 %721, %v680
        %v723 = vpop.permute.xlu0 %722
        %v725 = vmul.f32 %v718, %v713
        %v726 = vmul.f32 %v723, %v714
        %v727 = vpack.c.bf16 %v696, %v694
        %728 = vrot.lane.b32.xlu0 %v561, 96
        %v729 = vpop.permute.xlu0 %728
        %v732 = vsel %vm496, %v727, 0
        %734 = vmatprep.subr.bf16.mxu0 0
        %735 = vmatpush1.bf16.msra.mxu0 %v729
        %736 = vmatprep.subr.bf16.mxu0 0
        %737 = vmatpush1.bf16.msra.mxu0 0
        %738 = vmatprep.subr.bf16.mxu0 0
        %739 = vmatpush1.bf16.msra.mxu0 0
        %740 = vmatprep.subr.bf16.mxu0 0
        %741 = vmatpush1.bf16.msra.mxu0 0
        %742 = vmatprep.subr.bf16.mxu0 0
        %743 = vmatpush1.bf16.msra.mxu0 0
        %744 = vmatprep.subr.bf16.mxu0 0
        %745 = vmatpush1.bf16.msra.mxu0 0
        %746 = vmatprep.subr.bf16.mxu0 0
        %747 = vmatpush1.bf16.msra.mxu0 0
        %748 = vmatprep.subr.bf16.mxu0 0
        %749 = vmatpush1.bf16.msra.mxu0 0
        %750 = vmatprep.subr.bf16.mxu0 0
        %751 = vmatpush1.bf16.msra.mxu0 0
        %752 = vmatprep.subr.bf16.mxu0 0
        %753 = vmatpush1.bf16.msra.mxu0 0
        %754 = vmatprep.subr.bf16.mxu0 0
        %755 = vmatpush1.bf16.msra.mxu0 0
        %756 = vmatprep.subr.bf16.mxu0 0
        %757 = vmatpush1.bf16.msra.mxu0 0
        %758 = vmatprep.subr.bf16.mxu0 0
        %759 = vmatpush1.bf16.msra.mxu0 0
        %760 = vmatprep.subr.bf16.mxu0 0
        %761 = vmatpush1.bf16.msra.mxu0 0
        %762 = vmatprep.subr.bf16.mxu0 0
        %763 = vmatpush1.bf16.msra.mxu0 0
        %764 = vmatprep.subr.bf16.mxu0 0
        %765 = vmatpush1.bf16.msra.mxu0 0
        %766 = vmatprep.mubr.bf16.mxu0 0
        %767 = vmatmul.mubr.bf16.gmra.mrb[0].mxu0 %v732
        %v768 = vpop.f32.mrb[0].mxu0
        %v769 = vadd.f32 0.0, %v768
        %v770 = vpop.f32.mrb[0].mxu0
        %v771 = vpop.f32.mrb[0].mxu0
        %v772 = vadd.f32 0.0, %v771
        %v773 = vpop.f32.mrb[0].mxu0
        %774 = vdwg.mxu0
        %v775 = vadd.f32 %v725, %v769
        %v776 = vadd.f32 %v726, %v772
        %777 = vst.msk [vmem:[%s712] sm:$0xff] %vm446, %v775
        %778 = vst.msk [vmem:[%s712 + $0x8] sm:$0xff] %vm446, %v776
        %779 = vst.msk [vmem:[%s664] sm:$0xff] %vm539, %v673
        %780 = vst.msk [vmem:[%s664 + $0x8] sm:$0xff] %vm539, %v674
        %781 = vrot.lane.b32.xlu0 %v440, 64
        %v782 = vpop.permute.xlu0 %781
        %783 = vrot.lane.b32.xlu0 %v445, 64
        %v784 = vpop.permute.xlu0 %783
        %v786 = vsel %vm446, %v782, 0
        %v789 = vsel %vm446, %v784, 0
        %791 = vmatprep.subr.bf16.mxu0 0
        %792 = vmatpush1.bf16.xpose.msra.mxu0 %v789
        %793 = vmatprep.subr.bf16.mxu0 0
        %794 = vmatpush1.bf16.xpose.msra.mxu0 0
        %795 = vmatprep.subr.bf16.mxu0 0
        %796 = vmatpush1.bf16.xpose.msra.mxu0 0
        %797 = vmatprep.subr.bf16.mxu0 0
        %798 = vmatpush1.bf16.xpose.msra.mxu0 0
        %799 = vmatprep.subr.bf16.mxu0 0
        %800 = vmatpush1.bf16.xpose.msra.mxu0 0
        %801 = vmatprep.subr.bf16.mxu0 0
        %802 = vmatpush1.bf16.xpose.msra.mxu0 0
        %803 = vmatprep.subr.bf16.mxu0 0
        %804 = vmatpush1.bf16.xpose.msra.mxu0 0
        %805 = vmatprep.subr.bf16.mxu0 0
        %806 = vmatpush1.bf16.xpose.msra.mxu0 0
        %807 = vmatprep.subr.bf16.mxu0 0
        %808 = vmatpush1.bf16.xpose.msra.mxu0 0
        %809 = vmatprep.subr.bf16.mxu0 0
        %810 = vmatpush1.bf16.xpose.msra.mxu0 0
        %811 = vmatprep.subr.bf16.mxu0 0
        %812 = vmatpush1.bf16.xpose.msra.mxu0 0
        %813 = vmatprep.subr.bf16.mxu0 0
        %814 = vmatpush1.bf16.xpose.msra.mxu0 0
        %815 = vmatprep.subr.bf16.mxu0 0
        %816 = vmatpush1.bf16.xpose.msra.mxu0 0
        %817 = vmatprep.subr.bf16.mxu0 0
        %818 = vmatpush1.bf16.xpose.msra.mxu0 0
        %819 = vmatprep.subr.bf16.mxu0 0
        %820 = vmatpush1.bf16.xpose.msra.mxu0 0
        %821 = vmatprep.subr.bf16.mxu0 0
        %822 = vmatpush1.bf16.xpose.msra.mxu0 0
        %823 = vmatprep.mubr.bf16.mxu0 0
        %824 = vmatmul.mubr.bf16.gmra.mrb[0].mxu0 %v786
        %v825 = vpop.f32.mrb[0].mxu0
        %v826 = vadd.f32 0.0, %v825
        %v827 = vpop.f32.mrb[0].mxu0
        %v828 = vpop.f32.mrb[0].mxu0
        %v829 = vadd.f32 0.0, %v828
        %v830 = vpop.f32.mrb[0].mxu0
        %831 = vdwg.mxu0
        %s832 = scalar_lea.vmem [#allocation2], 32
        %v833 = vld [vmem:[%s832] sm:$0xff]
        %v834 = vld [vmem:[%s832 + $0x8] sm:$0xff]
        %v835 = vsel %vm496, %v826, -inf
        %836 = vmax.xlane.f32.xlu0 %v835
        %v837 = vpop.xlane.xlu0 %836
        %v838 = vsel %vm496, %v829, -inf
        %839 = vmax.xlane.f32.xlu0 %v838
        %v840 = vpop.xlane.xlu0 %839
        %v841 = vmax.f32 %v833, %v837
        %v842 = vmax.f32 %v834, %v840
        %v843 = vsub.f32 %v833, %v841
        %v844 = vsub.f32 %v834, %v842
        %v845 = vmul.f32 %v843, 1.442695
        %v846 = vpow.pop %v845
        %v847 = vmul.f32 %v844, 1.442695
        %v848 = vpow.pop %v847
        %850 = vset.pattern.permute.xlu0 0
        %851 = vperm.xlu0 %850, %v841
        %v852 = vpop.permute.xlu0 %851
        %855 = vset.pattern.permute.xlu0 0
        %856 = vperm.xlu0 %855, %v842
        %v857 = vpop.permute.xlu0 %856
        %v859 = vsub.f32 %v826, %v852
        %v860 = vsub.f32 %v829, %v857
        %v861 = vmul.f32 %v859, 1.442695
        %v862 = vpow.pop %v861
        %v863 = vmul.f32 %v860, 1.442695
        %v864 = vpow.pop %v863
        %s865 = scalar_lea.vmem [#allocation3], 32
        %v866 = vld [vmem:[%s865] sm:$0xff]
        %v867 = vld [vmem:[%s865 + $0x8] sm:$0xff]
        %v868 = vmul.f32 %v846, %v866
        %v869 = vmul.f32 %v848, %v867
        %v870 = vsel %vm496, %v862, 0.0
        %871 = vadd.xlane.f32.xlu0 %v870
        %v872 = vpop.xlane.xlu0 %871
        %v873 = vsel %vm496, %v864, 0.0
        %874 = vadd.xlane.f32.xlu0 %v873
        %v875 = vpop.xlane.xlu0 %874
        %v876 = vadd.f32 %v868, %v872
        %v877 = vadd.f32 %v869, %v875
        %878 = vst.msk [vmem:[%s865] sm:$0xff] %vm539, %v876
        %879 = vst.msk [vmem:[%s865 + $0x8] sm:$0xff] %vm539, %v877
        %s880 = scalar_lea.vmem [#allocation4], 32
        %v881 = vld [vmem:[%s880] sm:$0xff]
        %v882 = vld [vmem:[%s880 + $0x8] sm:$0xff]
        %884 = vset.pattern.permute.xlu0 0
        %885 = vperm.xlu0 %884, %v846
        %v886 = vpop.permute.xlu0 %885
        %889 = vset.pattern.permute.xlu0 0
        %890 = vperm.xlu0 %889, %v848
        %v891 = vpop.permute.xlu0 %890
        %v893 = vmul.f32 %v886, %v881
        %v894 = vmul.f32 %v891, %v882
        %v895 = vpack.c.bf16 %v864, %v862
        %896 = vrot.lane.b32.xlu0 %v561, 64
        %v897 = vpop.permute.xlu0 %896
        %v900 = vsel %vm496, %v895, 0
        %902 = vmatprep.subr.bf16.mxu0 0
        %903 = vmatpush1.bf16.msra.mxu0 %v897
        %904 = vmatprep.subr.bf16.mxu0 0
        %905 = vmatpush1.bf16.msra.mxu0 0
        %906 = vmatprep.subr.bf16.mxu0 0
        %907 = vmatpush1.bf16.msra.mxu0 0
        %908 = vmatprep.subr.bf16.mxu0 0
        %909 = vmatpush1.bf16.msra.mxu0 0
        %910 = vmatprep.subr.bf16.mxu0 0
        %911 = vmatpush1.bf16.msra.mxu0 0
        %912 = vmatprep.subr.bf16.mxu0 0
        %913 = vmatpush1.bf16.msra.mxu0 0
        %914 = vmatprep.subr.bf16.mxu0 0
        %915 = vmatpush1.bf16.msra.mxu0 0
        %916 = vmatprep.subr.bf16.mxu0 0
        %917 = vmatpush1.bf16.msra.mxu0 0
        %918 = vmatprep.subr.bf16.mxu0 0
        %919 = vmatpush1.bf16.msra.mxu0 0
        %920 = vmatprep.subr.bf16.mxu0 0
        %921 = vmatpush1.bf16.msra.mxu0 0
        %922 = vmatprep.subr.bf16.mxu0 0
        %923 = vmatpush1.bf16.msra.mxu0 0
        %924 = vmatprep.subr.bf16.mxu0 0
        %925 = vmatpush1.bf16.msra.mxu0 0
        %926 = vmatprep.subr.bf16.mxu0 0
        %927 = vmatpush1.bf16.msra.mxu0 0
        %928 = vmatprep.subr.bf16.mxu0 0
        %929 = vmatpush1.bf16.msra.mxu0 0
        %930 = vmatprep.subr.bf16.mxu0 0
        %931 = vmatpush1.bf16.msra.mxu0 0
        %932 = vmatprep.subr.bf16.mxu0 0
        %933 = vmatpush1.bf16.msra.mxu0 0
        %934 = vmatprep.mubr.bf16.mxu0 0
        %935 = vmatmul.mubr.bf16.gmra.mrb[0].mxu0 %v900
        %v936 = vpop.f32.mrb[0].mxu0
        %v937 = vadd.f32 0.0, %v936
        %v938 = vpop.f32.mrb[0].mxu0
        %v939 = vpop.f32.mrb[0].mxu0
        %v940 = vadd.f32 0.0, %v939
        %v941 = vpop.f32.mrb[0].mxu0
        %942 = vdwg.mxu0
        %v943 = vadd.f32 %v893, %v937
        %v944 = vadd.f32 %v894, %v940
        %945 = vst.msk [vmem:[%s880] sm:$0xff] %vm446, %v943
        %946 = vst.msk [vmem:[%s880 + $0x8] sm:$0xff] %vm446, %v944
        %947 = vst.msk [vmem:[%s832] sm:$0xff] %vm539, %v841
        %948 = vst.msk [vmem:[%s832 + $0x8] sm:$0xff] %vm539, %v842
        %949 = vrot.lane.b32.xlu0 %v440, 32
        %v950 = vpop.permute.xlu0 %949
        %951 = vrot.lane.b32.xlu0 %v445, 32
        %v952 = vpop.permute.xlu0 %951
        %v954 = vsel %vm446, %v950, 0
        %v957 = vsel %vm446, %v952, 0
        %959 = vmatprep.subr.bf16.mxu0 0
        %960 = vmatpush1.bf16.xpose.msra.mxu0 %v957
        %961 = vmatprep.subr.bf16.mxu0 0
        %962 = vmatpush1.bf16.xpose.msra.mxu0 0
        %963 = vmatprep.subr.bf16.mxu0 0
        %964 = vmatpush1.bf16.xpose.msra.mxu0 0
        %965 = vmatprep.subr.bf16.mxu0 0
        %966 = vmatpush1.bf16.xpose.msra.mxu0 0
        %967 = vmatprep.subr.bf16.mxu0 0
        %968 = vmatpush1.bf16.xpose.msra.mxu0 0
        %969 = vmatprep.subr.bf16.mxu0 0
        %970 = vmatpush1.bf16.xpose.msra.mxu0 0
        %971 = vmatprep.subr.bf16.mxu0 0
        %972 = vmatpush1.bf16.xpose.msra.mxu0 0
        %973 = vmatprep.subr.bf16.mxu0 0
        %974 = vmatpush1.bf16.xpose.msra.mxu0 0
        %975 = vmatprep.subr.bf16.mxu0 0
        %976 = vmatpush1.bf16.xpose.msra.mxu0 0
        %977 = vmatprep.subr.bf16.mxu0 0
        %978 = vmatpush1.bf16.xpose.msra.mxu0 0
        %979 = vmatprep.subr.bf16.mxu0 0
        %980 = vmatpush1.bf16.xpose.msra.mxu0 0
        %981 = vmatprep.subr.bf16.mxu0 0
        %982 = vmatpush1.bf16.xpose.msra.mxu0 0
        %983 = vmatprep.subr.bf16.mxu0 0
        %984 = vmatpush1.bf16.xpose.msra.mxu0 0
        %985 = vmatprep.subr.bf16.mxu0 0
        %986 = vmatpush1.bf16.xpose.msra.mxu0 0
        %987 = vmatprep.subr.bf16.mxu0 0
        %988 = vmatpush1.bf16.xpose.msra.mxu0 0
        %989 = vmatprep.subr.bf16.mxu0 0
        %990 = vmatpush1.bf16.xpose.msra.mxu0 0
        %991 = vmatprep.mubr.bf16.mxu0 0
        %992 = vmatmul.mubr.bf16.gmra.mrb[0].mxu0 %v954
        %v993 = vpop.f32.mrb[0].mxu0
        %v994 = vadd.f32 0.0, %v993
        %v995 = vpop.f32.mrb[0].mxu0
        %v996 = vpop.f32.mrb[0].mxu0
        %v997 = vadd.f32 0.0, %v996
        %v998 = vpop.f32.mrb[0].mxu0
        %999 = vdwg.mxu0
        %s1000 = scalar_lea.vmem [#allocation2], 48
        %v1001 = vld [vmem:[%s1000] sm:$0xff]
        %v1002 = vld [vmem:[%s1000 + $0x8] sm:$0xff]
        %v1003 = vsel %vm496, %v994, -inf
        %1004 = vmax.xlane.f32.xlu0 %v1003
        %v1005 = vpop.xlane.xlu0 %1004
        %v1006 = vsel %vm496, %v997, -inf
        %1007 = vmax.xlane.f32.xlu0 %v1006
        %v1008 = vpop.xlane.xlu0 %1007
        %v1009 = vmax.f32 %v1001, %v1005
        %v1010 = vmax.f32 %v1002, %v1008
        %v1011 = vsub.f32 %v1001, %v1009
        %v1012 = vsub.f32 %v1002, %v1010
        %v1013 = vmul.f32 %v1011, 1.442695
        %v1014 = vpow.pop %v1013
        %v1015 = vmul.f32 %v1012, 1.442695
        %v1016 = vpow.pop %v1015
        %1018 = vset.pattern.permute.xlu0 0
        %1019 = vperm.xlu0 %1018, %v1009
        %v1020 = vpop.permute.xlu0 %1019
        %1023 = vset.pattern.permute.xlu0 0
        %1024 = vperm.xlu0 %1023, %v1010
        %v1025 = vpop.permute.xlu0 %1024
        %v1027 = vsub.f32 %v994, %v1020
        %v1028 = vsub.f32 %v997, %v1025
        %v1029 = vmul.f32 %v1027, 1.442695
        %v1030 = vpow.pop %v1029
        %v1031 = vmul.f32 %v1028, 1.442695
        %v1032 = vpow.pop %v1031
        %s1033 = scalar_lea.vmem [#allocation3], 48
        %v1034 = vld [vmem:[%s1033] sm:$0xff]
        %v1035 = vld [vmem:[%s1033 + $0x8] sm:$0xff]
        %v1036 = vmul.f32 %v1014, %v1034
        %v1037 = vmul.f32 %v1016, %v1035
        %v1038 = vsel %vm496, %v1030, 0.0
        %1039 = vadd.xlane.f32.xlu0 %v1038
        %v1040 = vpop.xlane.xlu0 %1039
        %v1041 = vsel %vm496, %v1032, 0.0
        %1042 = vadd.xlane.f32.xlu0 %v1041
        %v1043 = vpop.xlane.xlu0 %1042
        %v1044 = vadd.f32 %v1036, %v1040
        %v1045 = vadd.f32 %v1037, %v1043
        %1046 = vst.msk [vmem:[%s1033] sm:$0xff] %vm539, %v1044
        %1047 = vst.msk [vmem:[%s1033 + $0x8] sm:$0xff] %vm539, %v1045
        %s1048 = scalar_lea.vmem [#allocation4], 48
        %v1049 = vld [vmem:[%s1048] sm:$0xff]
        %v1050 = vld [vmem:[%s1048 + $0x8] sm:$0xff]
        %1052 = vset.pattern.permute.xlu0 0
        %1053 = vperm.xlu0 %1052, %v1014
        %v1054 = vpop.permute.xlu0 %1053
        %1057 = vset.pattern.permute.xlu0 0
        %1058 = vperm.xlu0 %1057, %v1016
        %v1059 = vpop.permute.xlu0 %1058
        %v1061 = vmul.f32 %v1054, %v1049
        %v1062 = vmul.f32 %v1059, %v1050
        %v1063 = vpack.c.bf16 %v1032, %v1030
        %1064 = vrot.lane.b32.xlu0 %v561, 32
        %v1065 = vpop.permute.xlu0 %1064
        %v1068 = vsel %vm496, %v1063, 0
        %1070 = vmatprep.subr.bf16.mxu0 0
        %1071 = vmatpush1.bf16.msra.mxu0 %v1065
        %1072 = vmatprep.subr.bf16.mxu0 0
        %1073 = vmatpush1.bf16.msra.mxu0 0
        %1074 = vmatprep.subr.bf16.mxu0 0
        %1075 = vmatpush1.bf16.msra.mxu0 0
        %1076 = vmatprep.subr.bf16.mxu0 0
        %1077 = vmatpush1.bf16.msra.mxu0 0
        %1078 = vmatprep.subr.bf16.mxu0 0
        %1079 = vmatpush1.bf16.msra.mxu0 0
        %1080 = vmatprep.subr.bf16.mxu0 0
        %1081 = vmatpush1.bf16.msra.mxu0 0
        %1082 = vmatprep.subr.bf16.mxu0 0
        %1083 = vmatpush1.bf16.msra.mxu0 0
        %1084 = vmatprep.subr.bf16.mxu0 0
        %1085 = vmatpush1.bf16.msra.mxu0 0
        %1086 = vmatprep.subr.bf16.mxu0 0
        %1087 = vmatpush1.bf16.msra.mxu0 0
        %1088 = vmatprep.subr.bf16.mxu0 0
        %1089 = vmatpush1.bf16.msra.mxu0 0
        %1090 = vmatprep.subr.bf16.mxu0 0
        %1091 = vmatpush1.bf16.msra.mxu0 0
        %1092 = vmatprep.subr.bf16.mxu0 0
        %1093 = vmatpush1.bf16.msra.mxu0 0
        %1094 = vmatprep.subr.bf16.mxu0 0
        %1095 = vmatpush1.bf16.msra.mxu0 0
        %1096 = vmatprep.subr.bf16.mxu0 0
        %1097 = vmatpush1.bf16.msra.mxu0 0
        %1098 = vmatprep.subr.bf16.mxu0 0
        %1099 = vmatpush1.bf16.msra.mxu0 0
        %1100 = vmatprep.subr.bf16.mxu0 0
        %1101 = vmatpush1.bf16.msra.mxu0 0
        %1102 = vmatprep.mubr.bf16.mxu0 0
        %1103 = vmatmul.mubr.bf16.gmra.mrb[0].mxu0 %v1068
        %v1104 = vpop.f32.mrb[0].mxu0
        %v1105 = vadd.f32 0.0, %v1104
        %v1106 = vpop.f32.mrb[0].mxu0
        %v1107 = vpop.f32.mrb[0].mxu0
        %v1108 = vadd.f32 0.0, %v1107
        %v1109 = vpop.f32.mrb[0].mxu0
        %1110 = vdwg.mxu0
        %v1111 = vadd.f32 %v1061, %v1105
        %v1112 = vadd.f32 %v1062, %v1108
        %1113 = vst.msk [vmem:[%s1048] sm:$0xff] %vm446, %v1111
        %1114 = vst.msk [vmem:[%s1048 + $0x8] sm:$0xff] %vm446, %v1112
        %1115 = vst.msk [vmem:[%s1000] sm:$0xff] %vm539, %v1009
        %1116 = vst.msk [vmem:[%s1000 + $0x8] sm:$0xff] %vm539, %v1010
        // Predicated region
        $region160: #{image_encoder_forward.15} parent=142 // pred_check
          %p1117 = pneg %p400
        $region161: #{image_encoder_forward.15} parent=142 // pred_check_branch
          %1119 = sbr.rel (%p1117) target = $region163
        $region162: #{image_encoder_forward.15} parent=142 // pred_region
          %v1120 = vld [vmem:[#allocation4] sm:$0xff]
          %v1121 = vld [vmem:[#allocation4 + $0x8] sm:$0xff]
          %v1122 = vld [vmem:[#allocation3] sm:$0xff]
          %v1123 = vld [vmem:[#allocation3 + $0x8] sm:$0xff]
          %v1124 = vrcp.pop %v1122
          %v1125 = vrcp.pop %v1123
          %1127 = vset.pattern.permute.xlu0 0
          %1128 = vperm.xlu0 %1127, %v1124
          %v1129 = vpop.permute.xlu0 %1128
          %1132 = vset.pattern.permute.xlu0 0
          %1133 = vperm.xlu0 %1132, %v1125
          %v1134 = vpop.permute.xlu0 %1133
          %v1136 = vmul.f32 %v1120, %v1129
          %v1137 = vmul.f32 %v1121, %v1134
          %v1138 = vld [vmem:[%s712] sm:$0xff]
          %v1139 = vld [vmem:[%s712 + $0x8] sm:$0xff]
          %v1140 = vld [vmem:[%s697] sm:$0xff]
          %v1141 = vld [vmem:[%s697 + $0x8] sm:$0xff]
          %v1142 = vrcp.pop %v1140
          %v1143 = vrcp.pop %v1141
          %1145 = vset.pattern.permute.xlu0 0
          %1146 = vperm.xlu0 %1145, %v1142
          %v1147 = vpop.permute.xlu0 %1146
          %1150 = vset.pattern.permute.xlu0 0
          %1151 = vperm.xlu0 %1150, %v1143
          %v1152 = vpop.permute.xlu0 %1151
          %v1154 = vmul.f32 %v1138, %v1147
          %v1155 = vmul.f32 %v1139, %v1152
          %v1156 = vld [vmem:[%s880] sm:$0xff]
          %v1157 = vld [vmem:[%s880 + $0x8] sm:$0xff]
          %v1158 = vld [vmem:[%s865] sm:$0xff]
          %v1159 = vld [vmem:[%s865 + $0x8] sm:$0xff]
          %v1160 = vrcp.pop %v1158
          %v1161 = vrcp.pop %v1159
          %1163 = vset.pattern.permute.xlu0 0
          %1164 = vperm.xlu0 %1163, %v1160
          %v1165 = vpop.permute.xlu0 %1164
          %1168 = vset.pattern.permute.xlu0 0
          %1169 = vperm.xlu0 %1168, %v1161
          %v1170 = vpop.permute.xlu0 %1169
          %v1172 = vmul.f32 %v1156, %v1165
          %v1173 = vmul.f32 %v1157, %v1170
          %v1174 = vld [vmem:[%s1048] sm:$0xff]
          %v1175 = vld [vmem:[%s1048 + $0x8] sm:$0xff]
          %v1176 = vld [vmem:[%s1033] sm:$0xff]
          %v1177 = vld [vmem:[%s1033 + $0x8] sm:$0xff]
          %v1178 = vrcp.pop %v1176
          %v1179 = vrcp.pop %v1177
          %1181 = vset.pattern.permute.xlu0 0
          %1182 = vperm.xlu0 %1181, %v1178
          %v1183 = vpop.permute.xlu0 %1182
          %1186 = vset.pattern.permute.xlu0 0
          %1187 = vperm.xlu0 %1186, %v1179
          %v1188 = vpop.permute.xlu0 %1187
          %v1190 = vmul.f32 %v1174, %v1183
          %v1191 = vmul.f32 %v1175, %v1188
          %1194 = vrot.lane.b32.xlu0 %v1154, 32
          %v1195 = vpop.permute.xlu0 %1194
          %1196 = vrot.lane.b32.xlu0 %v1155, 32
          %v1197 = vpop.permute.xlu0 %1196
          %1202 = vrot.lane.b32.xlu0 %v1172, 64
          %v1203 = vpop.permute.xlu0 %1202
          %1204 = vrot.lane.b32.xlu0 %v1173, 64
          %v1205 = vpop.permute.xlu0 %1204
          %1210 = vrot.lane.b32.xlu0 %v1190, 96
          %v1211 = vpop.permute.xlu0 %1210
          %1212 = vrot.lane.b32.xlu0 %v1191, 96
          %v1213 = vpop.permute.xlu0 %1212
          %v1216 = vsel %vm446, %v1136, %v1195
          %v1217 = vsel %vm446, %v1137, %v1197
          %vm1218 = vcmask 523264
          %v1219 = vsel %vm1218, %v1216, %v1203
          %v1220 = vsel %vm1218, %v1217, %v1205
          %vm1221 = vcmask 785408
          %v1222 = vsel %vm1221, %v1219, %v1211
          %v1223 = vsel %vm1221, %v1220, %v1213
          %v1224 = vpack.c.bf16 %v1223, %v1222
          %v1226 = vunpack.c.l.b16 %v1224
          %v1227 = vunpack.c.h.b16 %v1224
          %v1228 = vpack.c.b16 %v1226, %v1226
          %v1229 = vpack.c.b16 %v1227, %v1227
          %1232 = vst [vmem:[%s397] sm:$0xf] %v1228
          %1233 = vst [vmem:[%s397 + $0x4] sm:$0xf] %v1229
        $region163: #{image_encoder_forward.15} parent=142 // pred_fallthru
          _
        %s1234 = smul.u32 2, %s20
        %p1235 = scmp.lt.s32.totalorder %s19, 1
        %s1236 = scalar_select %p1235, %s19, 1
        %p1237 = scmp.lt.s32.totalorder %s1234, 1
        %s1238 = scalar_select %p1237, %s1234, 1
        %s1239 = smul.addr %s1236, 2
        %s1240 = sadd.s32 %s1238, %s1239
        %s1241 = smul.addr %s1240, 4
        %s1242 = scalar_lea.vmem %s3, %s1241
        // Predicated region
        $region164: #{image_encoder_forward.15} parent=142 // pred_check
          %p1243 = pneg %p137
        $region165: #{image_encoder_forward.15} parent=142 // pred_check_branch
          %1245 = sbr.rel (%p1243) target = $region167
        $region166: #{image_encoder_forward.15} parent=142 // pred_region
          %s1246 = smul.u32 2, %s20
        $region167: #{image_encoder_forward.15} parent=142 // pred_fallthru
          _
      $region143: #{image_encoder_forward.15} parent=5 // pred_fallthru
        _
      %p1247 = scmp.le.s32.totalorder 2, %s9
      // Predicated region
      $region168: #{image_encoder_forward.15} parent=5 // pred_check
        %p1248 = pneg %p1247
      $region169: #{image_encoder_forward.15} parent=5 // pred_check_branch
        %1250 = sbr.rel (%p1248) target = $region171
      $region170: #{image_encoder_forward.15} parent=5 // pred_region
        %s1251 = ssub.s32 %s9, 2
        // Predicated region
        $region172: #{image_encoder_forward.15} parent=170 // pred_check
          %p1252 = pneg %p143
        $region173: #{image_encoder_forward.15} parent=170 // pred_check_branch
          %1254 = sbr.rel (%p1252) target = $region175
        $region174: #{image_encoder_forward.15} parent=170 // pred_region
          %s1255 = smul.u32 2, %s23
          %p1256 = scmp.lt.s32.totalorder %s22, 1
          %s1257 = scalar_select %p1256, %s22, 1
          %p1258 = scmp.lt.s32.totalorder %s1255, 1
          %s1259 = scalar_select %p1258, %s1255, 1
          %s1260 = smul.addr %s1257, 2
          %s1261 = sadd.s32 %s1259, %s1260
          %s1262 = smul.addr %s1261, 4
          %s1263 = scalar_lea.vmem %s3, %s1262
        $region175: #{image_encoder_forward.15} parent=170 // pred_fallthru
          _
      $region171: #{image_encoder_forward.15} parent=5 // pred_fallthru
        _
    $region6: #{image_encoder_forward.15} parent=1 // loop_footer
      %s13 = sadd.s32 1, %s9
    $region7: #{image_encoder_forward.15} parent=1 // loop_footer_branch
      %8 = sbr.rel target = $region3
    $region8: #{image_encoder_forward.15} parent=1 // loop_exit
      _

// kernel: image_encoder_forward.24
$region0: #{image_encoder_forward.24}
  #allocation0 [shape = 'u32[]', space=smem, size = 0x4, offset = 0x4, fixed_abs, tag = 'smem constant byte address 0x4 - core index']
  #allocation1 [shape = 'u32[144,128]{1,0:T(1,128)}', space=vmem, size = 0x12000, scoped, tag = 'internal scratch']
  %s0 = inlined_call_operand.vmem [shape: bf16[32,128], index: 0, kind: input, shape index: {}]
  %s1 = inlined_call_operand.vmem [shape: bf16[128,32], index: 1, kind: input, shape index: {}]
  %s2 = inlined_call_operand.vmem [shape: f32[1,32], index: 2, kind: input, shape index: {}]
  %s3 = inlined_call_operand.vmem [shape: f32[1,32], index: 3, kind: input, shape index: {}]
  %s4 = inlined_call_operand.vmem [shape: f32[1,32], index: 4, kind: input, shape index: {}]
  %s5 = inlined_call_operand.vmem [shape: bf16[32,32], index: 5, kind: output, shape index: {}]
  %s6 = sld [smem:[#allocation0]]
  $region30: #{image_encoder_forward.24} parent=0
    _
  %s8 = ssub.s32 1, %s6
  %s9 = scalar_select 0, %s8, %s6
  // Predicated region
  $region2: #{image_encoder_forward.24} parent=0 // pred_check
    _
  $region3: #{image_encoder_forward.24} parent=0 // pred_check_branch
    %11 = sbr.rel (0) target = $region5
  $region4: #{image_encoder_forward.24} parent=0 // pred_region
    _
  $region5: #{image_encoder_forward.24} parent=0 // pred_fallthru
    _
  // Predicated region
  $region6: #{image_encoder_forward.24} parent=0 // pred_check
    _
  $region7: #{image_encoder_forward.24} parent=0 // pred_check_branch
    %13 = sbr.rel (0) target = $region9
  $region8: #{image_encoder_forward.24} parent=0 // pred_region
    _
  $region9: #{image_encoder_forward.24} parent=0 // pred_fallthru
    _
  // Predicated region
  $region10: #{image_encoder_forward.24} parent=0 // pred_check
    _
  $region11: #{image_encoder_forward.24} parent=0 // pred_check_branch
    %15 = sbr.rel (0) target = $region13
  $region12: #{image_encoder_forward.24} parent=0 // pred_region
    _
  $region13: #{image_encoder_forward.24} parent=0 // pred_fallthru
    _
  // Predicated region
  $region14: #{image_encoder_forward.24} parent=0 // pred_check
    _
  $region15: #{image_encoder_forward.24} parent=0 // pred_check_branch
    %17 = sbr.rel (0) target = $region17
  $region16: #{image_encoder_forward.24} parent=0 // pred_region
    _
  $region17: #{image_encoder_forward.24} parent=0 // pred_fallthru
    _
  // Predicated region
  $region18: #{image_encoder_forward.24} parent=0 // pred_check
    _
  $region19: #{image_encoder_forward.24} parent=0 // pred_check_branch
    %19 = sbr.rel (0) target = $region21
  $region20: #{image_encoder_forward.24} parent=0 // pred_region
    _
  $region21: #{image_encoder_forward.24} parent=0 // pred_fallthru
    _
  %v21 = vld [vmem:[%s0] sm:$0xf]
  %v22 = vld [vmem:[%s0 + $0x4] sm:$0xf]
  %v23 = vld [vmem:[%s0 + $0x8] sm:$0xf]
  %v24 = vld [vmem:[%s0 + $0xc] sm:$0xf]
  %v25 = vld [vmem:[%s1] sm:$0xf]
  %v26 = vld [vmem:[%s1 + $0x4] sm:$0xf]
  %v27 = vld [vmem:[%s1 + $0x8] sm:$0xf]
  %v28 = vld [vmem:[%s1 + $0xc] sm:$0xf]
  %v29 = vld [vmem:[%s1 + $0x10] sm:$0xf]
  %v30 = vld [vmem:[%s1 + $0x14] sm:$0xf]
  %v31 = vld [vmem:[%s1 + $0x18] sm:$0xf]
  %v32 = vld [vmem:[%s1 + $0x1c] sm:$0xf]
  %v33 = vld [vmem:[%s1 + $0x20] sm:$0xf]
  %v34 = vld [vmem:[%s1 + $0x24] sm:$0xf]
  %v35 = vld [vmem:[%s1 + $0x28] sm:$0xf]
  %v36 = vld [vmem:[%s1 + $0x2c] sm:$0xf]
  %v37 = vld [vmem:[%s1 + $0x30] sm:$0xf]
  %v38 = vld [vmem:[%s1 + $0x34] sm:$0xf]
  %v39 = vld [vmem:[%s1 + $0x38] sm:$0xf]
  %v40 = vld [vmem:[%s1 + $0x3c] sm:$0xf]
  %v41 = vld [vmem:[%s2] sm:$0x1]
  %v43 = vlaneseq
  %v44 = vshrl.u32 %v43, 7
  %v45 = vsub.s32 0, %v44
  %v46 = vrot.slane %v41, %v45
  %v52 = vunpack.c.l.b16 %v21
  %v53 = vunpack.c.l.b16 %v22
  %v54 = vunpack.c.l.b16 %v23
  %v55 = vunpack.c.l.b16 %v24
  %v56 = vpack.c.b16 %v53, %v52
  %v57 = vpack.c.b16 %v55, %v54
  %v76 = vunpack.c.l.b16 %v25
  %v77 = vunpack.c.l.b16 %v26
  %v78 = vunpack.c.l.b16 %v27
  %v79 = vunpack.c.l.b16 %v28
  %v80 = vunpack.c.l.b16 %v29
  %v81 = vunpack.c.l.b16 %v30
  %v82 = vunpack.c.l.b16 %v31
  %v83 = vunpack.c.l.b16 %v32
  %v84 = vunpack.c.l.b16 %v33
  %v85 = vunpack.c.l.b16 %v34
  %v86 = vunpack.c.l.b16 %v35
  %v87 = vunpack.c.l.b16 %v36
  %v88 = vunpack.c.l.b16 %v37
  %v89 = vunpack.c.l.b16 %v38
  %v90 = vunpack.c.l.b16 %v39
  %v91 = vunpack.c.l.b16 %v40
  %v92 = vpack.c.b16 %v77, %v76
  %v93 = vpack.c.b16 %v79, %v78
  %v94 = vpack.c.b16 %v81, %v80
  %v95 = vpack.c.b16 %v83, %v82
  %v96 = vpack.c.b16 %v85, %v84
  %v97 = vpack.c.b16 %v87, %v86
  %v98 = vpack.c.b16 %v89, %v88
  %v99 = vpack.c.b16 %v91, %v90
  %108 = vmatprep.subr.bf16.mxu0 0
  %109 = vmatpush1.bf16.msra.mxu0 %v92
  %110 = vmatprep.subr.bf16.mxu0 0
  %111 = vmatpush1.bf16.msra.mxu0 %v93
  %112 = vmatprep.subr.bf16.mxu0 0
  %113 = vmatpush1.bf16.msra.mxu0 %v94
  %114 = vmatprep.subr.bf16.mxu0 0
  %115 = vmatpush1.bf16.msra.mxu0 %v95
  %116 = vmatprep.subr.bf16.mxu0 0
  %117 = vmatpush1.bf16.msra.mxu0 %v96
  %118 = vmatprep.subr.bf16.mxu0 0
  %119 = vmatpush1.bf16.msra.mxu0 %v97
  %120 = vmatprep.subr.bf16.mxu0 0
  %121 = vmatpush1.bf16.msra.mxu0 %v98
  %122 = vmatprep.subr.bf16.mxu0 0
  %123 = vmatpush1.bf16.msra.mxu0 %v99
  %124 = vmatprep.subr.bf16.mxu0 0
  %125 = vmatpush1.bf16.msra.mxu0 0
  %126 = vmatprep.subr.bf16.mxu0 0
  %127 = vmatpush1.bf16.msra.mxu0 0
  %128 = vmatprep.subr.bf16.mxu0 0
  %129 = vmatpush1.bf16.msra.mxu0 0
  %130 = vmatprep.subr.bf16.mxu0 0
  %131 = vmatpush1.bf16.msra.mxu0 0
  %132 = vmatprep.subr.bf16.mxu0 0
  %133 = vmatpush1.bf16.msra.mxu0 0
  %134 = vmatprep.subr.bf16.mxu0 0
  %135 = vmatpush1.bf16.msra.mxu0 0
  %136 = vmatprep.subr.bf16.mxu0 0
  %137 = vmatpush1.bf16.msra.mxu0 0
  %138 = vmatprep.subr.bf16.mxu0 0
  %139 = vmatpush1.bf16.msra.mxu0 0
  %140 = vmatprep.mubr.bf16.mxu0 0
  %141 = vmatmul.mubr.bf16.gmra.mrb[0].mxu0 %v56
  %v142 = vpop.f32.mrb[0].mxu0
  %v143 = vadd.f32 %v46, %v142
  %v144 = vpop.f32.mrb[0].mxu0
  %v145 = vpop.f32.mrb[0].mxu0
  %v146 = vadd.f32 %v46, %v145
  %v147 = vpop.f32.mrb[0].mxu0
  %148 = vmatprep.mubr.bf16.mxu0 0
  %149 = vmatmul.mubr.bf16.gmra.mrb[0].mxu0 %v57
  %v150 = vpop.f32.mrb[0].mxu0
  %v151 = vadd.f32 %v46, %v150
  %v152 = vpop.f32.mrb[0].mxu0
  %v153 = vpop.f32.mrb[0].mxu0
  %v154 = vadd.f32 %v46, %v153
  %v155 = vpop.f32.mrb[0].mxu0
  %156 = vdwg.mxu0
  %v157 = vld [vmem:[%s3] sm:$0x1]
  %v158 = vld [vmem:[%s4] sm:$0x1]
  %vm159 = vcmask 261120
  %v160 = vsel %vm159, %v143, 0.0
  %161 = vadd.xlane.f32.xlu0 %v160
  %v162 = vpop.xlane.xlu0 %161
  %v163 = vsel %vm159, %v146, 0.0
  %164 = vadd.xlane.f32.xlu0 %v163
  %v165 = vpop.xlane.xlu0 %164
  %v166 = vsel %vm159, %v151, 0.0
  %167 = vadd.xlane.f32.xlu0 %v166
  %v168 = vpop.xlane.xlu0 %167
  %v169 = vsel %vm159, %v154, 0.0
  %170 = vadd.xlane.f32.xlu0 %v169
  %v171 = vpop.xlane.xlu0 %170
  %v172 = vrcp.pop 32.0
  %v173 = vmul.f32 %v162, %v172
  %v174 = vmul.f32 %v165, %v172
  %v175 = vmul.f32 %v168, %v172
  %v176 = vmul.f32 %v171, %v172
  %v177 = vsub.f32 %v143, %v173
  %v178 = vsub.f32 %v146, %v174
  %v179 = vsub.f32 %v151, %v175
  %v180 = vsub.f32 %v154, %v176
  %v181 = vmul.f32 %v177, %v177
  %v182 = vmul.f32 %v178, %v178
  %v183 = vmul.f32 %v179, %v179
  %v184 = vmul.f32 %v180, %v180
  %v185 = vsel %vm159, %v181, 0.0
  %186 = vadd.xlane.f32.xlu0 %v185
  %v187 = vpop.xlane.xlu0 %186
  %v188 = vsel %vm159, %v182, 0.0
  %189 = vadd.xlane.f32.xlu0 %v188
  %v190 = vpop.xlane.xlu0 %189
  %v191 = vsel %vm159, %v183, 0.0
  %192 = vadd.xlane.f32.xlu0 %v191
  %v193 = vpop.xlane.xlu0 %192
  %v194 = vsel %vm159, %v184, 0.0
  %195 = vadd.xlane.f32.xlu0 %v194
  %v196 = vpop.xlane.xlu0 %195
  %v197 = vmul.f32 %v187, %v172
  %v198 = vmul.f32 %v190, %v172
  %v199 = vmul.f32 %v193, %v172
  %v200 = vmul.f32 %v196, %v172
  %v201 = vadd.f32 %v197, 1e-06
  %v202 = vadd.f32 %v198, 1e-06
  %v203 = vadd.f32 %v199, 1e-06
  %v204 = vadd.f32 %v200, 1e-06
  %v205 = vrsqrt.pop %v201
  %v206 = vrsqrt.pop %v202
  %v207 = vrsqrt.pop %v203
  %v208 = vrsqrt.pop %v204
  %v209 = vmul.f32 %v177, %v205
  %v210 = vmul.f32 %v178, %v206
  %v211 = vmul.f32 %v179, %v207
  %v212 = vmul.f32 %v180, %v208
  %v214 = vlaneseq
  %v215 = vshrl.u32 %v214, 7
  %v216 = vsub.s32 0, %v215
  %v217 = vrot.slane %v157, %v216
  %v219 = vmul.f32 %v209, %v217
  %v220 = vmul.f32 %v210, %v217
  %v221 = vmul.f32 %v211, %v217
  %v222 = vmul.f32 %v212, %v217
  %v224 = vlaneseq
  %v225 = vshrl.u32 %v224, 7
  %v226 = vsub.s32 0, %v225
  %v227 = vrot.slane %v158, %v226
  %v229 = vadd.f32 %v219, %v227
  %v230 = vadd.f32 %v220, %v227
  %v231 = vadd.f32 %v221, %v227
  %v232 = vadd.f32 %v222, %v227
  %v233 = vpack.c.bf16 %v230, %v229
  %v234 = vpack.c.bf16 %v232, %v231
  %v237 = vunpack.c.l.b16 %v233
  %v238 = vunpack.c.h.b16 %v233
  %v239 = vunpack.c.l.b16 %v234
  %v240 = vunpack.c.h.b16 %v234
  %v241 = vpack.c.b16 %v237, %v237
  %v242 = vpack.c.b16 %v238, %v238
  %v243 = vpack.c.b16 %v239, %v239
  %v244 = vpack.c.b16 %v240, %v240
  %vm249 = vcmask 257024
  %250 = vst.msk [vmem:[%s5] sm:$0xf] %vm249, %v241
  %251 = vst.msk [vmem:[%s5 + $0x4] sm:$0xf] %vm249, %v242
  %252 = vst.msk [vmem:[%s5 + $0x8] sm:$0xf] %vm249, %v243
  %253 = vst.msk [vmem:[%s5 + $0xc] sm:$0xf] %vm249, %v244
  // Predicated region
  $region22: #{image_encoder_forward.24} parent=0 // pred_check
    _
  $region23: #{image_encoder_forward.24} parent=0 // pred_check_branch
    %255 = sbr.rel (0) target = $region25
  $region24: #{image_encoder_forward.24} parent=0 // pred_region
    _
  $region25: #{image_encoder_forward.24} parent=0 // pred_fallthru
    _
  // Predicated region
  $region26: #{image_encoder_forward.24} parent=0 // pred_check
    _
  $region27: #{image_encoder_forward.24} parent=0 // pred_check_branch
    %257 = sbr.rel (0) target = $region29
  $region28: #{image_encoder_forward.24} parent=0 // pred_region
    _
  $region29: #{image_encoder_forward.24} parent=0 // pred_fallthru
    _

// kernel: image_encoder_forward.17
$region0: #{image_encoder_forward.17}
  #allocation0 [shape = 'u32[]', space=smem, size = 0x4, offset = 0x4, fixed_abs, tag = 'smem constant byte address 0x4 - core index']
  #allocation1 [shape = 'u32[144,128]{1,0:T(1,128)}', space=vmem, size = 0x12000, scoped, tag = 'internal scratch']
  #allocation2 [shape = 'bf16[32,128]{1,0:T(16,128)(2,1)}', space=vmem, size = 0x2000, scoped, tag = 'scratch operand']
  %s0 = inlined_call_operand.vmem [shape: bf16[32,128], index: 0, kind: input, shape index: {}]
  %s1 = inlined_call_operand.vmem [shape: bf16[128,512], index: 1, kind: input, shape index: {}]
  %s2 = inlined_call_operand.vmem [shape: f32[1,128], index: 2, kind: input, shape index: {}]
  %s3 = inlined_call_operand.vmem [shape: f32[1,128], index: 3, kind: input, shape index: {}]
  %s4 = inlined_call_operand.vmem [shape: f32[1,512], index: 4, kind: input, shape index: {}]
  %s5 = inlined_call_operand.vmem [shape: bf16[32,512], index: 5, kind: output, shape index: {}]
  %s6 = sld [smem:[#allocation0]]
  $region34: #{image_encoder_forward.17} parent=0
    _
  %s8 = ssub.s32 1, %s6
  %s9 = scalar_select 0, %s8, %s6
  // Predicated region
  $region2: #{image_encoder_forward.17} parent=0 // pred_check
    _
  $region3: #{image_encoder_forward.17} parent=0 // pred_check_branch
    %11 = sbr.rel (0) target = $region5
  $region4: #{image_encoder_forward.17} parent=0 // pred_region
    _
  $region5: #{image_encoder_forward.17} parent=0 // pred_fallthru
    _
  // Predicated region
  $region6: #{image_encoder_forward.17} parent=0 // pred_check
    _
  $region7: #{image_encoder_forward.17} parent=0 // pred_check_branch
    %13 = sbr.rel (0) target = $region9
  $region8: #{image_encoder_forward.17} parent=0 // pred_region
    _
  $region9: #{image_encoder_forward.17} parent=0 // pred_fallthru
    _
  // Predicated region
  $region10: #{image_encoder_forward.17} parent=0 // pred_check
    _
  $region11: #{image_encoder_forward.17} parent=0 // pred_check_branch
    %15 = sbr.rel (0) target = $region13
  $region12: #{image_encoder_forward.17} parent=0 // pred_region
    _
  $region13: #{image_encoder_forward.17} parent=0 // pred_fallthru
    _
  // Predicated region
  $region14: #{image_encoder_forward.17} parent=0 // pred_check
    _
  $region15: #{image_encoder_forward.17} parent=0 // pred_check_branch
    %17 = sbr.rel (0) target = $region17
  $region16: #{image_encoder_forward.17} parent=0 // pred_region
    _
  $region17: #{image_encoder_forward.17} parent=0 // pred_fallthru
    _
  // Predicated region
  $region18: #{image_encoder_forward.17} parent=0 // pred_check
    _
  $region19: #{image_encoder_forward.17} parent=0 // pred_check_branch
    %19 = sbr.rel (0) target = $region21
  $region20: #{image_encoder_forward.17} parent=0 // pred_region
    _
  $region21: #{image_encoder_forward.17} parent=0 // pred_fallthru
    _
  %p21 = scmp.eq.s32.totalorder 0, 0
  // Predicated region
  $region22: #{image_encoder_forward.17} parent=0 // pred_check
    %p22 = pneg %p21
  $region23: #{image_encoder_forward.17} parent=0 // pred_check_branch
    %24 = sbr.rel (%p22) target = $region25
  $region24: #{image_encoder_forward.17} parent=0 // pred_region
    %v25 = vld [vmem:[%s0] sm:$0xf]
    %v26 = vld [vmem:[%s0 + $0x4] sm:$0xf]
    %v27 = vld [vmem:[%s0 + $0x8] sm:$0xf]
    %v28 = vld [vmem:[%s0 + $0xc] sm:$0xf]
    %v29 = vunpack.c.l.bf16 %v25
    %v30 = vunpack.c.l.bf16 %v26
    %v31 = vunpack.c.l.bf16 %v27
    %v32 = vunpack.c.l.bf16 %v28
    %v33 = vld [vmem:[%s2] sm:$0x1]
    %v34 = vld [vmem:[%s3] sm:$0x1]
    %35 = vadd.xlane.f32.xlu0 %v29
    %v36 = vpop.xlane.xlu0 %35
    %37 = vadd.xlane.f32.xlu0 %v30
    %v38 = vpop.xlane.xlu0 %37
    %39 = vadd.xlane.f32.xlu0 %v31
    %v40 = vpop.xlane.xlu0 %39
    %41 = vadd.xlane.f32.xlu0 %v32
    %v42 = vpop.xlane.xlu0 %41
    %v43 = vrcp.pop 128.0
    %v44 = vmul.f32 %v36, %v43
    %v45 = vmul.f32 %v38, %v43
    %v46 = vmul.f32 %v40, %v43
    %v47 = vmul.f32 %v42, %v43
    %v48 = vsub.f32 %v29, %v44
    %v49 = vsub.f32 %v30, %v45
    %v50 = vsub.f32 %v31, %v46
    %v51 = vsub.f32 %v32, %v47
    %v52 = vmul.f32 %v48, %v48
    %v53 = vmul.f32 %v49, %v49
    %v54 = vmul.f32 %v50, %v50
    %v55 = vmul.f32 %v51, %v51
    %56 = vadd.xlane.f32.xlu0 %v52
    %v57 = vpop.xlane.xlu0 %56
    %58 = vadd.xlane.f32.xlu0 %v53
    %v59 = vpop.xlane.xlu0 %58
    %60 = vadd.xlane.f32.xlu0 %v54
    %v61 = vpop.xlane.xlu0 %60
    %62 = vadd.xlane.f32.xlu0 %v55
    %v63 = vpop.xlane.xlu0 %62
    %v64 = vmul.f32 %v57, %v43
    %v65 = vmul.f32 %v59, %v43
    %v66 = vmul.f32 %v61, %v43
    %v67 = vmul.f32 %v63, %v43
    %v68 = vadd.f32 %v64, 1e-05
    %v69 = vadd.f32 %v65, 1e-05
    %v70 = vadd.f32 %v66, 1e-05
    %v71 = vadd.f32 %v67, 1e-05
    %v72 = vrsqrt.pop %v68
    %v73 = vrsqrt.pop %v69
    %v74 = vrsqrt.pop %v70
    %v75 = vrsqrt.pop %v71
    %v76 = vmul.f32 %v48, %v72
    %v77 = vmul.f32 %v49, %v73
    %v78 = vmul.f32 %v50, %v74
    %v79 = vmul.f32 %v51, %v75
    %v81 = vlaneseq
    %v82 = vshrl.u32 %v81, 7
    %v83 = vsub.s32 0, %v82
    %v84 = vrot.slane %v33, %v83
    %v86 = vmul.f32 %v76, %v84
    %v87 = vmul.f32 %v77, %v84
    %v88 = vmul.f32 %v78, %v84
    %v89 = vmul.f32 %v79, %v84
    %v91 = vlaneseq
    %v92 = vshrl.u32 %v91, 7
    %v93 = vsub.s32 0, %v92
    %v94 = vrot.slane %v34, %v93
    %v96 = vadd.f32 %v86, %v94
    %v97 = vadd.f32 %v87, %v94
    %v98 = vadd.f32 %v88, %v94
    %v99 = vadd.f32 %v89, %v94
    %v100 = vpack.c.bf16 %v97, %v96
    %v101 = vpack.c.bf16 %v99, %v98
    %102 = vst [vmem:[#allocation2] sm:$0xff] %v100
    %103 = vst [vmem:[#allocation2 + $0x8] sm:$0xff] %v101
  $region25: #{image_encoder_forward.17} parent=0 // pred_fallthru
    _
  %v104 = vld [vmem:[#allocation2] sm:$0xff]
  %v105 = vld [vmem:[#allocation2 + $0x8] sm:$0xff]
  %v106 = vld [vmem:[%s1] sm:$0xff]
  %v107 = vld [vmem:[%s1 + $0x8] sm:$0xff]
  %v108 = vld [vmem:[%s1 + $0x10] sm:$0xff]
  %v109 = vld [vmem:[%s1 + $0x18] sm:$0xff]
  %v110 = vld [vmem:[%s1 + $0x20] sm:$0xff]
  %v111 = vld [vmem:[%s1 + $0x28] sm:$0xff]
  %v112 = vld [vmem:[%s1 + $0x30] sm:$0xff]
  %v113 = vld [vmem:[%s1 + $0x38] sm:$0xff]
  %v114 = vld [vmem:[%s1 + $0x40] sm:$0xff]
  %v115 = vld [vmem:[%s1 + $0x48] sm:$0xff]
  %v116 = vld [vmem:[%s1 + $0x50] sm:$0xff]
  %v117 = vld [vmem:[%s1 + $0x58] sm:$0xff]
  %v118 = vld [vmem:[%s1 + $0x60] sm:$0xff]
  %v119 = vld [vmem:[%s1 + $0x68] sm:$0xff]
  %v120 = vld [vmem:[%s1 + $0x70] sm:$0xff]
  %v121 = vld [vmem:[%s1 + $0x78] sm:$0xff]
  %v122 = vld [vmem:[%s1 + $0x80] sm:$0xff]
  %v123 = vld [vmem:[%s1 + $0x88] sm:$0xff]
  %v124 = vld [vmem:[%s1 + $0x90] sm:$0xff]
  %v125 = vld [vmem:[%s1 + $0x98] sm:$0xff]
  %v126 = vld [vmem:[%s1 + $0xa0] sm:$0xff]
  %v127 = vld [vmem:[%s1 + $0xa8] sm:$0xff]
  %v128 = vld [vmem:[%s1 + $0xb0] sm:$0xff]
  %v129 = vld [vmem:[%s1 + $0xb8] sm:$0xff]
  %v130 = vld [vmem:[%s1 + $0xc0] sm:$0xff]
  %v131 = vld [vmem:[%s1 + $0xc8] sm:$0xff]
  %v132 = vld [vmem:[%s1 + $0xd0] sm:$0xff]
  %v133 = vld [vmem:[%s1 + $0xd8] sm:$0xff]
  %v134 = vld [vmem:[%s1 + $0xe0] sm:$0xff]
  %v135 = vld [vmem:[%s1 + $0xe8] sm:$0xff]
  %v136 = vld [vmem:[%s1 + $0xf0] sm:$0xff]
  %v137 = vld [vmem:[%s1 + $0xf8] sm:$0xff]
  %v138 = vld [vmem:[%s4] sm:$0xf]
  %v140 = vlaneseq
  %v141 = vshrl.u32 %v140, 7
  %v142 = vsub.s32 0, %v141
  %v143 = vrot.slane %v138, %v142
  %v144 = vlaneseq
  %v145 = vshrl.u32 %v144, 7
  %v146 = vsub.s32 1, %v145
  %v147 = vrot.slane %v138, %v146
  %v148 = vlaneseq
  %v149 = vshrl.u32 %v148, 7
  %v150 = vsub.s32 2, %v149
  %v151 = vrot.slane %v138, %v150
  %v152 = vlaneseq
  %v153 = vshrl.u32 %v152, 7
  %v154 = vsub.s32 3, %v153
  %v155 = vrot.slane %v138, %v154
  %v192 = vunpack.c.l.b16 %v106
  %v193 = vunpack.c.h.b16 %v106
  %v194 = vunpack.c.l.b16 %v107
  %v195 = vunpack.c.h.b16 %v107
  %v196 = vunpack.c.l.b16 %v108
  %v197 = vunpack.c.h.b16 %v108
  %v198 = vunpack.c.l.b16 %v109
  %v199 = vunpack.c.h.b16 %v109
  %v200 = vunpack.c.l.b16 %v110
  %v201 = vunpack.c.h.b16 %v110
  %v202 = vunpack.c.l.b16 %v111
  %v203 = vunpack.c.h.b16 %v111
  %v204 = vunpack.c.l.b16 %v112
  %v205 = vunpack.c.h.b16 %v112
  %v206 = vunpack.c.l.b16 %v113
  %v207 = vunpack.c.h.b16 %v113
  %v208 = vunpack.c.l.b16 %v114
  %v209 = vunpack.c.h.b16 %v114
  %v210 = vunpack.c.l.b16 %v115
  %v211 = vunpack.c.h.b16 %v115
  %v212 = vunpack.c.l.b16 %v116
  %v213 = vunpack.c.h.b16 %v116
  %v214 = vunpack.c.l.b16 %v117
  %v215 = vunpack.c.h.b16 %v117
  %v216 = vunpack.c.l.b16 %v118
  %v217 = vunpack.c.h.b16 %v118
  %v218 = vunpack.c.l.b16 %v119
  %v219 = vunpack.c.h.b16 %v119
  %v220 = vunpack.c.l.b16 %v120
  %v221 = vunpack.c.h.b16 %v120
  %v222 = vunpack.c.l.b16 %v121
  %v223 = vunpack.c.h.b16 %v121
  %v224 = vunpack.c.l.b16 %v122
  %v225 = vunpack.c.h.b16 %v122
  %v226 = vunpack.c.l.b16 %v123
  %v227 = vunpack.c.h.b16 %v123
  %v228 = vunpack.c.l.b16 %v124
  %v229 = vunpack.c.h.b16 %v124
  %v230 = vunpack.c.l.b16 %v125
  %v231 = vunpack.c.h.b16 %v125
  %v232 = vunpack.c.l.b16 %v126
  %v233 = vunpack.c.h.b16 %v126
  %v234 = vunpack.c.l.b16 %v127
  %v235 = vunpack.c.h.b16 %v127
  %v236 = vunpack.c.l.b16 %v128
  %v237 = vunpack.c.h.b16 %v128
  %v238 = vunpack.c.l.b16 %v129
  %v239 = vunpack.c.h.b16 %v129
  %v240 = vunpack.c.l.b16 %v130
  %v241 = vunpack.c.h.b16 %v130
  %v242 = vunpack.c.l.b16 %v131
  %v243 = vunpack.c.h.b16 %v131
  %v244 = vunpack.c.l.b16 %v132
  %v245 = vunpack.c.h.b16 %v132
  %v246 = vunpack.c.l.b16 %v133
  %v247 = vunpack.c.h.b16 %v133
  %v248 = vunpack.c.l.b16 %v134
  %v249 = vunpack.c.h.b16 %v134
  %v250 = vunpack.c.l.b16 %v135
  %v251 = vunpack.c.h.b16 %v135
  %v252 = vunpack.c.l.b16 %v136
  %v253 = vunpack.c.h.b16 %v136
  %v254 = vunpack.c.l.b16 %v137
  %v255 = vunpack.c.h.b16 %v137
  %v256 = vpack.c.b16 %v196, %v192
  %v257 = vpack.c.b16 %v197, %v193
  %v258 = vpack.c.b16 %v198, %v194
  %v259 = vpack.c.b16 %v199, %v195
  %v260 = vpack.c.b16 %v204, %v200
  %v261 = vpack.c.b16 %v205, %v201
  %v262 = vpack.c.b16 %v206, %v202
  %v263 = vpack.c.b16 %v207, %v203
  %v264 = vpack.c.b16 %v212, %v208
  %v265 = vpack.c.b16 %v213, %v209
  %v266 = vpack.c.b16 %v214, %v210
  %v267 = vpack.c.b16 %v215, %v211
  %v268 = vpack.c.b16 %v220, %v216
  %v269 = vpack.c.b16 %v221, %v217
  %v270 = vpack.c.b16 %v222, %v218
  %v271 = vpack.c.b16 %v223, %v219
  %v272 = vpack.c.b16 %v228, %v224
  %v273 = vpack.c.b16 %v229, %v225
  %v274 = vpack.c.b16 %v230, %v226
  %v275 = vpack.c.b16 %v231, %v227
  %v276 = vpack.c.b16 %v236, %v232
  %v277 = vpack.c.b16 %v237, %v233
  %v278 = vpack.c.b16 %v238, %v234
  %v279 = vpack.c.b16 %v239, %v235
  %v280 = vpack.c.b16 %v244, %v240
  %v281 = vpack.c.b16 %v245, %v241
  %v282 = vpack.c.b16 %v246, %v242
  %v283 = vpack.c.b16 %v247, %v243
  %v284 = vpack.c.b16 %v252, %v248
  %v285 = vpack.c.b16 %v253, %v249
  %v286 = vpack.c.b16 %v254, %v250
  %v287 = vpack.c.b16 %v255, %v251
  %320 = vmatprep.subr.bf16.mxu0 %v257
  %321 = vmatpush1.bf16.msra.mxu0 %v256
  %322 = vmatprep.subr.bf16.mxu0 %v261
  %323 = vmatpush1.bf16.msra.mxu0 %v260
  %324 = vmatprep.subr.bf16.mxu0 %v265
  %325 = vmatpush1.bf16.msra.mxu0 %v264
  %326 = vmatprep.subr.bf16.mxu0 %v269
  %327 = vmatpush1.bf16.msra.mxu0 %v268
  %328 = vmatprep.subr.bf16.mxu0 %v273
  %329 = vmatpush1.bf16.msra.mxu0 %v272
  %330 = vmatprep.subr.bf16.mxu0 %v277
  %331 = vmatpush1.bf16.msra.mxu0 %v276
  %332 = vmatprep.subr.bf16.mxu0 %v281
  %333 = vmatpush1.bf16.msra.mxu0 %v280
  %334 = vmatprep.subr.bf16.mxu0 %v285
  %335 = vmatpush1.bf16.msra.mxu0 %v284
  %336 = vmatprep.subr.bf16.mxu0 0
  %337 = vmatpush1.bf16.msra.mxu0 0
  %338 = vmatprep.subr.bf16.mxu0 0
  %339 = vmatpush1.bf16.msra.mxu0 0
  %340 = vmatprep.subr.bf16.mxu0 0
  %341 = vmatpush1.bf16.msra.mxu0 0
  %342 = vmatprep.subr.bf16.mxu0 0
  %343 = vmatpush1.bf16.msra.mxu0 0
  %344 = vmatprep.subr.bf16.mxu0 0
  %345 = vmatpush1.bf16.msra.mxu0 0
  %346 = vmatprep.subr.bf16.mxu0 0
  %347 = vmatpush1.bf16.msra.mxu0 0
  %348 = vmatprep.subr.bf16.mxu0 0
  %349 = vmatpush1.bf16.msra.mxu0 0
  %350 = vmatprep.subr.bf16.mxu0 0
  %351 = vmatpush1.bf16.msra.mxu0 0
  %352 = vmatprep.mubr.bf16.mxu0 0
  %353 = vmatmul.mubr.bf16.gmra.mrb[0].mxu0 %v104
  %v354 = vpop.f32.mrb[0].mxu0
  %v355 = vadd.f32 %v143, %v354
  %v356 = vpop.f32.mrb[0].mxu0
  %v357 = vadd.f32 %v147, %v356
  %v358 = vpop.f32.mrb[0].mxu0
  %v359 = vadd.f32 %v143, %v358
  %v360 = vpop.f32.mrb[0].mxu0
  %v361 = vadd.f32 %v147, %v360
  %362 = vmatprep.mubr.bf16.mxu0 0
  %363 = vmatmul.mubr.bf16.gmra.mrb[0].mxu0 %v105
  %v364 = vpop.f32.mrb[0].mxu0
  %v365 = vadd.f32 %v143, %v364
  %v366 = vpop.f32.mrb[0].mxu0
  %v367 = vadd.f32 %v147, %v366
  %v368 = vpop.f32.mrb[0].mxu0
  %v369 = vadd.f32 %v143, %v368
  %v370 = vpop.f32.mrb[0].mxu0
  %v371 = vadd.f32 %v147, %v370
  %372 = vdwg.mxu0
  %373 = vmatprep.subr.bf16.mxu0 %v259
  %374 = vmatpush1.bf16.msra.mxu0 %v258
  %375 = vmatprep.subr.bf16.mxu0 %v263
  %376 = vmatpush1.bf16.msra.mxu0 %v262
  %377 = vmatprep.subr.bf16.mxu0 %v267
  %378 = vmatpush1.bf16.msra.mxu0 %v266
  %379 = vmatprep.subr.bf16.mxu0 %v271
  %380 = vmatpush1.bf16.msra.mxu0 %v270
  %381 = vmatprep.subr.bf16.mxu0 %v275
  %382 = vmatpush1.bf16.msra.mxu0 %v274
  %383 = vmatprep.subr.bf16.mxu0 %v279
  %384 = vmatpush1.bf16.msra.mxu0 %v278
  %385 = vmatprep.subr.bf16.mxu0 %v283
  %386 = vmatpush1.bf16.msra.mxu0 %v282
  %387 = vmatprep.subr.bf16.mxu0 %v287
  %388 = vmatpush1.bf16.msra.mxu0 %v286
  %389 = vmatprep.subr.bf16.mxu0 0
  %390 = vmatpush1.bf16.msra.mxu0 0
  %391 = vmatprep.subr.bf16.mxu0 0
  %392 = vmatpush1.bf16.msra.mxu0 0
  %393 = vmatprep.subr.bf16.mxu0 0
  %394 = vmatpush1.bf16.msra.mxu0 0
  %395 = vmatprep.subr.bf16.mxu0 0
  %396 = vmatpush1.bf16.msra.mxu0 0
  %397 = vmatprep.subr.bf16.mxu0 0
  %398 = vmatpush1.bf16.msra.mxu0 0
  %399 = vmatprep.subr.bf16.mxu0 0
  %400 = vmatpush1.bf16.msra.mxu0 0
  %401 = vmatprep.subr.bf16.mxu0 0
  %402 = vmatpush1.bf16.msra.mxu0 0
  %403 = vmatprep.subr.bf16.mxu0 0
  %404 = vmatpush1.bf16.msra.mxu0 0
  %405 = vmatprep.mubr.bf16.mxu0 0
  %406 = vmatmul.mubr.bf16.gmra.mrb[0].mxu0 %v104
  %v407 = vpop.f32.mrb[0].mxu0
  %v408 = vadd.f32 %v151, %v407
  %v409 = vpop.f32.mrb[0].mxu0
  %v410 = vadd.f32 %v155, %v409
  %v411 = vpop.f32.mrb[0].mxu0
  %v412 = vadd.f32 %v151, %v411
  %v413 = vpop.f32.mrb[0].mxu0
  %v414 = vadd.f32 %v155, %v413
  %415 = vmatprep.mubr.bf16.mxu0 0
  %416 = vmatmul.mubr.bf16.gmra.mrb[0].mxu0 %v105
  %v417 = vpop.f32.mrb[0].mxu0
  %v418 = vadd.f32 %v151, %v417
  %v419 = vpop.f32.mrb[0].mxu0
  %v420 = vadd.f32 %v155, %v419
  %v421 = vpop.f32.mrb[0].mxu0
  %v422 = vadd.f32 %v151, %v421
  %v423 = vpop.f32.mrb[0].mxu0
  %v424 = vadd.f32 %v155, %v423
  %425 = vdwg.mxu0
  %v426 = vmul.f32 %v355, 0.5
  %v427 = vmul.f32 %v357, 0.5
  %v428 = vmul.f32 %v408, 0.5
  %v429 = vmul.f32 %v410, 0.5
  %v430 = vmul.f32 %v359, 0.5
  %v431 = vmul.f32 %v361, 0.5
  %v432 = vmul.f32 %v412, 0.5
  %v433 = vmul.f32 %v414, 0.5
  %v434 = vmul.f32 %v365, 0.5
  %v435 = vmul.f32 %v367, 0.5
  %v436 = vmul.f32 %v418, 0.5
  %v437 = vmul.f32 %v420, 0.5
  %v438 = vmul.f32 %v369, 0.5
  %v439 = vmul.f32 %v371, 0.5
  %v440 = vmul.f32 %v422, 0.5
  %v441 = vmul.f32 %v424, 0.5
  %v442 = vmul.f32 %v355, 0.044715
  %v443 = vmul.f32 %v357, 0.044715
  %v444 = vmul.f32 %v408, 0.044715
  %v445 = vmul.f32 %v410, 0.044715
  %v446 = vmul.f32 %v359, 0.044715
  %v447 = vmul.f32 %v361, 0.044715
  %v448 = vmul.f32 %v412, 0.044715
  %v449 = vmul.f32 %v414, 0.044715
  %v450 = vmul.f32 %v365, 0.044715
  %v451 = vmul.f32 %v367, 0.044715
  %v452 = vmul.f32 %v418, 0.044715
  %v453 = vmul.f32 %v420, 0.044715
  %v454 = vmul.f32 %v369, 0.044715
  %v455 = vmul.f32 %v371, 0.044715
  %v456 = vmul.f32 %v422, 0.044715
  %v457 = vmul.f32 %v424, 0.044715
  %v458 = vmul.f32 %v442, %v355
  %v459 = vmul.f32 %v443, %v357
  %v460 = vmul.f32 %v444, %v408
  %v461 = vmul.f32 %v445, %v410
  %v462 = vmul.f32 %v446, %v359
  %v463 = vmul.f32 %v447, %v361
  %v464 = vmul.f32 %v448, %v412
  %v465 = vmul.f32 %v449, %v414
  %v466 = vmul.f32 %v450, %v365
  %v467 = vmul.f32 %v451, %v367
  %v468 = vmul.f32 %v452, %v418
  %v469 = vmul.f32 %v453, %v420
  %v470 = vmul.f32 %v454, %v369
  %v471 = vmul.f32 %v455, %v371
  %v472 = vmul.f32 %v456, %v422
  %v473 = vmul.f32 %v457, %v424
  %v474 = vmul.f32 %v458, %v355
  %v475 = vmul.f32 %v459, %v357
  %v476 = vmul.f32 %v460, %v408
  %v477 = vmul.f32 %v461, %v410
  %v478 = vmul.f32 %v462, %v359
  %v479 = vmul.f32 %v463, %v361
  %v480 = vmul.f32 %v464, %v412
  %v481 = vmul.f32 %v465, %v414
  %v482 = vmul.f32 %v466, %v365
  %v483 = vmul.f32 %v467, %v367
  %v484 = vmul.f32 %v468, %v418
  %v485 = vmul.f32 %v469, %v420
  %v486 = vmul.f32 %v470, %v369
  %v487 = vmul.f32 %v471, %v371
  %v488 = vmul.f32 %v472, %v422
  %v489 = vmul.f32 %v473, %v424
  %v490 = vadd.f32 %v355, %v474
  %v491 = vadd.f32 %v357, %v475
  %v492 = vadd.f32 %v408, %v476
  %v493 = vadd.f32 %v410, %v477
  %v494 = vadd.f32 %v359, %v478
  %v495 = vadd.f32 %v361, %v479
  %v496 = vadd.f32 %v412, %v480
  %v497 = vadd.f32 %v414, %v481
  %v498 = vadd.f32 %v365, %v482
  %v499 = vadd.f32 %v367, %v483
  %v500 = vadd.f32 %v418, %v484
  %v501 = vadd.f32 %v420, %v485
  %v502 = vadd.f32 %v369, %v486
  %v503 = vadd.f32 %v371, %v487
  %v504 = vadd.f32 %v422, %v488
  %v505 = vadd.f32 %v424, %v489
  %v506 = vmul.f32 %v490, 0.7978846
  %v507 = vmul.f32 %v491, 0.7978846
  %v508 = vmul.f32 %v492, 0.7978846
  %v509 = vmul.f32 %v493, 0.7978846
  %v510 = vmul.f32 %v494, 0.7978846
  %v511 = vmul.f32 %v495, 0.7978846
  %v512 = vmul.f32 %v496, 0.7978846
  %v513 = vmul.f32 %v497, 0.7978846
  %v514 = vmul.f32 %v498, 0.7978846
  %v515 = vmul.f32 %v499, 0.7978846
  %v516 = vmul.f32 %v500, 0.7978846
  %v517 = vmul.f32 %v501, 0.7978846
  %v518 = vmul.f32 %v502, 0.7978846
  %v519 = vmul.f32 %v503, 0.7978846
  %v520 = vmul.f32 %v504, 0.7978846
  %v521 = vmul.f32 %v505, 0.7978846
  %v522 = vtanh.pop %v506
  %v523 = vtanh.pop %v507
  %v524 = vtanh.pop %v508
  %v525 = vtanh.pop %v509
  %v526 = vtanh.pop %v510
  %v527 = vtanh.pop %v511
  %v528 = vtanh.pop %v512
  %v529 = vtanh.pop %v513
  %v530 = vtanh.pop %v514
  %v531 = vtanh.pop %v515
  %v532 = vtanh.pop %v516
  %v533 = vtanh.pop %v517
  %v534 = vtanh.pop %v518
  %v535 = vtanh.pop %v519
  %v536 = vtanh.pop %v520
  %v537 = vtanh.pop %v521
  %v538 = vadd.f32 %v522, 1.0
  %v539 = vadd.f32 %v523, 1.0
  %v540 = vadd.f32 %v524, 1.0
  %v541 = vadd.f32 %v525, 1.0
  %v542 = vadd.f32 %v526, 1.0
  %v543 = vadd.f32 %v527, 1.0
  %v544 = vadd.f32 %v528, 1.0
  %v545 = vadd.f32 %v529, 1.0
  %v546 = vadd.f32 %v530, 1.0
  %v547 = vadd.f32 %v531, 1.0
  %v548 = vadd.f32 %v532, 1.0
  %v549 = vadd.f32 %v533, 1.0
  %v550 = vadd.f32 %v534, 1.0
  %v551 = vadd.f32 %v535, 1.0
  %v552 = vadd.f32 %v536, 1.0
  %v553 = vadd.f32 %v537, 1.0
  %v554 = vmul.f32 %v426, %v538
  %v555 = vmul.f32 %v427, %v539
  %v556 = vmul.f32 %v428, %v540
  %v557 = vmul.f32 %v429, %v541
  %v558 = vmul.f32 %v430, %v542
  %v559 = vmul.f32 %v431, %v543
  %v560 = vmul.f32 %v432, %v544
  %v561 = vmul.f32 %v433, %v545
  %v562 = vmul.f32 %v434, %v546
  %v563 = vmul.f32 %v435, %v547
  %v564 = vmul.f32 %v436, %v548
  %v565 = vmul.f32 %v437, %v549
  %v566 = vmul.f32 %v438, %v550
  %v567 = vmul.f32 %v439, %v551
  %v568 = vmul.f32 %v440, %v552
  %v569 = vmul.f32 %v441, %v553
  %v570 = vpack.c.bf16 %v558, %v554
  %v571 = vpack.c.bf16 %v559, %v555
  %v572 = vpack.c.bf16 %v560, %v556
  %v573 = vpack.c.bf16 %v561, %v557
  %v574 = vpack.c.bf16 %v566, %v562
  %v575 = vpack.c.bf16 %v567, %v563
  %v576 = vpack.c.bf16 %v568, %v564
  %v577 = vpack.c.bf16 %v569, %v565
  %v586 = vunpack.c.l.b16 %v570
  %v587 = vunpack.c.l.b16 %v571
  %v588 = vunpack.c.l.b16 %v572
  %v589 = vunpack.c.l.b16 %v573
  %v590 = vunpack.c.h.b16 %v570
  %v591 = vunpack.c.h.b16 %v571
  %v592 = vunpack.c.h.b16 %v572
  %v593 = vunpack.c.h.b16 %v573
  %v594 = vunpack.c.l.b16 %v574
  %v595 = vunpack.c.l.b16 %v575
  %v596 = vunpack.c.l.b16 %v576
  %v597 = vunpack.c.l.b16 %v577
  %v598 = vunpack.c.h.b16 %v574
  %v599 = vunpack.c.h.b16 %v575
  %v600 = vunpack.c.h.b16 %v576
  %v601 = vunpack.c.h.b16 %v577
  %v602 = vpack.c.b16 %v587, %v586
  %v603 = vpack.c.b16 %v589, %v588
  %v604 = vpack.c.b16 %v591, %v590
  %v605 = vpack.c.b16 %v593, %v592
  %v606 = vpack.c.b16 %v595, %v594
  %v607 = vpack.c.b16 %v597, %v596
  %v608 = vpack.c.b16 %v599, %v598
  %v609 = vpack.c.b16 %v601, %v600
  %618 = vst [vmem:[%s5] sm:$0xff] %v602
  %619 = vst [vmem:[%s5 + $0x8] sm:$0xff] %v603
  %620 = vst [vmem:[%s5 + $0x10] sm:$0xff] %v604
  %621 = vst [vmem:[%s5 + $0x18] sm:$0xff] %v605
  %622 = vst [vmem:[%s5 + $0x20] sm:$0xff] %v606
  %623 = vst [vmem:[%s5 + $0x28] sm:$0xff] %v607
  %624 = vst [vmem:[%s5 + $0x30] sm:$0xff] %v608
  %625 = vst [vmem:[%s5 + $0x38] sm:$0xff] %v609
  // Predicated region
  $region26: #{image_encoder_forward.17} parent=0 // pred_check
    _
  $region27: #{image_encoder_forward.17} parent=0 // pred_check_branch
    %627 = sbr.rel (0) target = $region29
  $region28: #{image_encoder_forward.17} parent=0 // pred_region
    _
  $region29: #{image_encoder_forward.17} parent=0 // pred_fallthru
    _
  // Predicated region
  $region30: #{image_encoder_forward.17} parent=0 // pred_check
    _
  $region31: #{image_encoder_forward.17} parent=0 // pred_check_branch
    %629 = sbr.rel (0) target = $region33
  $region32: #{image_encoder_forward.17} parent=0 // pred_region
    _
  $region33: #{image_encoder_forward.17} parent=0 // pred_fallthru
    _

// kernel: image_encoder_forward.18
$region0: #{image_encoder_forward.18}
  #allocation0 [shape = 'u32[]', space=smem, size = 0x4, offset = 0x4, fixed_abs, tag = 'smem constant byte address 0x4 - core index']
  #allocation1 [shape = 'u32[144,128]{1,0:T(1,128)}', space=vmem, size = 0x12000, scoped, tag = 'internal scratch']
  %s0 = inlined_call_operand.vmem [shape: bf16[32,512], index: 0, kind: input, shape index: {}]
  %s1 = inlined_call_operand.vmem [shape: bf16[512,128], index: 1, kind: input, shape index: {}]
  %s2 = inlined_call_operand.vmem [shape: f32[1,128], index: 2, kind: input, shape index: {}]
  %s3 = inlined_call_operand.vmem [shape: bf16[32,128], index: 3, kind: output, shape index: {}]
  %s4 = sld [smem:[#allocation0]]
  $region22: #{image_encoder_forward.18} parent=0
    _
  %s6 = ssub.s32 1, %s4
  %s7 = scalar_select 0, %s6, %s4
  // Predicated region
  $region2: #{image_encoder_forward.18} parent=0 // pred_check
    _
  $region3: #{image_encoder_forward.18} parent=0 // pred_check_branch
    %9 = sbr.rel (0) target = $region5
  $region4: #{image_encoder_forward.18} parent=0 // pred_region
    _
  $region5: #{image_encoder_forward.18} parent=0 // pred_fallthru
    _
  // Predicated region
  $region6: #{image_encoder_forward.18} parent=0 // pred_check
    _
  $region7: #{image_encoder_forward.18} parent=0 // pred_check_branch
    %11 = sbr.rel (0) target = $region9
  $region8: #{image_encoder_forward.18} parent=0 // pred_region
    _
  $region9: #{image_encoder_forward.18} parent=0 // pred_fallthru
    _
  // Predicated region
  $region10: #{image_encoder_forward.18} parent=0 // pred_check
    _
  $region11: #{image_encoder_forward.18} parent=0 // pred_check_branch
    %13 = sbr.rel (0) target = $region13
  $region12: #{image_encoder_forward.18} parent=0 // pred_region
    _
  $region13: #{image_encoder_forward.18} parent=0 // pred_fallthru
    _
  %v15 = vld [vmem:[%s0] sm:$0xff]
  %v16 = vld [vmem:[%s0 + $0x8] sm:$0xff]
  %v17 = vld [vmem:[%s0 + $0x10] sm:$0xff]
  %v18 = vld [vmem:[%s0 + $0x18] sm:$0xff]
  %v19 = vld [vmem:[%s0 + $0x20] sm:$0xff]
  %v20 = vld [vmem:[%s0 + $0x28] sm:$0xff]
  %v21 = vld [vmem:[%s0 + $0x30] sm:$0xff]
  %v22 = vld [vmem:[%s0 + $0x38] sm:$0xff]
  %v23 = vld [vmem:[%s1] sm:$0xf]
  %v24 = vld [vmem:[%s1 + $0x4] sm:$0xf]
  %v25 = vld [vmem:[%s1 + $0x8] sm:$0xf]
  %v26 = vld [vmem:[%s1 + $0xc] sm:$0xf]
  %v27 = vld [vmem:[%s1 + $0x10] sm:$0xf]
  %v28 = vld [vmem:[%s1 + $0x14] sm:$0xf]
  %v29 = vld [vmem:[%s1 + $0x18] sm:$0xf]
  %v30 = vld [vmem:[%s1 + $0x1c] sm:$0xf]
  %v31 = vld [vmem:[%s1 + $0x20] sm:$0xf]
  %v32 = vld [vmem:[%s1 + $0x24] sm:$0xf]
  %v33 = vld [vmem:[%s1 + $0x28] sm:$0xf]
  %v34 = vld [vmem:[%s1 + $0x2c] sm:$0xf]
  %v35 = vld [vmem:[%s1 + $0x30] sm:$0xf]
  %v36 = vld [vmem:[%s1 + $0x34] sm:$0xf]
  %v37 = vld [vmem:[%s1 + $0x38] sm:$0xf]
  %v38 = vld [vmem:[%s1 + $0x3c] sm:$0xf]
  %v39 = vld [vmem:[%s1 + $0x40] sm:$0xf]
  %v40 = vld [vmem:[%s1 + $0x44] sm:$0xf]
  %v41 = vld [vmem:[%s1 + $0x48] sm:$0xf]
  %v42 = vld [vmem:[%s1 + $0x4c] sm:$0xf]
  %v43 = vld [vmem:[%s1 + $0x50] sm:$0xf]
  %v44 = vld [vmem:[%s1 + $0x54] sm:$0xf]
  %v45 = vld [vmem:[%s1 + $0x58] sm:$0xf]
  %v46 = vld [vmem:[%s1 + $0x5c] sm:$0xf]
  %v47 = vld [vmem:[%s1 + $0x60] sm:$0xf]
  %v48 = vld [vmem:[%s1 + $0x64] sm:$0xf]
  %v49 = vld [vmem:[%s1 + $0x68] sm:$0xf]
  %v50 = vld [vmem:[%s1 + $0x6c] sm:$0xf]
  %v51 = vld [vmem:[%s1 + $0x70] sm:$0xf]
  %v52 = vld [vmem:[%s1 + $0x74] sm:$0xf]
  %v53 = vld [vmem:[%s1 + $0x78] sm:$0xf]
  %v54 = vld [vmem:[%s1 + $0x7c] sm:$0xf]
  %v55 = vld [vmem:[%s1 + $0x80] sm:$0xf]
  %v56 = vld [vmem:[%s1 + $0x84] sm:$0xf]
  %v57 = vld [vmem:[%s1 + $0x88] sm:$0xf]
  %v58 = vld [vmem:[%s1 + $0x8c] sm:$0xf]
  %v59 = vld [vmem:[%s1 + $0x90] sm:$0xf]
  %v60 = vld [vmem:[%s1 + $0x94] sm:$0xf]
  %v61 = vld [vmem:[%s1 + $0x98] sm:$0xf]
  %v62 = vld [vmem:[%s1 + $0x9c] sm:$0xf]
  %v63 = vld [vmem:[%s1 + $0xa0] sm:$0xf]
  %v64 = vld [vmem:[%s1 + $0xa4] sm:$0xf]
  %v65 = vld [vmem:[%s1 + $0xa8] sm:$0xf]
  %v66 = vld [vmem:[%s1 + $0xac] sm:$0xf]
  %v67 = vld [vmem:[%s1 + $0xb0] sm:$0xf]
  %v68 = vld [vmem:[%s1 + $0xb4] sm:$0xf]
  %v69 = vld [vmem:[%s1 + $0xb8] sm:$0xf]
  %v70 = vld [vmem:[%s1 + $0xbc] sm:$0xf]
  %v71 = vld [vmem:[%s1 + $0xc0] sm:$0xf]
  %v72 = vld [vmem:[%s1 + $0xc4] sm:$0xf]
  %v73 = vld [vmem:[%s1 + $0xc8] sm:$0xf]
  %v74 = vld [vmem:[%s1 + $0xcc] sm:$0xf]
  %v75 = vld [vmem:[%s1 + $0xd0] sm:$0xf]
  %v76 = vld [vmem:[%s1 + $0xd4] sm:$0xf]
  %v77 = vld [vmem:[%s1 + $0xd8] sm:$0xf]
  %v78 = vld [vmem:[%s1 + $0xdc] sm:$0xf]
  %v79 = vld [vmem:[%s1 + $0xe0] sm:$0xf]
  %v80 = vld [vmem:[%s1 + $0xe4] sm:$0xf]
  %v81 = vld [vmem:[%s1 + $0xe8] sm:$0xf]
  %v82 = vld [vmem:[%s1 + $0xec] sm:$0xf]
  %v83 = vld [vmem:[%s1 + $0xf0] sm:$0xf]
  %v84 = vld [vmem:[%s1 + $0xf4] sm:$0xf]
  %v85 = vld [vmem:[%s1 + $0xf8] sm:$0xf]
  %v86 = vld [vmem:[%s1 + $0xfc] sm:$0xf]
  %v87 = vld [vmem:[%s2] sm:$0x1]
  %v89 = vlaneseq
  %v90 = vshrl.u32 %v89, 7
  %v91 = vsub.s32 0, %v90
  %v92 = vrot.slane %v87, %v91
  %v102 = vunpack.c.l.b16 %v15
  %v103 = vunpack.c.h.b16 %v15
  %v104 = vunpack.c.l.b16 %v16
  %v105 = vunpack.c.h.b16 %v16
  %v106 = vunpack.c.l.b16 %v17
  %v107 = vunpack.c.h.b16 %v17
  %v108 = vunpack.c.l.b16 %v18
  %v109 = vunpack.c.h.b16 %v18
  %v110 = vunpack.c.l.b16 %v19
  %v111 = vunpack.c.h.b16 %v19
  %v112 = vunpack.c.l.b16 %v20
  %v113 = vunpack.c.h.b16 %v20
  %v114 = vunpack.c.l.b16 %v21
  %v115 = vunpack.c.h.b16 %v21
  %v116 = vunpack.c.l.b16 %v22
  %v117 = vunpack.c.h.b16 %v22
  %v118 = vpack.c.b16 %v106, %v102
  %v119 = vpack.c.b16 %v107, %v103
  %v120 = vpack.c.b16 %v108, %v104
  %v121 = vpack.c.b16 %v109, %v105
  %v122 = vpack.c.b16 %v114, %v110
  %v123 = vpack.c.b16 %v115, %v111
  %v124 = vpack.c.b16 %v116, %v112
  %v125 = vpack.c.b16 %v117, %v113
  %v198 = vunpack.c.l.b16 %v23
  %v199 = vunpack.c.l.b16 %v24
  %v200 = vunpack.c.l.b16 %v25
  %v201 = vunpack.c.l.b16 %v26
  %v202 = vunpack.c.l.b16 %v27
  %v203 = vunpack.c.l.b16 %v28
  %v204 = vunpack.c.l.b16 %v29
  %v205 = vunpack.c.l.b16 %v30
  %v206 = vunpack.c.l.b16 %v31
  %v207 = vunpack.c.l.b16 %v32
  %v208 = vunpack.c.l.b16 %v33
  %v209 = vunpack.c.l.b16 %v34
  %v210 = vunpack.c.l.b16 %v35
  %v211 = vunpack.c.l.b16 %v36
  %v212 = vunpack.c.l.b16 %v37
  %v213 = vunpack.c.l.b16 %v38
  %v214 = vunpack.c.l.b16 %v39
  %v215 = vunpack.c.l.b16 %v40
  %v216 = vunpack.c.l.b16 %v41
  %v217 = vunpack.c.l.b16 %v42
  %v218 = vunpack.c.l.b16 %v43
  %v219 = vunpack.c.l.b16 %v44
  %v220 = vunpack.c.l.b16 %v45
  %v221 = vunpack.c.l.b16 %v46
  %v222 = vunpack.c.l.b16 %v47
  %v223 = vunpack.c.l.b16 %v48
  %v224 = vunpack.c.l.b16 %v49
  %v225 = vunpack.c.l.b16 %v50
  %v226 = vunpack.c.l.b16 %v51
  %v227 = vunpack.c.l.b16 %v52
  %v228 = vunpack.c.l.b16 %v53
  %v229 = vunpack.c.l.b16 %v54
  %v230 = vunpack.c.l.b16 %v55
  %v231 = vunpack.c.l.b16 %v56
  %v232 = vunpack.c.l.b16 %v57
  %v233 = vunpack.c.l.b16 %v58
  %v234 = vunpack.c.l.b16 %v59
  %v235 = vunpack.c.l.b16 %v60
  %v236 = vunpack.c.l.b16 %v61
  %v237 = vunpack.c.l.b16 %v62
  %v238 = vunpack.c.l.b16 %v63
  %v239 = vunpack.c.l.b16 %v64
  %v240 = vunpack.c.l.b16 %v65
  %v241 = vunpack.c.l.b16 %v66
  %v242 = vunpack.c.l.b16 %v67
  %v243 = vunpack.c.l.b16 %v68
  %v244 = vunpack.c.l.b16 %v69
  %v245 = vunpack.c.l.b16 %v70
  %v246 = vunpack.c.l.b16 %v71
  %v247 = vunpack.c.l.b16 %v72
  %v248 = vunpack.c.l.b16 %v73
  %v249 = vunpack.c.l.b16 %v74
  %v250 = vunpack.c.l.b16 %v75
  %v251 = vunpack.c.l.b16 %v76
  %v252 = vunpack.c.l.b16 %v77
  %v253 = vunpack.c.l.b16 %v78
  %v254 = vunpack.c.l.b16 %v79
  %v255 = vunpack.c.l.b16 %v80
  %v256 = vunpack.c.l.b16 %v81
  %v257 = vunpack.c.l.b16 %v82
  %v258 = vunpack.c.l.b16 %v83
  %v259 = vunpack.c.l.b16 %v84
  %v260 = vunpack.c.l.b16 %v85
  %v261 = vunpack.c.l.b16 %v86
  %v262 = vpack.c.b16 %v199, %v198
  %v263 = vpack.c.b16 %v201, %v200
  %v264 = vpack.c.b16 %v203, %v202
  %v265 = vpack.c.b16 %v205, %v204
  %v266 = vpack.c.b16 %v207, %v206
  %v267 = vpack.c.b16 %v209, %v208
  %v268 = vpack.c.b16 %v211, %v210
  %v269 = vpack.c.b16 %v213, %v212
  %v270 = vpack.c.b16 %v215, %v214
  %v271 = vpack.c.b16 %v217, %v216
  %v272 = vpack.c.b16 %v219, %v218
  %v273 = vpack.c.b16 %v221, %v220
  %v274 = vpack.c.b16 %v223, %v222
  %v275 = vpack.c.b16 %v225, %v224
  %v276 = vpack.c.b16 %v227, %v226
  %v277 = vpack.c.b16 %v229, %v228
  %v278 = vpack.c.b16 %v231, %v230
  %v279 = vpack.c.b16 %v233, %v232
  %v280 = vpack.c.b16 %v235, %v234
  %v281 = vpack.c.b16 %v237, %v236
  %v282 = vpack.c.b16 %v239, %v238
  %v283 = vpack.c.b16 %v241, %v240
  %v284 = vpack.c.b16 %v243, %v242
  %v285 = vpack.c.b16 %v245, %v244
  %v286 = vpack.c.b16 %v247, %v246
  %v287 = vpack.c.b16 %v249, %v248
  %v288 = vpack.c.b16 %v251, %v250
  %v289 = vpack.c.b16 %v253, %v252
  %v290 = vpack.c.b16 %v255, %v254
  %v291 = vpack.c.b16 %v257, %v256
  %v292 = vpack.c.b16 %v259, %v258
  %v293 = vpack.c.b16 %v261, %v260
  %326 = vmatprep.subr.bf16.mxu0 0
  %327 = vmatpush1.bf16.msra.mxu0 %v262
  %328 = vmatprep.subr.bf16.mxu0 0
  %329 = vmatpush1.bf16.msra.mxu0 %v263
  %330 = vmatprep.subr.bf16.mxu0 0
  %331 = vmatpush1.bf16.msra.mxu0 %v264
  %332 = vmatprep.subr.bf16.mxu0 0
  %333 = vmatpush1.bf16.msra.mxu0 %v265
  %334 = vmatprep.subr.bf16.mxu0 0
  %335 = vmatpush1.bf16.msra.mxu0 %v266
  %336 = vmatprep.subr.bf16.mxu0 0
  %337 = vmatpush1.bf16.msra.mxu0 %v267
  %338 = vmatprep.subr.bf16.mxu0 0
  %339 = vmatpush1.bf16.msra.mxu0 %v268
  %340 = vmatprep.subr.bf16.mxu0 0
  %341 = vmatpush1.bf16.msra.mxu0 %v269
  %342 = vmatprep.subr.bf16.mxu0 0
  %343 = vmatpush1.bf16.msra.mxu0 %v270
  %344 = vmatprep.subr.bf16.mxu0 0
  %345 = vmatpush1.bf16.msra.mxu0 %v271
  %346 = vmatprep.subr.bf16.mxu0 0
  %347 = vmatpush1.bf16.msra.mxu0 %v272
  %348 = vmatprep.subr.bf16.mxu0 0
  %349 = vmatpush1.bf16.msra.mxu0 %v273
  %350 = vmatprep.subr.bf16.mxu0 0
  %351 = vmatpush1.bf16.msra.mxu0 %v274
  %352 = vmatprep.subr.bf16.mxu0 0
  %353 = vmatpush1.bf16.msra.mxu0 %v275
  %354 = vmatprep.subr.bf16.mxu0 0
  %355 = vmatpush1.bf16.msra.mxu0 %v276
  %356 = vmatprep.subr.bf16.mxu0 0
  %357 = vmatpush1.bf16.msra.mxu0 %v277
  %358 = vmatprep.mubr.bf16.mxu0 %v119
  %359 = vmatmul.mubr.bf16.gmra.mrb[0].mxu0 %v118
  %v360 = vpop.f32.mrb[0].mxu0
  %v361 = vadd.f32 %v92, %v360
  %v362 = vpop.f32.mrb[0].mxu0
  %v363 = vpop.f32.mrb[0].mxu0
  %v364 = vadd.f32 %v92, %v363
  %v365 = vpop.f32.mrb[0].mxu0
  %366 = vmatprep.mubr.bf16.mxu0 %v123
  %367 = vmatmul.mubr.bf16.gmra.mrb[0].mxu0 %v122
  %v368 = vpop.f32.mrb[0].mxu0
  %v369 = vadd.f32 %v92, %v368
  %v370 = vpop.f32.mrb[0].mxu0
  %v371 = vpop.f32.mrb[0].mxu0
  %v372 = vadd.f32 %v92, %v371
  %v373 = vpop.f32.mrb[0].mxu0
  %374 = vdwg.mxu0
  %375 = vmatprep.subr.bf16.mxu0 0
  %376 = vmatpush1.bf16.msra.mxu0 %v278
  %377 = vmatprep.subr.bf16.mxu0 0
  %378 = vmatpush1.bf16.msra.mxu0 %v279
  %379 = vmatprep.subr.bf16.mxu0 0
  %380 = vmatpush1.bf16.msra.mxu0 %v280
  %381 = vmatprep.subr.bf16.mxu0 0
  %382 = vmatpush1.bf16.msra.mxu0 %v281
  %383 = vmatprep.subr.bf16.mxu0 0
  %384 = vmatpush1.bf16.msra.mxu0 %v282
  %385 = vmatprep.subr.bf16.mxu0 0
  %386 = vmatpush1.bf16.msra.mxu0 %v283
  %387 = vmatprep.subr.bf16.mxu0 0
  %388 = vmatpush1.bf16.msra.mxu0 %v284
  %389 = vmatprep.subr.bf16.mxu0 0
  %390 = vmatpush1.bf16.msra.mxu0 %v285
  %391 = vmatprep.subr.bf16.mxu0 0
  %392 = vmatpush1.bf16.msra.mxu0 %v286
  %393 = vmatprep.subr.bf16.mxu0 0
  %394 = vmatpush1.bf16.msra.mxu0 %v287
  %395 = vmatprep.subr.bf16.mxu0 0
  %396 = vmatpush1.bf16.msra.mxu0 %v288
  %397 = vmatprep.subr.bf16.mxu0 0
  %398 = vmatpush1.bf16.msra.mxu0 %v289
  %399 = vmatprep.subr.bf16.mxu0 0
  %400 = vmatpush1.bf16.msra.mxu0 %v290
  %401 = vmatprep.subr.bf16.mxu0 0
  %402 = vmatpush1.bf16.msra.mxu0 %v291
  %403 = vmatprep.subr.bf16.mxu0 0
  %404 = vmatpush1.bf16.msra.mxu0 %v292
  %405 = vmatprep.subr.bf16.mxu0 0
  %406 = vmatpush1.bf16.msra.mxu0 %v293
  %407 = vmatprep.mubr.bf16.mxu0 %v121
  %408 = vmatmul.mubr.bf16.gmra.mrb[0].mxu0 %v120
  %v409 = vpop.f32.mrb[0].mxu0
  %v410 = vadd.f32 %v361, %v409
  %v411 = vpop.f32.mrb[0].mxu0
  %v412 = vpop.f32.mrb[0].mxu0
  %v413 = vadd.f32 %v364, %v412
  %v414 = vpop.f32.mrb[0].mxu0
  %415 = vmatprep.mubr.bf16.mxu0 %v125
  %416 = vmatmul.mubr.bf16.gmra.mrb[0].mxu0 %v124
  %v417 = vpop.f32.mrb[0].mxu0
  %v418 = vadd.f32 %v369, %v417
  %v419 = vpop.f32.mrb[0].mxu0
  %v420 = vpop.f32.mrb[0].mxu0
  %v421 = vadd.f32 %v372, %v420
  %v422 = vpop.f32.mrb[0].mxu0
  %423 = vdwg.mxu0
  %v424 = vpack.c.bf16 %v413, %v410
  %v425 = vpack.c.bf16 %v421, %v418
  %v428 = vunpack.c.l.b16 %v424
  %v429 = vunpack.c.h.b16 %v424
  %v430 = vunpack.c.l.b16 %v425
  %v431 = vunpack.c.h.b16 %v425
  %v432 = vpack.c.b16 %v428, %v428
  %v433 = vpack.c.b16 %v429, %v429
  %v434 = vpack.c.b16 %v430, %v430
  %v435 = vpack.c.b16 %v431, %v431
  %440 = vst [vmem:[%s3] sm:$0xf] %v432
  %441 = vst [vmem:[%s3 + $0x4] sm:$0xf] %v433
  %442 = vst [vmem:[%s3 + $0x8] sm:$0xf] %v434
  %443 = vst [vmem:[%s3 + $0xc] sm:$0xf] %v435
  // Predicated region
  $region14: #{image_encoder_forward.18} parent=0 // pred_check
    _
  $region15: #{image_encoder_forward.18} parent=0 // pred_check_branch
    %445 = sbr.rel (0) target = $region17
  $region16: #{image_encoder_forward.18} parent=0 // pred_region
    _
  $region17: #{image_encoder_forward.18} parent=0 // pred_fallthru
    _
  // Predicated region
  $region18: #{image_encoder_forward.18} parent=0 // pred_check
    _
  $region19: #{image_encoder_forward.18} parent=0 // pred_check_branch
    %447 = sbr.rel (0) target = $region21
  $region20: #{image_encoder_forward.18} parent=0 // pred_region
    _
  $region21: #{image_encoder_forward.18} parent=0 // pred_fallthru
    _

// kernel: image_encoder_forward.25
$region0: #{image_encoder_forward.25}
  #allocation0 [shape = 'u32[]', space=smem, size = 0x4, offset = 0x4, fixed_abs, tag = 'smem constant byte address 0x4 - core index']
  #allocation1 [shape = 'u32[144,128]{1,0:T(1,128)}', space=vmem, size = 0x12000, scoped, tag = 'internal scratch']
  %s0 = inlined_call_operand.vmem [shape: bf16[2,6,6,32], index: 0, kind: input, shape index: {}]
  %s1 = inlined_call_operand.vmem [shape: bf16[3,3,32,32], index: 1, kind: input, shape index: {}]
  %s2 = inlined_call_operand.vmem [shape: f32[1,32], index: 2, kind: input, shape index: {}]
  %s3 = inlined_call_operand.vmem [shape: f32[1,32], index: 3, kind: input, shape index: {}]
  %s4 = inlined_call_operand.hbm [shape: f32[2,4,4,32], index: 4, kind: output, shape index: {}]
  %s5 = sld [smem:[#allocation0]]
  $region49: #{image_encoder_forward.25} parent=0
    _
  %s7 = ssub.s32 1, %s5
  %s8 = scalar_select 0, %s7, %s5
  $region1: #{image_encoder_forward.25} parent=0
    #allocation2 [shape = 'u8[16384]{0}', space=vmem, size = 0x4000, scoped, tag = 'output window, operand 0']
    #allocation3 [shape = 's32[2]{0}', space=sflag, size = 0x8, scoped, tag = 'scoped memory for image_encoder_forward.25']
    %9 = vsyncpa [#allocation3], 0
    %s10 = scalar_lea.sflag [#allocation3], 1
    %11 = vsyncpa %s10, 0
    loop: start=0, step=1, limit=4
    $region2: #{image_encoder_forward.25} parent=1 // loop_pre_header
      _
    $region3: #{image_encoder_forward.25} parent=1 // loop_header
      %s13 = sphi 0, %s17
      %p14 = scmp.ge.s32.totalorder %s13, 4
      %s20 = sphi 0, %s32
      %s21 = sphi 0, %s28
      %s22 = sphi 0, %s20
      %s23 = sphi 0, %s21
      %s24 = sphi 0, %s22
      %s25 = sphi 0, %s23
      %s35 = sphi 0, %s37
      %s38 = sphi 0, %s35
      %s39 = sphi 0, %s38
      %s55 = sphi 0, %s39
      %s59 = sphi 0, %s59
      %s61 = sphi 0, %s59
      %s62 = sphi 0, %s61
      %s76 = sphi 0, %s62
      %s80 = sphi 0, %s80
      %s82 = sphi 0, %s80
      %s83 = sphi 0, %s82
      %s97 = sphi 0, %s83
      %s101 = sphi 0, %s101
      %s103 = sphi 0, %s101
      %s104 = sphi 0, %s103
      %s118 = sphi 0, %s104
      %s126 = sphi 0, %s128
      %s129 = sphi 0, %s126
      %s130 = sphi 0, %s129
      %s146 = sphi 0, %s130
    $region4: #{image_encoder_forward.25} parent=1 // loop_header_branch
      %16 = sbr.rel (%p14) target = $region8
    $region5: #{image_encoder_forward.25} parent=1 // loop_body
      %s18 = ssub.s32 %s13, 1
      %s19 = ssub.s32 %s13, 2
      %s26 = sadd.s32 1, %s21
      %p27 = scmp.ge.s32.totalorder %s26, 1
      %s28 = scalar_select %p27, 0, %s26
      %s29 = sadd.s32 1, %s20
      %s30 = scalar_select %p27, %s29, %s20
      %p31 = scmp.ge.s32.totalorder %s30, 2
      %s32 = scalar_select %p31, 0, %s30
      %s33 = ssub.s32 %s20, %s32
      %p34 = scmp.eq.s32.totalorder %s33, 0
      %s36 = sadd.s32 %s35, 1
      %s37 = scalar_select %p34, %s35, %s36
      %p40 = pneg %p34
      %p41 = scmp.eq.s32.totalorder %s13, 1
      %p42 = por %p40, %p41
      %p43 = scmp.ne.s32.totalorder %s35, %s38
      %p44 = scmp.eq.s32.totalorder %s13, 0
      %p45 = por %p43, %p44
      %p46 = scmp.ne.s32.totalorder %s35, %s38
      %p47 = scmp.eq.s32.totalorder %s18, 1
      %p48 = por %p46, %p47
      %p49 = scmp.ne.s32.totalorder %s38, %s39
      %p50 = scmp.eq.s32.totalorder %s18, 0
      %p51 = por %p49, %p50
      %p52 = scmp.ne.s32.totalorder %s38, %s39
      %p53 = scmp.eq.s32.totalorder %s19, 1
      %p54 = por %p52, %p53
      %p56 = scmp.ne.s32.totalorder %s39, %s55
      %p57 = scmp.eq.s32.totalorder %s19, 0
      %p58 = por %p56, %p57
      %s60 = sadd.s32 %s59, 1
      %p63 = scmp.eq.s32.totalorder %s13, 1
      %p64 = scmp.ne.s32.totalorder %s59, %s61
      %p65 = scmp.eq.s32.totalorder %s13, 0
      %p66 = por %p64, %p65
      %p67 = scmp.ne.s32.totalorder %s59, %s61
      %p68 = scmp.eq.s32.totalorder %s18, 1
      %p69 = por %p67, %p68
      %p70 = scmp.ne.s32.totalorder %s61, %s62
      %p71 = scmp.eq.s32.totalorder %s18, 0
      %p72 = por %p70, %p71
      %p73 = scmp.ne.s32.totalorder %s61, %s62
      %p74 = scmp.eq.s32.totalorder %s19, 1
      %p75 = por %p73, %p74
      %p77 = scmp.ne.s32.totalorder %s62, %s76
      %p78 = scmp.eq.s32.totalorder %s19, 0
      %p79 = por %p77, %p78
      %s81 = sadd.s32 %s80, 1
      %p84 = scmp.eq.s32.totalorder %s13, 1
      %p85 = scmp.ne.s32.totalorder %s80, %s82
      %p86 = scmp.eq.s32.totalorder %s13, 0
      %p87 = por %p85, %p86
      %p88 = scmp.ne.s32.totalorder %s80, %s82
      %p89 = scmp.eq.s32.totalorder %s18, 1
      %p90 = por %p88, %p89
      %p91 = scmp.ne.s32.totalorder %s82, %s83
      %p92 = scmp.eq.s32.totalorder %s18, 0
      %p93 = por %p91, %p92
      %p94 = scmp.ne.s32.totalorder %s82, %s83
      %p95 = scmp.eq.s32.totalorder %s19, 1
      %p96 = por %p94, %p95
      %p98 = scmp.ne.s32.totalorder %s83, %s97
      %p99 = scmp.eq.s32.totalorder %s19, 0
      %p100 = por %p98, %p99
      %s102 = sadd.s32 %s101, 1
      %p105 = scmp.eq.s32.totalorder %s13, 1
      %p106 = scmp.ne.s32.totalorder %s101, %s103
      %p107 = scmp.eq.s32.totalorder %s13, 0
      %p108 = por %p106, %p107
      %p109 = scmp.ne.s32.totalorder %s101, %s103
      %p110 = scmp.eq.s32.totalorder %s18, 1
      %p111 = por %p109, %p110
      %p112 = scmp.ne.s32.totalorder %s103, %s104
      %p113 = scmp.eq.s32.totalorder %s18, 0
      %p114 = por %p112, %p113
      %p115 = scmp.ne.s32.totalorder %s103, %s104
      %p116 = scmp.eq.s32.totalorder %s19, 1
      %p117 = por %p115, %p116
      %p119 = scmp.ne.s32.totalorder %s104, %s118
      %p120 = scmp.eq.s32.totalorder %s19, 0
      %p121 = por %p119, %p120
      %s122 = ssub.s32 %s20, %s32
      %s123 = ssub.s32 %s21, %s28
      %s124 = sor.u32 %s122, %s123
      %p125 = scmp.eq.s32.totalorder %s124, 0
      %s127 = sadd.s32 %s126, 1
      %s128 = scalar_select %p125, %s126, %s127
      %p131 = pneg %p125
      %p132 = scmp.eq.s32.totalorder %s13, 1
      %p133 = por %p131, %p132
      %p134 = scmp.ne.s32.totalorder %s126, %s129
      %p135 = scmp.eq.s32.totalorder %s13, 0
      %p136 = por %p134, %p135
      %p137 = scmp.ne.s32.totalorder %s126, %s129
      %p138 = scmp.eq.s32.totalorder %s18, 1
      %p139 = por %p137, %p138
      %p140 = scmp.ne.s32.totalorder %s129, %s130
      %p141 = scmp.eq.s32.totalorder %s18, 0
      %p142 = por %p140, %p141
      %p143 = scmp.ne.s32.totalorder %s129, %s130
      %p144 = scmp.eq.s32.totalorder %s19, 1
      %p145 = por %p143, %p144
      %p147 = scmp.ne.s32.totalorder %s130, %s146
      %p148 = scmp.eq.s32.totalorder %s19, 0
      %p149 = por %p147, %p148
      %p150 = scmp.le.s32.totalorder 1, %s13
      %p151 = scmp.lt.s32.totalorder %s13, 3
      %p152 = pnand %p150, %p151
      %p153 = pneg %p152
      // Predicated region
      $region9: #{image_encoder_forward.25} parent=5 // pred_check
        _
      $region10: #{image_encoder_forward.25} parent=5 // pred_check_branch
        %155 = sbr.rel (%p152) target = $region12
      $region11: #{image_encoder_forward.25} parent=5 // pred_region
        %s156 = ssub.s32 %s13, 1
        // Predicated region
        $region13: #{image_encoder_forward.25} parent=11 // pred_check
          %p157 = pneg %p72
        $region14: #{image_encoder_forward.25} parent=11 // pred_check_branch
          %159 = sbr.rel (%p157) target = $region16
        $region15: #{image_encoder_forward.25} parent=11 // pred_region
          _
        $region16: #{image_encoder_forward.25} parent=11 // pred_fallthru
          _
        // Predicated region
        $region17: #{image_encoder_forward.25} parent=11 // pred_check
          %p160 = pneg %p93
        $region18: #{image_encoder_forward.25} parent=11 // pred_check_branch
          %162 = sbr.rel (%p160) target = $region20
        $region19: #{image_encoder_forward.25} parent=11 // pred_region
          _
        $region20: #{image_encoder_forward.25} parent=11 // pred_fallthru
          _
        // Predicated region
        $region21: #{image_encoder_forward.25} parent=11 // pred_check
          %p163 = pneg %p114
        $region22: #{image_encoder_forward.25} parent=11 // pred_check_branch
          %165 = sbr.rel (%p163) target = $region24
        $region23: #{image_encoder_forward.25} parent=11 // pred_region
          _
        $region24: #{image_encoder_forward.25} parent=11 // pred_fallthru
          _
      $region12: #{image_encoder_forward.25} parent=5 // pred_fallthru
        _
      %p166 = scmp.lt.s32.totalorder %s13, 2
      // Predicated region
      $region25: #{image_encoder_forward.25} parent=5 // pred_check
        %p167 = pneg %p166
      $region26: #{image_encoder_forward.25} parent=5 // pred_check_branch
        %169 = sbr.rel (%p167) target = $region28
      $region27: #{image_encoder_forward.25} parent=5 // pred_region
        // Predicated region
        $region29: #{image_encoder_forward.25} parent=27 // pred_check
          %p170 = pneg %p45
        $region30: #{image_encoder_forward.25} parent=27 // pred_check_branch
          %172 = sbr.rel (%p170) target = $region32
        $region31: #{image_encoder_forward.25} parent=27 // pred_region
          %p173 = scmp.lt.s32.totalorder %s20, 1
          %s174 = scalar_select %p173, %s20, 1
          %s175 = smul.addr %s174, 6
          %s176 = smul.addr %s175, 4
          %s177 = scalar_lea.vmem %s0, %s176
        $region32: #{image_encoder_forward.25} parent=27 // pred_fallthru
          _
      $region28: #{image_encoder_forward.25} parent=5 // pred_fallthru
        _
      %p178 = scmp.le.s32.totalorder 1, %s13
      %p179 = scmp.lt.s32.totalorder %s13, 3
      %p180 = pnand %p178, %p179
      %p181 = pneg %p180
      // Predicated region
      $region33: #{image_encoder_forward.25} parent=5 // pred_check
        _
      $region34: #{image_encoder_forward.25} parent=5 // pred_check_branch
        %183 = sbr.rel (%p180) target = $region36
      $region35: #{image_encoder_forward.25} parent=5 // pred_region
        %s184 = ssub.s32 %s13, 1
        %p185 = scmp.lt.s32.totalorder %s22, 1
        %s186 = scalar_select %p185, %s22, 1
        %s187 = smul.addr %s186, 6
        %s188 = smul.addr %s187, 4
        %s189 = scalar_lea.vmem %s0, %s188
        %p190 = pneg %p51
        %p191 = pneg %p48
        %p192 = pneg %p72
        %p193 = pneg %p69
        %p194 = pneg %p93
        %p195 = pneg %p90
        %p196 = pneg %p114
        %p197 = pneg %p111
        %p198 = pneg %p142
        %p199 = pneg %p139
        %s200 = sand.u32 %s129, 1
        %s201 = scalar_lea.sflag [#allocation3], %s200
        %s202 = sand.u32 %s129, 1
        %s203 = smul.addr %s202, 16
        %s204 = scalar_lea.vmem [#allocation2], %s203
        %p205 = scmp.lt.s32.totalorder %s22, 1
        %s206 = scalar_select %p205, %s22, 1
        %s207 = smul.addr %s206, 6
        %s208 = smul.addr %s207, 4
        %s209 = scalar_lea.vmem %s0, %s208
        %s210 = smul.u32 4, %s23
        %s212 = smul.u32 %s23, 4
        %s213 = smul.addr %s212, 4
        %s214 = scalar_lea.vmem %s209, %s213
        %v215 = vld [vmem:[%s214] sm:$0x7]
        %v216 = vld [vmem:[%s214 + $0x4] sm:$0x7]
        %v217 = vld [vmem:[%s214 + $0x8] sm:$0x7]
        %v218 = vld [vmem:[%s214 + $0xc] sm:$0x7]
        %v219 = vld [vmem:[%s1] sm:$0xf]
        %v220 = vld [vmem:[%s1 + $0x4] sm:$0xf]
        %v221 = vld [vmem:[%s1 + $0x8] sm:$0xf]
        %v222 = vld [vmem:[%s1 + $0xc] sm:$0xf]
        %v228 = vunpack.c.l.s4 1983009808
        %v229 = vunpack.c.0.s8 %v228
        %v230 = vlaneseq
        %v231 = vshrl.u32 %v230, 7
        %v232 = vsub.s32 %v229, %v231
        %v233 = vrot.slane %v215, %v232
        %v234 = vcombine.high %v233, %v233
        %v236 = vunpack.c.l.s4 1983009808
        %v237 = vunpack.c.0.s8 %v236
        %v238 = vlaneseq
        %v239 = vshrl.u32 %v238, 7
        %v240 = vsub.s32 %v237, %v239
        %v241 = vrot.slane %v216, %v240
        %v242 = vcombine.high %v241, %v241
        %v244 = vunpack.c.l.s4 1983009808
        %v245 = vunpack.c.0.s8 %v244
        %v246 = vlaneseq
        %v247 = vshrl.u32 %v246, 7
        %v248 = vsub.s32 %v245, %v247
        %v249 = vrot.slane %v217, %v248
        %v250 = vcombine.high %v249, %v249
        %v252 = vunpack.c.l.s4 1983009808
        %v253 = vunpack.c.0.s8 %v252
        %v254 = vlaneseq
        %v255 = vshrl.u32 %v254, 7
        %v256 = vsub.s32 %v253, %v255
        %v257 = vrot.slane %v218, %v256
        %v258 = vcombine.high %v257, %v257
        %vm259 = vsmask.f32 1280
        %vm260 = vsmask.f32 3336
        %vm261 = vmor %vm259, %vm260
        %vm262 = vsmask.f32 5392
        %vm263 = vmor %vm261, %vm262
        %vm264 = vsmask.f32 7448
        %vm265 = vmor %vm263, %vm264
        %v267 = vshrl.u32 %v233, 16
        %v269 = vrot.slane %v267, 6
        %v270 = vshll.u32 %v233, 16
        %v272 = vrot.slane %v270, 7
        %v273 = vor.u32 %v269, %v272
        %v274 = vrot.slane %v273, 2
        %v276 = vshll.u32 %v234, 16
        %v278 = vrot.slane %v276, 7
        %v279 = vsel %vm265, %v274, %v278
        %v281 = vshrl.u32 %v241, 16
        %v283 = vrot.slane %v281, 6
        %v284 = vshll.u32 %v241, 16
        %v286 = vrot.slane %v284, 7
        %v287 = vor.u32 %v283, %v286
        %v288 = vrot.slane %v287, 2
        %v290 = vshll.u32 %v242, 16
        %v292 = vrot.slane %v290, 7
        %v293 = vsel %vm265, %v288, %v292
        %v295 = vshrl.u32 %v249, 16
        %v297 = vrot.slane %v295, 6
        %v298 = vshll.u32 %v249, 16
        %v300 = vrot.slane %v298, 7
        %v301 = vor.u32 %v297, %v300
        %v302 = vrot.slane %v301, 2
        %v304 = vshll.u32 %v250, 16
        %v306 = vrot.slane %v304, 7
        %v307 = vsel %vm265, %v302, %v306
        %v309 = vshrl.u32 %v257, 16
        %v311 = vrot.slane %v309, 6
        %v312 = vshll.u32 %v257, 16
        %v314 = vrot.slane %v312, 7
        %v315 = vor.u32 %v311, %v314
        %v316 = vrot.slane %v315, 2
        %v318 = vshll.u32 %v258, 16
        %v320 = vrot.slane %v318, 7
        %v321 = vsel %vm265, %v316, %v320
        %s322 = scalar_lea.vmem %s1, 16
        %v323 = vld [vmem:[%s322] sm:$0xf]
        %v324 = vld [vmem:[%s322 + $0x4] sm:$0xf]
        %v325 = vld [vmem:[%s322 + $0x8] sm:$0xf]
        %v326 = vld [vmem:[%s322 + $0xc] sm:$0xf]
        %v327 = vcombine.low %v279, %v293
        %v328 = vcombine.low %v307, %v321
        %v330 = vunpack.c.l.s4 1983009808
        %v331 = vunpack.c.0.s8 %v330
        %v332 = vlaneseq
        %v333 = vshrl.u32 %v332, 7
        %v334 = vsub.s32 %v331, %v333
        %v335 = vrot.slane %v327, %v334
        %v337 = vunpack.c.l.s4 1983009808
        %v338 = vunpack.c.0.s8 %v337
        %v339 = vlaneseq
        %v340 = vshrl.u32 %v339, 7
        %v341 = vsub.s32 %v338, %v340
        %v342 = vrot.slane %v328, %v341
        %v343 = vcombine.low %v335, %v342
        %v348 = vunpack.c.l.b16 %v323
        %v349 = vunpack.c.l.b16 %v324
        %v350 = vunpack.c.l.b16 %v325
        %v351 = vunpack.c.l.b16 %v326
        %v352 = vpack.c.b16 %v349, %v348
        %v353 = vpack.c.b16 %v351, %v350
        %vm356 = vcmask 261120
        %v358 = vsel %vm356, %v343, 0
        %360 = vmatprep.subr.bf16.mxu0 0
        %361 = vmatpush1.bf16.msra.mxu0 %v352
        %362 = vmatprep.subr.bf16.mxu0 0
        %363 = vmatpush1.bf16.msra.mxu0 %v353
        %364 = vmatprep.subr.bf16.mxu0 0
        %365 = vmatpush1.bf16.msra.mxu0 0
        %366 = vmatprep.subr.bf16.mxu0 0
        %367 = vmatpush1.bf16.msra.mxu0 0
        %368 = vmatprep.subr.bf16.mxu0 0
        %369 = vmatpush1.bf16.msra.mxu0 0
        %370 = vmatprep.subr.bf16.mxu0 0
        %371 = vmatpush1.bf16.msra.mxu0 0
        %372 = vmatprep.subr.bf16.mxu0 0
        %373 = vmatpush1.bf16.msra.mxu0 0
        %374 = vmatprep.subr.bf16.mxu0 0
        %375 = vmatpush1.bf16.msra.mxu0 0
        %376 = vmatprep.subr.bf16.mxu0 0
        %377 = vmatpush1.bf16.msra.mxu0 0
        %378 = vmatprep.subr.bf16.mxu0 0
        %379 = vmatpush1.bf16.msra.mxu0 0
        %380 = vmatprep.subr.bf16.mxu0 0
        %381 = vmatpush1.bf16.msra.mxu0 0
        %382 = vmatprep.subr.bf16.mxu0 0
        %383 = vmatpush1.bf16.msra.mxu0 0
        %384 = vmatprep.subr.bf16.mxu0 0
        %385 = vmatpush1.bf16.msra.mxu0 0
        %386 = vmatprep.subr.bf16.mxu0 0
        %387 = vmatpush1.bf16.msra.mxu0 0
        %388 = vmatprep.subr.bf16.mxu0 0
        %389 = vmatpush1.bf16.msra.mxu0 0
        %390 = vmatprep.subr.bf16.mxu0 0
        %391 = vmatpush1.bf16.msra.mxu0 0
        %392 = vmatprep.mubr.bf16.mxu0 0
        %393 = vmatmul.mubr.bf16.gmra.mrb[0].mxu0 %v358
        %v394 = vpop.f32.mrb[0].mxu0
        %v395 = vadd.f32 0.0, %v394
        %v396 = vpop.f32.mrb[0].mxu0
        %v397 = vpop.f32.mrb[0].mxu0
        %v398 = vadd.f32 0.0, %v397
        %v399 = vpop.f32.mrb[0].mxu0
        %400 = vdwg.mxu0
        %v401 = vcombine.low %v215, %v216
        %v402 = vcombine.low %v217, %v218
        %v404 = vunpack.c.l.s4 1983009808
        %v405 = vunpack.c.0.s8 %v404
        %v406 = vlaneseq
        %v407 = vshrl.u32 %v406, 7
        %v408 = vsub.s32 %v405, %v407
        %v409 = vrot.slane %v401, %v408
        %v411 = vunpack.c.l.s4 1983009808
        %v412 = vunpack.c.0.s8 %v411
        %v413 = vlaneseq
        %v414 = vshrl.u32 %v413, 7
        %v415 = vsub.s32 %v412, %v414
        %v416 = vrot.slane %v402, %v415
        %v417 = vcombine.low %v409, %v416
        %v422 = vunpack.c.l.b16 %v219
        %v423 = vunpack.c.l.b16 %v220
        %v424 = vunpack.c.l.b16 %v221
        %v425 = vunpack.c.l.b16 %v222
        %v426 = vpack.c.b16 %v423, %v422
        %v427 = vpack.c.b16 %v425, %v424
        %v431 = vsel %vm356, %v417, 0
        %433 = vmatprep.subr.bf16.mxu0 0
        %434 = vmatpush1.bf16.msra.mxu0 %v426
        %435 = vmatprep.subr.bf16.mxu0 0
        %436 = vmatpush1.bf16.msra.mxu0 %v427
        %437 = vmatprep.subr.bf16.mxu0 0
        %438 = vmatpush1.bf16.msra.mxu0 0
        %439 = vmatprep.subr.bf16.mxu0 0
        %440 = vmatpush1.bf16.msra.mxu0 0
        %441 = vmatprep.subr.bf16.mxu0 0
        %442 = vmatpush1.bf16.msra.mxu0 0
        %443 = vmatprep.subr.bf16.mxu0 0
        %444 = vmatpush1.bf16.msra.mxu0 0
        %445 = vmatprep.subr.bf16.mxu0 0
        %446 = vmatpush1.bf16.msra.mxu0 0
        %447 = vmatprep.subr.bf16.mxu0 0
        %448 = vmatpush1.bf16.msra.mxu0 0
        %449 = vmatprep.subr.bf16.mxu0 0
        %450 = vmatpush1.bf16.msra.mxu0 0
        %451 = vmatprep.subr.bf16.mxu0 0
        %452 = vmatpush1.bf16.msra.mxu0 0
        %453 = vmatprep.subr.bf16.mxu0 0
        %454 = vmatpush1.bf16.msra.mxu0 0
        %455 = vmatprep.subr.bf16.mxu0 0
        %456 = vmatpush1.bf16.msra.mxu0 0
        %457 = vmatprep.subr.bf16.mxu0 0
        %458 = vmatpush1.bf16.msra.mxu0 0
        %459 = vmatprep.subr.bf16.mxu0 0
        %460 = vmatpush1.bf16.msra.mxu0 0
        %461 = vmatprep.subr.bf16.mxu0 0
        %462 = vmatpush1.bf16.msra.mxu0 0
        %463 = vmatprep.subr.bf16.mxu0 0
        %464 = vmatpush1.bf16.msra.mxu0 0
        %465 = vmatprep.mubr.bf16.mxu0 0
        %466 = vmatmul.mubr.bf16.gmra.mrb[0].mxu0 %v431
        %v467 = vpop.f32.mrb[0].mxu0
        %v468 = vadd.f32 %v395, %v467
        %v469 = vpop.f32.mrb[0].mxu0
        %v470 = vpop.f32.mrb[0].mxu0
        %v471 = vadd.f32 %v398, %v470
        %v472 = vpop.f32.mrb[0].mxu0
        %473 = vdwg.mxu0
        %vm474 = vcmask 1040384
        %vm475 = vcmask 1042434
        %vm476 = vmor %vm474, %vm475
        %vm477 = vcmask 1044484
        %vm478 = vmor %vm476, %vm477
        %vm479 = vcmask 1046534
        %vm480 = vmor %vm478, %vm479
        %v481 = vrot.slane %v233, 7
        %v482 = vrot.slane %v481, 2
        %v483 = vrot.slane %v234, 7
        %v484 = vsel %vm480, %v482, %v483
        %v485 = vrot.slane %v241, 7
        %v486 = vrot.slane %v485, 2
        %v487 = vrot.slane %v242, 7
        %v488 = vsel %vm480, %v486, %v487
        %v489 = vrot.slane %v249, 7
        %v490 = vrot.slane %v489, 2
        %v491 = vrot.slane %v250, 7
        %v492 = vsel %vm480, %v490, %v491
        %v493 = vrot.slane %v257, 7
        %v494 = vrot.slane %v493, 2
        %v495 = vrot.slane %v258, 7
        %v496 = vsel %vm480, %v494, %v495
        %s497 = scalar_lea.vmem %s1, 32
        %v498 = vld [vmem:[%s497] sm:$0xf]
        %v499 = vld [vmem:[%s497 + $0x4] sm:$0xf]
        %v500 = vld [vmem:[%s497 + $0x8] sm:$0xf]
        %v501 = vld [vmem:[%s497 + $0xc] sm:$0xf]
        %v502 = vcombine.low %v484, %v488
        %v503 = vcombine.low %v492, %v496
        %v505 = vunpack.c.l.s4 1983009808
        %v506 = vunpack.c.0.s8 %v505
        %v507 = vlaneseq
        %v508 = vshrl.u32 %v507, 7
        %v509 = vsub.s32 %v506, %v508
        %v510 = vrot.slane %v502, %v509
        %v512 = vunpack.c.l.s4 1983009808
        %v513 = vunpack.c.0.s8 %v512
        %v514 = vlaneseq
        %v515 = vshrl.u32 %v514, 7
        %v516 = vsub.s32 %v513, %v515
        %v517 = vrot.slane %v503, %v516
        %v518 = vcombine.low %v510, %v517
        %v523 = vunpack.c.l.b16 %v498
        %v524 = vunpack.c.l.b16 %v499
        %v525 = vunpack.c.l.b16 %v500
        %v526 = vunpack.c.l.b16 %v501
        %v527 = vpack.c.b16 %v524, %v523
        %v528 = vpack.c.b16 %v526, %v525
        %v532 = vsel %vm356, %v518, 0
        %534 = vmatprep.subr.bf16.mxu0 0
        %535 = vmatpush1.bf16.msra.mxu0 %v527
        %536 = vmatprep.subr.bf16.mxu0 0
        %537 = vmatpush1.bf16.msra.mxu0 %v528
        %538 = vmatprep.subr.bf16.mxu0 0
        %539 = vmatpush1.bf16.msra.mxu0 0
        %540 = vmatprep.subr.bf16.mxu0 0
        %541 = vmatpush1.bf16.msra.mxu0 0
        %542 = vmatprep.subr.bf16.mxu0 0
        %543 = vmatpush1.bf16.msra.mxu0 0
        %544 = vmatprep.subr.bf16.mxu0 0
        %545 = vmatpush1.bf16.msra.mxu0 0
        %546 = vmatprep.subr.bf16.mxu0 0
        %547 = vmatpush1.bf16.msra.mxu0 0
        %548 = vmatprep.subr.bf16.mxu0 0
        %549 = vmatpush1.bf16.msra.mxu0 0
        %550 = vmatprep.subr.bf16.mxu0 0
        %551 = vmatpush1.bf16.msra.mxu0 0
        %552 = vmatprep.subr.bf16.mxu0 0
        %553 = vmatpush1.bf16.msra.mxu0 0
        %554 = vmatprep.subr.bf16.mxu0 0
        %555 = vmatpush1.bf16.msra.mxu0 0
        %556 = vmatprep.subr.bf16.mxu0 0
        %557 = vmatpush1.bf16.msra.mxu0 0
        %558 = vmatprep.subr.bf16.mxu0 0
        %559 = vmatpush1.bf16.msra.mxu0 0
        %560 = vmatprep.subr.bf16.mxu0 0
        %561 = vmatpush1.bf16.msra.mxu0 0
        %562 = vmatprep.subr.bf16.mxu0 0
        %563 = vmatpush1.bf16.msra.mxu0 0
        %564 = vmatprep.subr.bf16.mxu0 0
        %565 = vmatpush1.bf16.msra.mxu0 0
        %566 = vmatprep.mubr.bf16.mxu0 0
        %567 = vmatmul.mubr.bf16.gmra.mrb[0].mxu0 %v532
        %v568 = vpop.f32.mrb[0].mxu0
        %v569 = vadd.f32 0.0, %v568
        %v570 = vpop.f32.mrb[0].mxu0
        %v571 = vpop.f32.mrb[0].mxu0
        %v572 = vadd.f32 0.0, %v571
        %v573 = vpop.f32.mrb[0].mxu0
        %574 = vdwg.mxu0
        %v575 = vadd.f32 %v468, %v569
        %v576 = vadd.f32 %v471, %v572
        %s577 = sadd.s32 %s212, 1
        %s578 = smul.addr %s577, 4
        %s579 = scalar_lea.vmem %s209, %s578
        %v580 = vld [vmem:[%s579] sm:$0x7]
        %v581 = vld [vmem:[%s579 + $0x4] sm:$0x7]
        %v582 = vld [vmem:[%s579 + $0x8] sm:$0x7]
        %v583 = vld [vmem:[%s579 + $0xc] sm:$0x7]
        %s584 = scalar_lea.vmem %s1, 48
        %v585 = vld [vmem:[%s584] sm:$0xf]
        %v586 = vld [vmem:[%s584 + $0x4] sm:$0xf]
        %v587 = vld [vmem:[%s584 + $0x8] sm:$0xf]
        %v588 = vld [vmem:[%s584 + $0xc] sm:$0xf]
        %v593 = vcombine.low %v580, %v581
        %v594 = vcombine.low %v582, %v583
        %v596 = vunpack.c.l.s4 1983009808
        %v597 = vunpack.c.0.s8 %v596
        %v598 = vlaneseq
        %v599 = vshrl.u32 %v598, 7
        %v600 = vsub.s32 %v597, %v599
        %v601 = vrot.slane %v593, %v600
        %v603 = vunpack.c.l.s4 1983009808
        %v604 = vunpack.c.0.s8 %v603
        %v605 = vlaneseq
        %v606 = vshrl.u32 %v605, 7
        %v607 = vsub.s32 %v604, %v606
        %v608 = vrot.slane %v594, %v607
        %v609 = vcombine.low %v601, %v608
        %v614 = vunpack.c.l.b16 %v585
        %v615 = vunpack.c.l.b16 %v586
        %v616 = vunpack.c.l.b16 %v587
        %v617 = vunpack.c.l.b16 %v588
        %v618 = vpack.c.b16 %v615, %v614
        %v619 = vpack.c.b16 %v617, %v616
        %v623 = vsel %vm356, %v609, 0
        %625 = vmatprep.subr.bf16.mxu0 0
        %626 = vmatpush1.bf16.msra.mxu0 %v618
        %627 = vmatprep.subr.bf16.mxu0 0
        %628 = vmatpush1.bf16.msra.mxu0 %v619
        %629 = vmatprep.subr.bf16.mxu0 0
        %630 = vmatpush1.bf16.msra.mxu0 0
        %631 = vmatprep.subr.bf16.mxu0 0
        %632 = vmatpush1.bf16.msra.mxu0 0
        %633 = vmatprep.subr.bf16.mxu0 0
        %634 = vmatpush1.bf16.msra.mxu0 0
        %635 = vmatprep.subr.bf16.mxu0 0
        %636 = vmatpush1.bf16.msra.mxu0 0
        %637 = vmatprep.subr.bf16.mxu0 0
        %638 = vmatpush1.bf16.msra.mxu0 0
        %639 = vmatprep.subr.bf16.mxu0 0
        %640 = vmatpush1.bf16.msra.mxu0 0
        %641 = vmatprep.subr.bf16.mxu0 0
        %642 = vmatpush1.bf16.msra.mxu0 0
        %643 = vmatprep.subr.bf16.mxu0 0
        %644 = vmatpush1.bf16.msra.mxu0 0
        %645 = vmatprep.subr.bf16.mxu0 0
        %646 = vmatpush1.bf16.msra.mxu0 0
        %647 = vmatprep.subr.bf16.mxu0 0
        %648 = vmatpush1.bf16.msra.mxu0 0
        %649 = vmatprep.subr.bf16.mxu0 0
        %650 = vmatpush1.bf16.msra.mxu0 0
        %651 = vmatprep.subr.bf16.mxu0 0
        %652 = vmatpush1.bf16.msra.mxu0 0
        %653 = vmatprep.subr.bf16.mxu0 0
        %654 = vmatpush1.bf16.msra.mxu0 0
        %655 = vmatprep.subr.bf16.mxu0 0
        %656 = vmatpush1.bf16.msra.mxu0 0
        %657 = vmatprep.mubr.bf16.mxu0 0
        %658 = vmatmul.mubr.bf16.gmra.mrb[0].mxu0 %v623
        %v659 = vpop.f32.mrb[0].mxu0
        %v660 = vadd.f32 0.0, %v659
        %v661 = vpop.f32.mrb[0].mxu0
        %v662 = vpop.f32.mrb[0].mxu0
        %v663 = vadd.f32 0.0, %v662
        %v664 = vpop.f32.mrb[0].mxu0
        %665 = vdwg.mxu0
        %v666 = vadd.f32 %v575, %v660
        %v667 = vadd.f32 %v576, %v663
        %v669 = vunpack.c.l.s4 1983009808
        %v670 = vunpack.c.0.s8 %v669
        %v671 = vlaneseq
        %v672 = vshrl.u32 %v671, 7
        %v673 = vsub.s32 %v670, %v672
        %v674 = vrot.slane %v580, %v673
        %v675 = vcombine.high %v674, %v674
        %v677 = vunpack.c.l.s4 1983009808
        %v678 = vunpack.c.0.s8 %v677
        %v679 = vlaneseq
        %v680 = vshrl.u32 %v679, 7
        %v681 = vsub.s32 %v678, %v680
        %v682 = vrot.slane %v581, %v681
        %v683 = vcombine.high %v682, %v682
        %v685 = vunpack.c.l.s4 1983009808
        %v686 = vunpack.c.0.s8 %v685
        %v687 = vlaneseq
        %v688 = vshrl.u32 %v687, 7
        %v689 = vsub.s32 %v686, %v688
        %v690 = vrot.slane %v582, %v689
        %v691 = vcombine.high %v690, %v690
        %v693 = vunpack.c.l.s4 1983009808
        %v694 = vunpack.c.0.s8 %v693
        %v695 = vlaneseq
        %v696 = vshrl.u32 %v695, 7
        %v697 = vsub.s32 %v694, %v696
        %v698 = vrot.slane %v583, %v697
        %v699 = vcombine.high %v698, %v698
        %v701 = vshrl.u32 %v674, 16
        %v703 = vrot.slane %v701, 6
        %v704 = vshll.u32 %v674, 16
        %v706 = vrot.slane %v704, 7
        %v707 = vor.u32 %v703, %v706
        %v708 = vrot.slane %v707, 2
        %v710 = vshll.u32 %v675, 16
        %v712 = vrot.slane %v710, 7
        %v713 = vsel %vm265, %v708, %v712
        %v715 = vshrl.u32 %v682, 16
        %v717 = vrot.slane %v715, 6
        %v718 = vshll.u32 %v682, 16
        %v720 = vrot.slane %v718, 7
        %v721 = vor.u32 %v717, %v720
        %v722 = vrot.slane %v721, 2
        %v724 = vshll.u32 %v683, 16
        %v726 = vrot.slane %v724, 7
        %v727 = vsel %vm265, %v722, %v726
        %v729 = vshrl.u32 %v690, 16
        %v731 = vrot.slane %v729, 6
        %v732 = vshll.u32 %v690, 16
        %v734 = vrot.slane %v732, 7
        %v735 = vor.u32 %v731, %v734
        %v736 = vrot.slane %v735, 2
        %v738 = vshll.u32 %v691, 16
        %v740 = vrot.slane %v738, 7
        %v741 = vsel %vm265, %v736, %v740
        %v743 = vshrl.u32 %v698, 16
        %v745 = vrot.slane %v743, 6
        %v746 = vshll.u32 %v698, 16
        %v748 = vrot.slane %v746, 7
        %v749 = vor.u32 %v745, %v748
        %v750 = vrot.slane %v749, 2
        %v752 = vshll.u32 %v699, 16
        %v754 = vrot.slane %v752, 7
        %v755 = vsel %vm265, %v750, %v754
        %s756 = scalar_lea.vmem %s1, 64
        %v757 = vld [vmem:[%s756] sm:$0xf]
        %v758 = vld [vmem:[%s756 + $0x4] sm:$0xf]
        %v759 = vld [vmem:[%s756 + $0x8] sm:$0xf]
        %v760 = vld [vmem:[%s756 + $0xc] sm:$0xf]
        %v761 = vcombine.low %v713, %v727
        %v762 = vcombine.low %v741, %v755
        %v764 = vunpack.c.l.s4 1983009808
        %v765 = vunpack.c.0.s8 %v764
        %v766 = vlaneseq
        %v767 = vshrl.u32 %v766, 7
        %v768 = vsub.s32 %v765, %v767
        %v769 = vrot.slane %v761, %v768
        %v771 = vunpack.c.l.s4 1983009808
        %v772 = vunpack.c.0.s8 %v771
        %v773 = vlaneseq
        %v774 = vshrl.u32 %v773, 7
        %v775 = vsub.s32 %v772, %v774
        %v776 = vrot.slane %v762, %v775
        %v777 = vcombine.low %v769, %v776
        %v782 = vunpack.c.l.b16 %v757
        %v783 = vunpack.c.l.b16 %v758
        %v784 = vunpack.c.l.b16 %v759
        %v785 = vunpack.c.l.b16 %v760
        %v786 = vpack.c.b16 %v783, %v782
        %v787 = vpack.c.b16 %v785, %v784
        %v791 = vsel %vm356, %v777, 0
        %793 = vmatprep.subr.bf16.mxu0 0
        %794 = vmatpush1.bf16.msra.mxu0 %v786
        %795 = vmatprep.subr.bf16.mxu0 0
        %796 = vmatpush1.bf16.msra.mxu0 %v787
        %797 = vmatprep.subr.bf16.mxu0 0
        %798 = vmatpush1.bf16.msra.mxu0 0
        %799 = vmatprep.subr.bf16.mxu0 0
        %800 = vmatpush1.bf16.msra.mxu0 0
        %801 = vmatprep.subr.bf16.mxu0 0
        %802 = vmatpush1.bf16.msra.mxu0 0
        %803 = vmatprep.subr.bf16.mxu0 0
        %804 = vmatpush1.bf16.msra.mxu0 0
        %805 = vmatprep.subr.bf16.mxu0 0
        %806 = vmatpush1.bf16.msra.mxu0 0
        %807 = vmatprep.subr.bf16.mxu0 0
        %808 = vmatpush1.bf16.msra.mxu0 0
        %809 = vmatprep.subr.bf16.mxu0 0
        %810 = vmatpush1.bf16.msra.mxu0 0
        %811 = vmatprep.subr.bf16.mxu0 0
        %812 = vmatpush1.bf16.msra.mxu0 0
        %813 = vmatprep.subr.bf16.mxu0 0
        %814 = vmatpush1.bf16.msra.mxu0 0
        %815 = vmatprep.subr.bf16.mxu0 0
        %816 = vmatpush1.bf16.msra.mxu0 0
        %817 = vmatprep.subr.bf16.mxu0 0
        %818 = vmatpush1.bf16.msra.mxu0 0
        %819 = vmatprep.subr.bf16.mxu0 0
        %820 = vmatpush1.bf16.msra.mxu0 0
        %821 = vmatprep.subr.bf16.mxu0 0
        %822 = vmatpush1.bf16.msra.mxu0 0
        %823 = vmatprep.subr.bf16.mxu0 0
        %824 = vmatpush1.bf16.msra.mxu0 0
        %825 = vmatprep.mubr.bf16.mxu0 0
        %826 = vmatmul.mubr.bf16.gmra.mrb[0].mxu0 %v791
        %v827 = vpop.f32.mrb[0].mxu0
        %v828 = vadd.f32 0.0, %v827
        %v829 = vpop.f32.mrb[0].mxu0
        %v830 = vpop.f32.mrb[0].mxu0
        %v831 = vadd.f32 0.0, %v830
        %v832 = vpop.f32.mrb[0].mxu0
        %833 = vdwg.mxu0
        %v834 = vadd.f32 %v666, %v828
        %v835 = vadd.f32 %v667, %v831
        %v836 = vrot.slane %v674, 7
        %v837 = vrot.slane %v836, 2
        %v838 = vrot.slane %v675, 7
        %v839 = vsel %vm480, %v837, %v838
        %v840 = vrot.slane %v682, 7
        %v841 = vrot.slane %v840, 2
        %v842 = vrot.slane %v683, 7
        %v843 = vsel %vm480, %v841, %v842
        %v844 = vrot.slane %v690, 7
        %v845 = vrot.slane %v844, 2
        %v846 = vrot.slane %v691, 7
        %v847 = vsel %vm480, %v845, %v846
        %v848 = vrot.slane %v698, 7
        %v849 = vrot.slane %v848, 2
        %v850 = vrot.slane %v699, 7
        %v851 = vsel %vm480, %v849, %v850
        %s852 = scalar_lea.vmem %s1, 80
        %v853 = vld [vmem:[%s852] sm:$0xf]
        %v854 = vld [vmem:[%s852 + $0x4] sm:$0xf]
        %v855 = vld [vmem:[%s852 + $0x8] sm:$0xf]
        %v856 = vld [vmem:[%s852 + $0xc] sm:$0xf]
        %v857 = vcombine.low %v839, %v843
        %v858 = vcombine.low %v847, %v851
        %v860 = vunpack.c.l.s4 1983009808
        %v861 = vunpack.c.0.s8 %v860
        %v862 = vlaneseq
        %v863 = vshrl.u32 %v862, 7
        %v864 = vsub.s32 %v861, %v863
        %v865 = vrot.slane %v857, %v864
        %v867 = vunpack.c.l.s4 1983009808
        %v868 = vunpack.c.0.s8 %v867
        %v869 = vlaneseq
        %v870 = vshrl.u32 %v869, 7
        %v871 = vsub.s32 %v868, %v870
        %v872 = vrot.slane %v858, %v871
        %v873 = vcombine.low %v865, %v872
        %v878 = vunpack.c.l.b16 %v853
        %v879 = vunpack.c.l.b16 %v854
        %v880 = vunpack.c.l.b16 %v855
        %v881 = vunpack.c.l.b16 %v856
        %v882 = vpack.c.b16 %v879, %v878
        %v883 = vpack.c.b16 %v881, %v880
        %v887 = vsel %vm356, %v873, 0
        %889 = vmatprep.subr.bf16.mxu0 0
        %890 = vmatpush1.bf16.msra.mxu0 %v882
        %891 = vmatprep.subr.bf16.mxu0 0
        %892 = vmatpush1.bf16.msra.mxu0 %v883
        %893 = vmatprep.subr.bf16.mxu0 0
        %894 = vmatpush1.bf16.msra.mxu0 0
        %895 = vmatprep.subr.bf16.mxu0 0
        %896 = vmatpush1.bf16.msra.mxu0 0
        %897 = vmatprep.subr.bf16.mxu0 0
        %898 = vmatpush1.bf16.msra.mxu0 0
        %899 = vmatprep.subr.bf16.mxu0 0
        %900 = vmatpush1.bf16.msra.mxu0 0
        %901 = vmatprep.subr.bf16.mxu0 0
        %902 = vmatpush1.bf16.msra.mxu0 0
        %903 = vmatprep.subr.bf16.mxu0 0
        %904 = vmatpush1.bf16.msra.mxu0 0
        %905 = vmatprep.subr.bf16.mxu0 0
        %906 = vmatpush1.bf16.msra.mxu0 0
        %907 = vmatprep.subr.bf16.mxu0 0
        %908 = vmatpush1.bf16.msra.mxu0 0
        %909 = vmatprep.subr.bf16.mxu0 0
        %910 = vmatpush1.bf16.msra.mxu0 0
        %911 = vmatprep.subr.bf16.mxu0 0
        %912 = vmatpush1.bf16.msra.mxu0 0
        %913 = vmatprep.subr.bf16.mxu0 0
        %914 = vmatpush1.bf16.msra.mxu0 0
        %915 = vmatprep.subr.bf16.mxu0 0
        %916 = vmatpush1.bf16.msra.mxu0 0
        %917 = vmatprep.subr.bf16.mxu0 0
        %918 = vmatpush1.bf16.msra.mxu0 0
        %919 = vmatprep.subr.bf16.mxu0 0
        %920 = vmatpush1.bf16.msra.mxu0 0
        %921 = vmatprep.mubr.bf16.mxu0 0
        %922 = vmatmul.mubr.bf16.gmra.mrb[0].mxu0 %v887
        %v923 = vpop.f32.mrb[0].mxu0
        %v924 = vadd.f32 0.0, %v923
        %v925 = vpop.f32.mrb[0].mxu0
        %v926 = vpop.f32.mrb[0].mxu0
        %v927 = vadd.f32 0.0, %v926
        %v928 = vpop.f32.mrb[0].mxu0
        %929 = vdwg.mxu0
        %v930 = vadd.f32 %v834, %v924
        %v931 = vadd.f32 %v835, %v927
        %s932 = sadd.s32 %s212, 2
        %s933 = smul.addr %s932, 4
        %s934 = scalar_lea.vmem %s209, %s933
        %v935 = vld [vmem:[%s934] sm:$0x7]
        %v936 = vld [vmem:[%s934 + $0x4] sm:$0x7]
        %v937 = vld [vmem:[%s934 + $0x8] sm:$0x7]
        %v938 = vld [vmem:[%s934 + $0xc] sm:$0x7]
        %s939 = scalar_lea.vmem %s1, 96
        %v940 = vld [vmem:[%s939] sm:$0xf]
        %v941 = vld [vmem:[%s939 + $0x4] sm:$0xf]
        %v942 = vld [vmem:[%s939 + $0x8] sm:$0xf]
        %v943 = vld [vmem:[%s939 + $0xc] sm:$0xf]
        %v948 = vcombine.low %v935, %v936
        %v949 = vcombine.low %v937, %v938
        %v951 = vunpack.c.l.s4 1983009808
        %v952 = vunpack.c.0.s8 %v951
        %v953 = vlaneseq
        %v954 = vshrl.u32 %v953, 7
        %v955 = vsub.s32 %v952, %v954
        %v956 = vrot.slane %v948, %v955
        %v958 = vunpack.c.l.s4 1983009808
        %v959 = vunpack.c.0.s8 %v958
        %v960 = vlaneseq
        %v961 = vshrl.u32 %v960, 7
        %v962 = vsub.s32 %v959, %v961
        %v963 = vrot.slane %v949, %v962
        %v964 = vcombine.low %v956, %v963
        %v969 = vunpack.c.l.b16 %v940
        %v970 = vunpack.c.l.b16 %v941
        %v971 = vunpack.c.l.b16 %v942
        %v972 = vunpack.c.l.b16 %v943
        %v973 = vpack.c.b16 %v970, %v969
        %v974 = vpack.c.b16 %v972, %v971
        %v978 = vsel %vm356, %v964, 0
        %980 = vmatprep.subr.bf16.mxu0 0
        %981 = vmatpush1.bf16.msra.mxu0 %v973
        %982 = vmatprep.subr.bf16.mxu0 0
        %983 = vmatpush1.bf16.msra.mxu0 %v974
        %984 = vmatprep.subr.bf16.mxu0 0
        %985 = vmatpush1.bf16.msra.mxu0 0
        %986 = vmatprep.subr.bf16.mxu0 0
        %987 = vmatpush1.bf16.msra.mxu0 0
        %988 = vmatprep.subr.bf16.mxu0 0
        %989 = vmatpush1.bf16.msra.mxu0 0
        %990 = vmatprep.subr.bf16.mxu0 0
        %991 = vmatpush1.bf16.msra.mxu0 0
        %992 = vmatprep.subr.bf16.mxu0 0
        %993 = vmatpush1.bf16.msra.mxu0 0
        %994 = vmatprep.subr.bf16.mxu0 0
        %995 = vmatpush1.bf16.msra.mxu0 0
        %996 = vmatprep.subr.bf16.mxu0 0
        %997 = vmatpush1.bf16.msra.mxu0 0
        %998 = vmatprep.subr.bf16.mxu0 0
        %999 = vmatpush1.bf16.msra.mxu0 0
        %1000 = vmatprep.subr.bf16.mxu0 0
        %1001 = vmatpush1.bf16.msra.mxu0 0
        %1002 = vmatprep.subr.bf16.mxu0 0
        %1003 = vmatpush1.bf16.msra.mxu0 0
        %1004 = vmatprep.subr.bf16.mxu0 0
        %1005 = vmatpush1.bf16.msra.mxu0 0
        %1006 = vmatprep.subr.bf16.mxu0 0
        %1007 = vmatpush1.bf16.msra.mxu0 0
        %1008 = vmatprep.subr.bf16.mxu0 0
        %1009 = vmatpush1.bf16.msra.mxu0 0
        %1010 = vmatprep.subr.bf16.mxu0 0
        %1011 = vmatpush1.bf16.msra.mxu0 0
        %1012 = vmatprep.mubr.bf16.mxu0 0
        %1013 = vmatmul.mubr.bf16.gmra.mrb[0].mxu0 %v978
        %v1014 = vpop.f32.mrb[0].mxu0
        %v1015 = vadd.f32 0.0, %v1014
        %v1016 = vpop.f32.mrb[0].mxu0
        %v1017 = vpop.f32.mrb[0].mxu0
        %v1018 = vadd.f32 0.0, %v1017
        %v1019 = vpop.f32.mrb[0].mxu0
        %1020 = vdwg.mxu0
        %v1021 = vadd.f32 %v930, %v1015
        %v1022 = vadd.f32 %v931, %v1018
        %v1024 = vunpack.c.l.s4 1983009808
        %v1025 = vunpack.c.0.s8 %v1024
        %v1026 = vlaneseq
        %v1027 = vshrl.u32 %v1026, 7
        %v1028 = vsub.s32 %v1025, %v1027
        %v1029 = vrot.slane %v935, %v1028
        %v1030 = vcombine.high %v1029, %v1029
        %v1032 = vunpack.c.l.s4 1983009808
        %v1033 = vunpack.c.0.s8 %v1032
        %v1034 = vlaneseq
        %v1035 = vshrl.u32 %v1034, 7
        %v1036 = vsub.s32 %v1033, %v1035
        %v1037 = vrot.slane %v936, %v1036
        %v1038 = vcombine.high %v1037, %v1037
        %v1040 = vunpack.c.l.s4 1983009808
        %v1041 = vunpack.c.0.s8 %v1040
        %v1042 = vlaneseq
        %v1043 = vshrl.u32 %v1042, 7
        %v1044 = vsub.s32 %v1041, %v1043
        %v1045 = vrot.slane %v937, %v1044
        %v1046 = vcombine.high %v1045, %v1045
        %v1048 = vunpack.c.l.s4 1983009808
        %v1049 = vunpack.c.0.s8 %v1048
        %v1050 = vlaneseq
        %v1051 = vshrl.u32 %v1050, 7
        %v1052 = vsub.s32 %v1049, %v1051
        %v1053 = vrot.slane %v938, %v1052
        %v1054 = vcombine.high %v1053, %v1053
        %v1056 = vshrl.u32 %v1029, 16
        %v1058 = vrot.slane %v1056, 6
        %v1059 = vshll.u32 %v1029, 16
        %v1061 = vrot.slane %v1059, 7
        %v1062 = vor.u32 %v1058, %v1061
        %v1063 = vrot.slane %v1062, 2
        %v1065 = vshll.u32 %v1030, 16
        %v1067 = vrot.slane %v1065, 7
        %v1068 = vsel %vm265, %v1063, %v1067
        %v1070 = vshrl.u32 %v1037, 16
        %v1072 = vrot.slane %v1070, 6
        %v1073 = vshll.u32 %v1037, 16
        %v1075 = vrot.slane %v1073, 7
        %v1076 = vor.u32 %v1072, %v1075
        %v1077 = vrot.slane %v1076, 2
        %v1079 = vshll.u32 %v1038, 16
        %v1081 = vrot.slane %v1079, 7
        %v1082 = vsel %vm265, %v1077, %v1081
        %v1084 = vshrl.u32 %v1045, 16
        %v1086 = vrot.slane %v1084, 6
        %v1087 = vshll.u32 %v1045, 16
        %v1089 = vrot.slane %v1087, 7
        %v1090 = vor.u32 %v1086, %v1089
        %v1091 = vrot.slane %v1090, 2
        %v1093 = vshll.u32 %v1046, 16
        %v1095 = vrot.slane %v1093, 7
        %v1096 = vsel %vm265, %v1091, %v1095
        %v1098 = vshrl.u32 %v1053, 16
        %v1100 = vrot.slane %v1098, 6
        %v1101 = vshll.u32 %v1053, 16
        %v1103 = vrot.slane %v1101, 7
        %v1104 = vor.u32 %v1100, %v1103
        %v1105 = vrot.slane %v1104, 2
        %v1107 = vshll.u32 %v1054, 16
        %v1109 = vrot.slane %v1107, 7
        %v1110 = vsel %vm265, %v1105, %v1109
        %s1111 = scalar_lea.vmem %s1, 112
        %v1112 = vld [vmem:[%s1111] sm:$0xf]
        %v1113 = vld [vmem:[%s1111 + $0x4] sm:$0xf]
        %v1114 = vld [vmem:[%s1111 + $0x8] sm:$0xf]
        %v1115 = vld [vmem:[%s1111 + $0xc] sm:$0xf]
        %v1116 = vcombine.low %v1068, %v1082
        %v1117 = vcombine.low %v1096, %v1110
        %v1119 = vunpack.c.l.s4 1983009808
        %v1120 = vunpack.c.0.s8 %v1119
        %v1121 = vlaneseq
        %v1122 = vshrl.u32 %v1121, 7
        %v1123 = vsub.s32 %v1120, %v1122
        %v1124 = vrot.slane %v1116, %v1123
        %v1126 = vunpack.c.l.s4 1983009808
        %v1127 = vunpack.c.0.s8 %v1126
        %v1128 = vlaneseq
        %v1129 = vshrl.u32 %v1128, 7
        %v1130 = vsub.s32 %v1127, %v1129
        %v1131 = vrot.slane %v1117, %v1130
        %v1132 = vcombine.low %v1124, %v1131
        %v1137 = vunpack.c.l.b16 %v1112
        %v1138 = vunpack.c.l.b16 %v1113
        %v1139 = vunpack.c.l.b16 %v1114
        %v1140 = vunpack.c.l.b16 %v1115
        %v1141 = vpack.c.b16 %v1138, %v1137
        %v1142 = vpack.c.b16 %v1140, %v1139
        %v1146 = vsel %vm356, %v1132, 0
        %1148 = vmatprep.subr.bf16.mxu0 0
        %1149 = vmatpush1.bf16.msra.mxu0 %v1141
        %1150 = vmatprep.subr.bf16.mxu0 0
        %1151 = vmatpush1.bf16.msra.mxu0 %v1142
        %1152 = vmatprep.subr.bf16.mxu0 0
        %1153 = vmatpush1.bf16.msra.mxu0 0
        %1154 = vmatprep.subr.bf16.mxu0 0
        %1155 = vmatpush1.bf16.msra.mxu0 0
        %1156 = vmatprep.subr.bf16.mxu0 0
        %1157 = vmatpush1.bf16.msra.mxu0 0
        %1158 = vmatprep.subr.bf16.mxu0 0
        %1159 = vmatpush1.bf16.msra.mxu0 0
        %1160 = vmatprep.subr.bf16.mxu0 0
        %1161 = vmatpush1.bf16.msra.mxu0 0
        %1162 = vmatprep.subr.bf16.mxu0 0
        %1163 = vmatpush1.bf16.msra.mxu0 0
        %1164 = vmatprep.subr.bf16.mxu0 0
        %1165 = vmatpush1.bf16.msra.mxu0 0
        %1166 = vmatprep.subr.bf16.mxu0 0
        %1167 = vmatpush1.bf16.msra.mxu0 0
        %1168 = vmatprep.subr.bf16.mxu0 0
        %1169 = vmatpush1.bf16.msra.mxu0 0
        %1170 = vmatprep.subr.bf16.mxu0 0
        %1171 = vmatpush1.bf16.msra.mxu0 0
        %1172 = vmatprep.subr.bf16.mxu0 0
        %1173 = vmatpush1.bf16.msra.mxu0 0
        %1174 = vmatprep.subr.bf16.mxu0 0
        %1175 = vmatpush1.bf16.msra.mxu0 0
        %1176 = vmatprep.subr.bf16.mxu0 0
        %1177 = vmatpush1.bf16.msra.mxu0 0
        %1178 = vmatprep.subr.bf16.mxu0 0
        %1179 = vmatpush1.bf16.msra.mxu0 0
        %1180 = vmatprep.mubr.bf16.mxu0 0
        %1181 = vmatmul.mubr.bf16.gmra.mrb[0].mxu0 %v1146
        %v1182 = vpop.f32.mrb[0].mxu0
        %v1183 = vadd.f32 0.0, %v1182
        %v1184 = vpop.f32.mrb[0].mxu0
        %v1185 = vpop.f32.mrb[0].mxu0
        %v1186 = vadd.f32 0.0, %v1185
        %v1187 = vpop.f32.mrb[0].mxu0
        %1188 = vdwg.mxu0
        %v1189 = vadd.f32 %v1021, %v1183
        %v1190 = vadd.f32 %v1022, %v1186
        %v1191 = vrot.slane %v1029, 7
        %v1192 = vrot.slane %v1191, 2
        %v1193 = vrot.slane %v1030, 7
        %v1194 = vsel %vm480, %v1192, %v1193
        %v1195 = vrot.slane %v1037, 7
        %v1196 = vrot.slane %v1195, 2
        %v1197 = vrot.slane %v1038, 7
        %v1198 = vsel %vm480, %v1196, %v1197
        %v1199 = vrot.slane %v1045, 7
        %v1200 = vrot.slane %v1199, 2
        %v1201 = vrot.slane %v1046, 7
        %v1202 = vsel %vm480, %v1200, %v1201
        %v1203 = vrot.slane %v1053, 7
        %v1204 = vrot.slane %v1203, 2
        %v1205 = vrot.slane %v1054, 7
        %v1206 = vsel %vm480, %v1204, %v1205
        %s1207 = scalar_lea.vmem %s1, 128
        %v1208 = vld [vmem:[%s1207] sm:$0xf]
        %v1209 = vld [vmem:[%s1207 + $0x4] sm:$0xf]
        %v1210 = vld [vmem:[%s1207 + $0x8] sm:$0xf]
        %v1211 = vld [vmem:[%s1207 + $0xc] sm:$0xf]
        %v1212 = vcombine.low %v1194, %v1198
        %v1213 = vcombine.low %v1202, %v1206
        %v1215 = vunpack.c.l.s4 1983009808
        %v1216 = vunpack.c.0.s8 %v1215
        %v1217 = vlaneseq
        %v1218 = vshrl.u32 %v1217, 7
        %v1219 = vsub.s32 %v1216, %v1218
        %v1220 = vrot.slane %v1212, %v1219
        %v1222 = vunpack.c.l.s4 1983009808
        %v1223 = vunpack.c.0.s8 %v1222
        %v1224 = vlaneseq
        %v1225 = vshrl.u32 %v1224, 7
        %v1226 = vsub.s32 %v1223, %v1225
        %v1227 = vrot.slane %v1213, %v1226
        %v1228 = vcombine.low %v1220, %v1227
        %v1233 = vunpack.c.l.b16 %v1208
        %v1234 = vunpack.c.l.b16 %v1209
        %v1235 = vunpack.c.l.b16 %v1210
        %v1236 = vunpack.c.l.b16 %v1211
        %v1237 = vpack.c.b16 %v1234, %v1233
        %v1238 = vpack.c.b16 %v1236, %v1235
        %v1242 = vsel %vm356, %v1228, 0
        %1244 = vmatprep.subr.bf16.mxu0 0
        %1245 = vmatpush1.bf16.msra.mxu0 %v1237
        %1246 = vmatprep.subr.bf16.mxu0 0
        %1247 = vmatpush1.bf16.msra.mxu0 %v1238
        %1248 = vmatprep.subr.bf16.mxu0 0
        %1249 = vmatpush1.bf16.msra.mxu0 0
        %1250 = vmatprep.subr.bf16.mxu0 0
        %1251 = vmatpush1.bf16.msra.mxu0 0
        %1252 = vmatprep.subr.bf16.mxu0 0
        %1253 = vmatpush1.bf16.msra.mxu0 0
        %1254 = vmatprep.subr.bf16.mxu0 0
        %1255 = vmatpush1.bf16.msra.mxu0 0
        %1256 = vmatprep.subr.bf16.mxu0 0
        %1257 = vmatpush1.bf16.msra.mxu0 0
        %1258 = vmatprep.subr.bf16.mxu0 0
        %1259 = vmatpush1.bf16.msra.mxu0 0
        %1260 = vmatprep.subr.bf16.mxu0 0
        %1261 = vmatpush1.bf16.msra.mxu0 0
        %1262 = vmatprep.subr.bf16.mxu0 0
        %1263 = vmatpush1.bf16.msra.mxu0 0
        %1264 = vmatprep.subr.bf16.mxu0 0
        %1265 = vmatpush1.bf16.msra.mxu0 0
        %1266 = vmatprep.subr.bf16.mxu0 0
        %1267 = vmatpush1.bf16.msra.mxu0 0
        %1268 = vmatprep.subr.bf16.mxu0 0
        %1269 = vmatpush1.bf16.msra.mxu0 0
        %1270 = vmatprep.subr.bf16.mxu0 0
        %1271 = vmatpush1.bf16.msra.mxu0 0
        %1272 = vmatprep.subr.bf16.mxu0 0
        %1273 = vmatpush1.bf16.msra.mxu0 0
        %1274 = vmatprep.subr.bf16.mxu0 0
        %1275 = vmatpush1.bf16.msra.mxu0 0
        %1276 = vmatprep.mubr.bf16.mxu0 0
        %1277 = vmatmul.mubr.bf16.gmra.mrb[0].mxu0 %v1242
        %v1278 = vpop.f32.mrb[0].mxu0
        %v1279 = vadd.f32 0.0, %v1278
        %v1280 = vpop.f32.mrb[0].mxu0
        %v1281 = vpop.f32.mrb[0].mxu0
        %v1282 = vadd.f32 0.0, %v1281
        %v1283 = vpop.f32.mrb[0].mxu0
        %1284 = vdwg.mxu0
        %v1285 = vadd.f32 %v1189, %v1279
        %v1286 = vadd.f32 %v1190, %v1282
        %v1287 = vld [vmem:[%s2] sm:$0x1]
        %v1288 = vld [vmem:[%s3] sm:$0x1]
        %v1289 = vsel %vm356, %v1285, 0.0
        %1290 = vadd.xlane.f32.xlu0 %v1289
        %v1291 = vpop.xlane.xlu0 %1290
        %v1292 = vsel %vm356, %v1286, 0.0
        %1293 = vadd.xlane.f32.xlu0 %v1292
        %v1294 = vpop.xlane.xlu0 %1293
        %v1295 = vrcp.pop 32.0
        %v1296 = vmul.f32 %v1291, %v1295
        %v1297 = vmul.f32 %v1294, %v1295
        %v1298 = vsub.f32 %v1285, %v1296
        %v1299 = vsub.f32 %v1286, %v1297
        %v1300 = vmul.f32 %v1298, %v1298
        %v1301 = vmul.f32 %v1299, %v1299
        %v1302 = vsel %vm356, %v1300, 0.0
        %1303 = vadd.xlane.f32.xlu0 %v1302
        %v1304 = vpop.xlane.xlu0 %1303
        %v1305 = vsel %vm356, %v1301, 0.0
        %1306 = vadd.xlane.f32.xlu0 %v1305
        %v1307 = vpop.xlane.xlu0 %1306
        %v1308 = vmul.f32 %v1304, %v1295
        %v1309 = vmul.f32 %v1307, %v1295
        %v1310 = vadd.f32 %v1308, 1e-06
        %v1311 = vadd.f32 %v1309, 1e-06
        %v1312 = vrsqrt.pop %v1310
        %v1313 = vrsqrt.pop %v1311
        %v1314 = vmul.f32 %v1298, %v1312
        %v1315 = vmul.f32 %v1299, %v1313
        %v1317 = vlaneseq
        %v1318 = vshrl.u32 %v1317, 7
        %v1319 = vsub.s32 0, %v1318
        %v1320 = vrot.slane %v1287, %v1319
        %v1322 = vmul.f32 %v1314, %v1320
        %v1323 = vmul.f32 %v1315, %v1320
        %v1325 = vlaneseq
        %v1326 = vshrl.u32 %v1325, 7
        %v1327 = vsub.s32 0, %v1326
        %v1328 = vrot.slane %v1288, %v1327
        %v1330 = vadd.f32 %v1322, %v1328
        %v1331 = vadd.f32 %v1323, %v1328
        %v1334 = vcombine.high %v1330, %v1330
        %v1335 = vcombine.high %v1331, %v1331
        %vm1338 = vcmask 257024
        %1339 = vst.msk [vmem:[%s204] sm:$0xf] %vm1338, %v1330
        %1340 = vst.msk [vmem:[%s204 + $0x4] sm:$0xf] %vm1338, %v1334
        %1341 = vst.msk [vmem:[%s204 + $0x8] sm:$0xf] %vm1338, %v1331
        %1342 = vst.msk [vmem:[%s204 + $0xc] sm:$0xf] %vm1338, %v1335
        %s1343 = sand.u32 %s129, 1
        %s1344 = scalar_lea.sflag [#allocation3], %s1343
        %s1345 = sand.u32 %s129, 1
        %s1346 = smul.addr %s1345, 16
        %s1347 = scalar_lea.vmem [#allocation2], %s1346
        // Predicated region
        $region37: #{image_encoder_forward.25} parent=35 // pred_check
          %p1348 = pneg %p139
        $region38: #{image_encoder_forward.25} parent=35 // pred_check_branch
          %1350 = sbr.rel (%p1348) target = $region40
        $region39: #{image_encoder_forward.25} parent=35 // pred_region
          %s1351 = smul.u32 4, %s23
          %s1353 = ssub.s32 256, 256
          %1354 = vsyncadd %s1344, %s1353
          %s1355 = smul.addr %s22, 4
          %s1356 = sadd.s32 %s1351, %s1355
          %s1357 = smul.addr %s1356, 64
          %s1358 = scalar_lea.hbm %s4, %s1357
          %s1359 = sshll.u32 %s1347, 4
          %s1360 = int_to_ptr.vmem [resolvable:$true] %s1359
          %1365 = dma.vmem_to_hbm [thread:$0]  %s1360, 256, %s1358, %s1344, 64, 64, 4
        $region40: #{image_encoder_forward.25} parent=35 // pred_fallthru
          _
      $region36: #{image_encoder_forward.25} parent=5 // pred_fallthru
        _
      %p1366 = scmp.le.s32.totalorder 2, %s13
      // Predicated region
      $region41: #{image_encoder_forward.25} parent=5 // pred_check
        %p1367 = pneg %p1366
      $region42: #{image_encoder_forward.25} parent=5 // pred_check_branch
        %1369 = sbr.rel (%p1367) target = $region44
      $region43: #{image_encoder_forward.25} parent=5 // pred_region
        %s1370 = ssub.s32 %s13, 2
        // Predicated region
        $region45: #{image_encoder_forward.25} parent=43 // pred_check
          %p1371 = pneg %p145
        $region46: #{image_encoder_forward.25} parent=43 // pred_check_branch
          %1373 = sbr.rel (%p1371) target = $region48
        $region47: #{image_encoder_forward.25} parent=43 // pred_region
          %s1374 = sand.u32 %s130, 1
          %s1375 = scalar_lea.sflag [#allocation3], %s1374
          %s1376 = sand.u32 %s130, 1
          %s1377 = smul.addr %s1376, 16
          %s1378 = scalar_lea.vmem [#allocation2], %s1377
          %1379 = dma.done %s1375, 256
        $region48: #{image_encoder_forward.25} parent=43 // pred_fallthru
          _
      $region44: #{image_encoder_forward.25} parent=5 // pred_fallthru
        _
    $region6: #{image_encoder_forward.25} parent=1 // loop_footer
      %s17 = sadd.s32 1, %s13
    $region7: #{image_encoder_forward.25} parent=1 // loop_footer_branch
      %12 = sbr.rel target = $region3
    $region8: #{image_encoder_forward.25} parent=1 // loop_exit
      _
    %1380 = vsyncpa [#allocation3], 1
    %s1381 = scalar_lea.sflag [#allocation3], 1
    %1382 = vsyncpa %s1381, 1

</llo_original>
